<compile_context>
chip_gen: v5e
topology: v5e:2x2
jax: 0.10.0
libtpu: 0.0.40
codegen_flags: <defaults>
</compile_context>

<pallas_src>
import jax
import jax.numpy as jnp
from jax import lax
from jax.experimental import pallas as pl
from jax.experimental.pallas import tpu as pltpu

EPS = 1e-5


def bn_relu_kernel(x_ref, gamma_ref, beta_ref, o_ref):
    # x_ref: (Cb, R) — channels on sublanes, spatial (N*H*W) on lanes.
    # gamma_ref/beta_ref: (Cb, 1).
    x = x_ref[...].astype(jnp.float32)          # (Cb, R)
    r = x.shape[-1]
    inv_r = 1.0 / float(r)

    # One-pass per-channel statistics (reduce over the lane axis).
    s1 = jnp.sum(x, axis=1, keepdims=True)      # (Cb, 1)
    s2 = jnp.sum(x * x, axis=1, keepdims=True)  # (Cb, 1)
    mean = s1 * inv_r
    var = jnp.maximum(s2 * inv_r - mean * mean, 0.0)  # clamp tiny negatives
    inv_std = lax.rsqrt(var + EPS)

    gamma = gamma_ref[...].astype(jnp.float32)  # (Cb, 1)
    beta = beta_ref[...].astype(jnp.float32)    # (Cb, 1)
    scale = gamma * inv_std                     # (Cb, 1)
    shift = beta - mean * scale                 # (Cb, 1)

    # Re-read x for the elementwise pass (cheap VMEM loads, minimal live range).
    xo = x_ref[...].astype(jnp.float32)
    o_ref[...] = jnp.maximum(xo * scale + shift, 0.0).astype(o_ref.dtype)


def _num_channel_blocks(C):
    """Split channels across TensorCores only where it pays off (v7x has 2 TCs)."""
    try:
        kind = jax.devices()[0].device_kind.lower()
    except Exception:
        kind = ""
    n = 2 if "v7" in kind else 1
    if n > 1 and (C % n != 0 or (C // n) % 8 != 0):
        n = 1
    return n


@jax.jit
def batchnorm_relu(x_nchw, gamma, beta):
    """x_nchw: (N, C, H, W) float32; gamma, beta: (C,) float32. Returns NCHW."""
    N, C, H, W = x_nchw.shape
    R = N * H * W

    # NCHW -> (C, N*H*W). For N == 1 this is a pure reshape (no data movement).
    if N == 1:
        x2d = x_nchw.reshape(C, R)
    else:
        x2d = jnp.transpose(x_nchw, (1, 0, 2, 3)).reshape(C, R)

    nb = _num_channel_blocks(C)
    Cb = C // nb

    out2d = pl.pallas_call(
        bn_relu_kernel,
        out_shape=jax.ShapeDtypeStruct((C, R), x2d.dtype),
        grid_spec=pltpu.PrefetchScalarGridSpec(
            num_scalar_prefetch=0,
            grid=(nb,),
            in_specs=[
                pl.BlockSpec((Cb, R), lambda i: (i, 0)),
                pl.BlockSpec((Cb, 1), lambda i: (i, 0)),
                pl.BlockSpec((Cb, 1), lambda i: (i, 0)),
            ],
            out_specs=pl.BlockSpec((Cb, R), lambda i: (i, 0)),
        ),
        compiler_params=pltpu.CompilerParams(
            dimension_semantics=("parallel",),
        ),
    )(x2d, gamma.reshape(C, 1), beta.reshape(C, 1))

    # (C, N*H*W) -> NCHW (again a pure reshape for N == 1).
    if N == 1:
        return out2d.reshape(1, C, H, W)
    return jnp.transpose(out2d.reshape(C, N, H, W), (1, 0, 2, 3))


if __name__ == "__main__":
    key = jax.random.PRNGKey(0)
    kx, kg, kb = jax.random.split(key, 3)

    # Shapes implied by the module: BatchNorm2d(1152), input [1, 1152, 7, 7]
    N, C, H, W = 1, 1152, 7, 7
    x = jax.random.normal(kx, (N, C, H, W), dtype=jnp.float32)
    # Deterministic affine parameters (PyTorch default would be ones/zeros;
    # use small random perturbations, deterministically seeded).
    gamma = 1.0 + 0.1 * jax.random.normal(kg, (C,), dtype=jnp.float32)
    beta = 0.1 * jax.random.normal(kb, (C,), dtype=jnp.float32)

    out = jax.block_until_ready(batchnorm_relu(x, gamma, beta))

    # Pure-JAX reference: training-mode BN (biased batch variance) + ReLU.
    xt = x.reshape(C, H * W)
    mean = jnp.mean(xt, axis=1, keepdims=True)
    var = jnp.mean((xt - mean) ** 2, axis=1, keepdims=True)
    ref2d = (xt - mean) * lax.rsqrt(var + EPS) * gamma[:, None] + beta[:, None]
    ref = jnp.maximum(ref2d, 0.0).reshape(N, C, H, W)

    assert out.shape == (N, C, H, W)
    assert jnp.max(jnp.abs(out - ref)) < 1e-4

    print("KERNEL_OK")
</pallas_src>

<mosaic_0001>
module attributes {stable_mosaic.version = 11 : i64} {
  func.func @bn_relu_kernel(%arg0: i32, %arg1: memref<1152x49xf32, #tpu.memory_space<vmem>>, %arg2: memref<1152x1xf32, #tpu.memory_space<vmem>>, %arg3: memref<1152x1xf32, #tpu.memory_space<vmem>>, %arg4: memref<1152x49xf32, #tpu.memory_space<vmem>>) attributes {dimension_semantics = [#tpu.dimension_semantics<parallel>], iteration_bounds = array<i64: 1>, scalar_prefetch = 0 : i64, scratch_operands = 0 : i64, tpu.core_type = #tpu.core_type<tc>, window_params = [{transform_indices = @transform_0, window_bounds = array<i64: 1152, 49>}, {transform_indices = @transform_1, window_bounds = array<i64: 1152, 1>}, {transform_indices = @transform_2, window_bounds = array<i64: 1152, 1>}, {transform_indices = @transform_3, window_bounds = array<i64: 1152, 49>}]} {
    %c0 = arith.constant 0 : index
    %c0_0 = arith.constant 0 : index
    %0 = vector.load %arg1[%c0, %c0_0] : memref<1152x49xf32, #tpu.memory_space<vmem>>, vector<1152x49xf32>
    %cst = arith.constant dense<0.000000e+00> : vector<1152xf32>
    %1 = vector.multi_reduction <add>, %0, %cst [1] : vector<1152x49xf32> to vector<1152xf32>
    %2 = vector.shape_cast %1 : vector<1152xf32> to vector<1152x1xf32>
    %3 = arith.mulf %0, %0 : vector<1152x49xf32>
    %cst_1 = arith.constant dense<0.000000e+00> : vector<1152xf32>
    %4 = vector.multi_reduction <add>, %3, %cst_1 [1] : vector<1152x49xf32> to vector<1152xf32>
    %5 = vector.shape_cast %4 : vector<1152xf32> to vector<1152x1xf32>
    %cst_2 = arith.constant 0.0204081628 : f32
    %6 = vector.broadcast %cst_2 : f32 to vector<1152x1xf32>
    %7 = arith.mulf %2, %6 : vector<1152x1xf32>
    %cst_3 = arith.constant 0.0204081628 : f32
    %8 = vector.broadcast %cst_3 : f32 to vector<1152x1xf32>
    %9 = arith.mulf %5, %8 : vector<1152x1xf32>
    %10 = arith.mulf %7, %7 : vector<1152x1xf32>
    %11 = arith.subf %9, %10 : vector<1152x1xf32>
    %cst_4 = arith.constant 0.000000e+00 : f32
    %12 = vector.broadcast %cst_4 : f32 to vector<1152x1xf32>
    %13 = arith.maximumf %11, %12 : vector<1152x1xf32>
    %cst_5 = arith.constant 9.99999974E-6 : f32
    %14 = vector.broadcast %cst_5 : f32 to vector<1152x1xf32>
    %15 = arith.addf %13, %14 : vector<1152x1xf32>
    %16 = math.rsqrt %15 : vector<1152x1xf32>
    %c0_6 = arith.constant 0 : index
    %c0_7 = arith.constant 0 : index
    %17 = vector.load %arg2[%c0_6, %c0_7] : memref<1152x1xf32, #tpu.memory_space<vmem>>, vector<1152x1xf32>
    %c0_8 = arith.constant 0 : index
    %c0_9 = arith.constant 0 : index
    %18 = vector.load %arg3[%c0_8, %c0_9] : memref<1152x1xf32, #tpu.memory_space<vmem>>, vector<1152x1xf32>
    %19 = arith.mulf %17, %16 : vector<1152x1xf32>
    %20 = arith.mulf %7, %19 : vector<1152x1xf32>
    %21 = arith.subf %18, %20 : vector<1152x1xf32>
    %c0_10 = arith.constant 0 : index
    %c0_11 = arith.constant 0 : index
    %22 = vector.load %arg1[%c0_10, %c0_11] : memref<1152x49xf32, #tpu.memory_space<vmem>>, vector<1152x49xf32>
    %23 = vector.broadcast %19 : vector<1152x1xf32> to vector<1152x49xf32>
    %24 = arith.mulf %22, %23 : vector<1152x49xf32>
    %25 = vector.broadcast %21 : vector<1152x1xf32> to vector<1152x49xf32>
    %26 = arith.addf %24, %25 : vector<1152x49xf32>
    %cst_12 = arith.constant 0.000000e+00 : f32
    %27 = vector.broadcast %cst_12 : f32 to vector<1152x49xf32>
    %28 = arith.maximumf %26, %27 : vector<1152x49xf32>
    %c0_13 = arith.constant 0 : index
    %c0_14 = arith.constant 0 : index
    %29 = vector.load %arg4[%c0_13, %c0_14] : memref<1152x49xf32, #tpu.memory_space<vmem>>, vector<1152x49xf32>
    tpu.vector_store %arg4[%c0_13, %c0_14], %28 {strides = array<i32>} : memref<1152x49xf32, #tpu.memory_space<vmem>>, vector<1152x49xf32>,
    return
  }
  func.func @transform_0(%arg0: i32) -> (i32, i32) {
    %c0_i32 = arith.constant 0 : i32
    %c0_i32_0 = arith.constant 0 : i32
    return %arg0, %c0_i32 : i32, i32
  }
  func.func @transform_1(%arg0: i32) -> (i32, i32) {
    %c0_i32 = arith.constant 0 : i32
    %c0_i32_0 = arith.constant 0 : i32
    return %arg0, %c0_i32 : i32, i32
  }
  func.func @transform_2(%arg0: i32) -> (i32, i32) {
    %c0_i32 = arith.constant 0 : i32
    %c0_i32_0 = arith.constant 0 : i32
    return %arg0, %c0_i32 : i32, i32
  }
  func.func @transform_3(%arg0: i32) -> (i32, i32) {
    %c0_i32 = arith.constant 0 : i32
    %c0_i32_0 = arith.constant 0 : i32
    return %arg0, %c0_i32 : i32, i32
  }
}

</mosaic_0001>

<llo_original>
// kernel: batchnorm_relu.1
$region0: #{batchnorm_relu.1}
  #allocation0 [shape = 'u32[]', space=smem, size = 0x4, offset = 0x4, fixed_abs, tag = 'smem constant byte address 0x4 - core index']
  #allocation1 [shape = 'u32[72,128]{1,0:T(1,128)}', space=vmem, size = 0x9000, scoped, tag = 'internal scratch']
  %s0 = inlined_call_operand.vmem [shape: f32[1152,49], index: 0, kind: input, shape index: {}]
  %s1 = inlined_call_operand.vmem [shape: f32[1152,1], index: 1, kind: input, shape index: {}]
  %s2 = inlined_call_operand.vmem [shape: f32[1152,1], index: 2, kind: input, shape index: {}]
  %s3 = inlined_call_operand.vmem [shape: f32[1152,49], index: 3, kind: output, shape index: {}]
  %s4 = sld [smem:[#allocation0]]
  $region22: #{batchnorm_relu.1} parent=0
    _
  %s6 = ssub.s32 1, %s4
  %s7 = scalar_select 0, %s6, %s4
  // Predicated region
  $region2: #{batchnorm_relu.1} parent=0 // pred_check
    _
  $region3: #{batchnorm_relu.1} parent=0 // pred_check_branch
    %9 = sbr.rel (0) target = $region5
  $region4: #{batchnorm_relu.1} parent=0 // pred_region
    _
  $region5: #{batchnorm_relu.1} parent=0 // pred_fallthru
    _
  // Predicated region
  $region6: #{batchnorm_relu.1} parent=0 // pred_check
    _
  $region7: #{batchnorm_relu.1} parent=0 // pred_check_branch
    %11 = sbr.rel (0) target = $region9
  $region8: #{batchnorm_relu.1} parent=0 // pred_region
    _
  $region9: #{batchnorm_relu.1} parent=0 // pred_fallthru
    _
  // Predicated region
  $region10: #{batchnorm_relu.1} parent=0 // pred_check
    _
  $region11: #{batchnorm_relu.1} parent=0 // pred_check_branch
    %13 = sbr.rel (0) target = $region13
  $region12: #{batchnorm_relu.1} parent=0 // pred_region
    _
  $region13: #{batchnorm_relu.1} parent=0 // pred_fallthru
    _
  %v14 = vld [vmem:[%s0] sm:$0xff]
  %v15 = vld [vmem:[%s0 + $0x8] sm:$0xff]
  %v16 = vld [vmem:[%s0 + $0x10] sm:$0xff]
  %v17 = vld [vmem:[%s0 + $0x18] sm:$0xff]
  %v18 = vld [vmem:[%s0 + $0x20] sm:$0xff]
  %v19 = vld [vmem:[%s0 + $0x28] sm:$0xff]
  %v20 = vld [vmem:[%s0 + $0x30] sm:$0xff]
  %v21 = vld [vmem:[%s0 + $0x38] sm:$0xff]
  %v22 = vld [vmem:[%s0 + $0x40] sm:$0xff]
  %v23 = vld [vmem:[%s0 + $0x48] sm:$0xff]
  %v24 = vld [vmem:[%s0 + $0x50] sm:$0xff]
  %v25 = vld [vmem:[%s0 + $0x58] sm:$0xff]
  %v26 = vld [vmem:[%s0 + $0x60] sm:$0xff]
  %v27 = vld [vmem:[%s0 + $0x68] sm:$0xff]
  %v28 = vld [vmem:[%s0 + $0x70] sm:$0xff]
  %v29 = vld [vmem:[%s0 + $0x78] sm:$0xff]
  %v30 = vld [vmem:[%s0 + $0x80] sm:$0xff]
  %v31 = vld [vmem:[%s0 + $0x88] sm:$0xff]
  %v32 = vld [vmem:[%s0 + $0x90] sm:$0xff]
  %v33 = vld [vmem:[%s0 + $0x98] sm:$0xff]
  %v34 = vld [vmem:[%s0 + $0xa0] sm:$0xff]
  %v35 = vld [vmem:[%s0 + $0xa8] sm:$0xff]
  %v36 = vld [vmem:[%s0 + $0xb0] sm:$0xff]
  %v37 = vld [vmem:[%s0 + $0xb8] sm:$0xff]
  %v38 = vld [vmem:[%s0 + $0xc0] sm:$0xff]
  %v39 = vld [vmem:[%s0 + $0xc8] sm:$0xff]
  %v40 = vld [vmem:[%s0 + $0xd0] sm:$0xff]
  %v41 = vld [vmem:[%s0 + $0xd8] sm:$0xff]
  %v42 = vld [vmem:[%s0 + $0xe0] sm:$0xff]
  %v43 = vld [vmem:[%s0 + $0xe8] sm:$0xff]
  %v44 = vld [vmem:[%s0 + $0xf0] sm:$0xff]
  %v45 = vld [vmem:[%s0 + $0xf8] sm:$0xff]
  %v46 = vld [vmem:[%s0 + $0x100] sm:$0xff]
  %v47 = vld [vmem:[%s0 + $0x108] sm:$0xff]
  %v48 = vld [vmem:[%s0 + $0x110] sm:$0xff]
  %v49 = vld [vmem:[%s0 + $0x118] sm:$0xff]
  %v50 = vld [vmem:[%s0 + $0x120] sm:$0xff]
  %v51 = vld [vmem:[%s0 + $0x128] sm:$0xff]
  %v52 = vld [vmem:[%s0 + $0x130] sm:$0xff]
  %v53 = vld [vmem:[%s0 + $0x138] sm:$0xff]
  %v54 = vld [vmem:[%s0 + $0x140] sm:$0xff]
  %v55 = vld [vmem:[%s0 + $0x148] sm:$0xff]
  %v56 = vld [vmem:[%s0 + $0x150] sm:$0xff]
  %v57 = vld [vmem:[%s0 + $0x158] sm:$0xff]
  %v58 = vld [vmem:[%s0 + $0x160] sm:$0xff]
  %v59 = vld [vmem:[%s0 + $0x168] sm:$0xff]
  %v60 = vld [vmem:[%s0 + $0x170] sm:$0xff]
  %v61 = vld [vmem:[%s0 + $0x178] sm:$0xff]
  %v62 = vld [vmem:[%s0 + $0x180] sm:$0xff]
  %v63 = vld [vmem:[%s0 + $0x188] sm:$0xff]
  %v64 = vld [vmem:[%s0 + $0x190] sm:$0xff]
  %v65 = vld [vmem:[%s0 + $0x198] sm:$0xff]
  %v66 = vld [vmem:[%s0 + $0x1a0] sm:$0xff]
  %v67 = vld [vmem:[%s0 + $0x1a8] sm:$0xff]
  %v68 = vld [vmem:[%s0 + $0x1b0] sm:$0xff]
  %v69 = vld [vmem:[%s0 + $0x1b8] sm:$0xff]
  %v70 = vld [vmem:[%s0 + $0x1c0] sm:$0xff]
  %v71 = vld [vmem:[%s0 + $0x1c8] sm:$0xff]
  %v72 = vld [vmem:[%s0 + $0x1d0] sm:$0xff]
  %v73 = vld [vmem:[%s0 + $0x1d8] sm:$0xff]
  %v74 = vld [vmem:[%s0 + $0x1e0] sm:$0xff]
  %v75 = vld [vmem:[%s0 + $0x1e8] sm:$0xff]
  %v76 = vld [vmem:[%s0 + $0x1f0] sm:$0xff]
  %v77 = vld [vmem:[%s0 + $0x1f8] sm:$0xff]
  %v78 = vld [vmem:[%s0 + $0x200] sm:$0xff]
  %v79 = vld [vmem:[%s0 + $0x208] sm:$0xff]
  %v80 = vld [vmem:[%s0 + $0x210] sm:$0xff]
  %v81 = vld [vmem:[%s0 + $0x218] sm:$0xff]
  %v82 = vld [vmem:[%s0 + $0x220] sm:$0xff]
  %v83 = vld [vmem:[%s0 + $0x228] sm:$0xff]
  %v84 = vld [vmem:[%s0 + $0x230] sm:$0xff]
  %v85 = vld [vmem:[%s0 + $0x238] sm:$0xff]
  %v86 = vld [vmem:[%s0 + $0x240] sm:$0xff]
  %v87 = vld [vmem:[%s0 + $0x248] sm:$0xff]
  %v88 = vld [vmem:[%s0 + $0x250] sm:$0xff]
  %v89 = vld [vmem:[%s0 + $0x258] sm:$0xff]
  %v90 = vld [vmem:[%s0 + $0x260] sm:$0xff]
  %v91 = vld [vmem:[%s0 + $0x268] sm:$0xff]
  %v92 = vld [vmem:[%s0 + $0x270] sm:$0xff]
  %v93 = vld [vmem:[%s0 + $0x278] sm:$0xff]
  %v94 = vld [vmem:[%s0 + $0x280] sm:$0xff]
  %v95 = vld [vmem:[%s0 + $0x288] sm:$0xff]
  %v96 = vld [vmem:[%s0 + $0x290] sm:$0xff]
  %v97 = vld [vmem:[%s0 + $0x298] sm:$0xff]
  %v98 = vld [vmem:[%s0 + $0x2a0] sm:$0xff]
  %v99 = vld [vmem:[%s0 + $0x2a8] sm:$0xff]
  %v100 = vld [vmem:[%s0 + $0x2b0] sm:$0xff]
  %v101 = vld [vmem:[%s0 + $0x2b8] sm:$0xff]
  %v102 = vld [vmem:[%s0 + $0x2c0] sm:$0xff]
  %v103 = vld [vmem:[%s0 + $0x2c8] sm:$0xff]
  %v104 = vld [vmem:[%s0 + $0x2d0] sm:$0xff]
  %v105 = vld [vmem:[%s0 + $0x2d8] sm:$0xff]
  %v106 = vld [vmem:[%s0 + $0x2e0] sm:$0xff]
  %v107 = vld [vmem:[%s0 + $0x2e8] sm:$0xff]
  %v108 = vld [vmem:[%s0 + $0x2f0] sm:$0xff]
  %v109 = vld [vmem:[%s0 + $0x2f8] sm:$0xff]
  %v110 = vld [vmem:[%s0 + $0x300] sm:$0xff]
  %v111 = vld [vmem:[%s0 + $0x308] sm:$0xff]
  %v112 = vld [vmem:[%s0 + $0x310] sm:$0xff]
  %v113 = vld [vmem:[%s0 + $0x318] sm:$0xff]
  %v114 = vld [vmem:[%s0 + $0x320] sm:$0xff]
  %v115 = vld [vmem:[%s0 + $0x328] sm:$0xff]
  %v116 = vld [vmem:[%s0 + $0x330] sm:$0xff]
  %v117 = vld [vmem:[%s0 + $0x338] sm:$0xff]
  %v118 = vld [vmem:[%s0 + $0x340] sm:$0xff]
  %v119 = vld [vmem:[%s0 + $0x348] sm:$0xff]
  %v120 = vld [vmem:[%s0 + $0x350] sm:$0xff]
  %v121 = vld [vmem:[%s0 + $0x358] sm:$0xff]
  %v122 = vld [vmem:[%s0 + $0x360] sm:$0xff]
  %v123 = vld [vmem:[%s0 + $0x368] sm:$0xff]
  %v124 = vld [vmem:[%s0 + $0x370] sm:$0xff]
  %v125 = vld [vmem:[%s0 + $0x378] sm:$0xff]
  %v126 = vld [vmem:[%s0 + $0x380] sm:$0xff]
  %v127 = vld [vmem:[%s0 + $0x388] sm:$0xff]
  %v128 = vld [vmem:[%s0 + $0x390] sm:$0xff]
  %v129 = vld [vmem:[%s0 + $0x398] sm:$0xff]
  %v130 = vld [vmem:[%s0 + $0x3a0] sm:$0xff]
  %v131 = vld [vmem:[%s0 + $0x3a8] sm:$0xff]
  %v132 = vld [vmem:[%s0 + $0x3b0] sm:$0xff]
  %v133 = vld [vmem:[%s0 + $0x3b8] sm:$0xff]
  %v134 = vld [vmem:[%s0 + $0x3c0] sm:$0xff]
  %v135 = vld [vmem:[%s0 + $0x3c8] sm:$0xff]
  %v136 = vld [vmem:[%s0 + $0x3d0] sm:$0xff]
  %v137 = vld [vmem:[%s0 + $0x3d8] sm:$0xff]
  %v138 = vld [vmem:[%s0 + $0x3e0] sm:$0xff]
  %v139 = vld [vmem:[%s0 + $0x3e8] sm:$0xff]
  %v140 = vld [vmem:[%s0 + $0x3f0] sm:$0xff]
  %v141 = vld [vmem:[%s0 + $0x3f8] sm:$0xff]
  %v142 = vld [vmem:[%s0 + $0x400] sm:$0xff]
  %v143 = vld [vmem:[%s0 + $0x408] sm:$0xff]
  %v144 = vld [vmem:[%s0 + $0x410] sm:$0xff]
  %v145 = vld [vmem:[%s0 + $0x418] sm:$0xff]
  %v146 = vld [vmem:[%s0 + $0x420] sm:$0xff]
  %v147 = vld [vmem:[%s0 + $0x428] sm:$0xff]
  %v148 = vld [vmem:[%s0 + $0x430] sm:$0xff]
  %v149 = vld [vmem:[%s0 + $0x438] sm:$0xff]
  %v150 = vld [vmem:[%s0 + $0x440] sm:$0xff]
  %v151 = vld [vmem:[%s0 + $0x448] sm:$0xff]
  %v152 = vld [vmem:[%s0 + $0x450] sm:$0xff]
  %v153 = vld [vmem:[%s0 + $0x458] sm:$0xff]
  %v154 = vld [vmem:[%s0 + $0x460] sm:$0xff]
  %v155 = vld [vmem:[%s0 + $0x468] sm:$0xff]
  %v156 = vld [vmem:[%s0 + $0x470] sm:$0xff]
  %v157 = vld [vmem:[%s0 + $0x478] sm:$0xff]
  %vm158 = vcmask 400384
  %v159 = vsel %vm158, %v14, 0.0
  %160 = vadd.xlane.f32.xlu0 %v159
  %v161 = vpop.xlane.xlu0 %160
  %v162 = vsel %vm158, %v15, 0.0
  %163 = vadd.xlane.f32.xlu0 %v162
  %v164 = vpop.xlane.xlu0 %163
  %v165 = vsel %vm158, %v16, 0.0
  %166 = vadd.xlane.f32.xlu0 %v165
  %v167 = vpop.xlane.xlu0 %166
  %v168 = vsel %vm158, %v17, 0.0
  %169 = vadd.xlane.f32.xlu0 %v168
  %v170 = vpop.xlane.xlu0 %169
  %v171 = vsel %vm158, %v18, 0.0
  %172 = vadd.xlane.f32.xlu0 %v171
  %v173 = vpop.xlane.xlu0 %172
  %v174 = vsel %vm158, %v19, 0.0
  %175 = vadd.xlane.f32.xlu0 %v174
  %v176 = vpop.xlane.xlu0 %175
  %v177 = vsel %vm158, %v20, 0.0
  %178 = vadd.xlane.f32.xlu0 %v177
  %v179 = vpop.xlane.xlu0 %178
  %v180 = vsel %vm158, %v21, 0.0
  %181 = vadd.xlane.f32.xlu0 %v180
  %v182 = vpop.xlane.xlu0 %181
  %v183 = vsel %vm158, %v22, 0.0
  %184 = vadd.xlane.f32.xlu0 %v183
  %v185 = vpop.xlane.xlu0 %184
  %v186 = vsel %vm158, %v23, 0.0
  %187 = vadd.xlane.f32.xlu0 %v186
  %v188 = vpop.xlane.xlu0 %187
  %v189 = vsel %vm158, %v24, 0.0
  %190 = vadd.xlane.f32.xlu0 %v189
  %v191 = vpop.xlane.xlu0 %190
  %v192 = vsel %vm158, %v25, 0.0
  %193 = vadd.xlane.f32.xlu0 %v192
  %v194 = vpop.xlane.xlu0 %193
  %v195 = vsel %vm158, %v26, 0.0
  %196 = vadd.xlane.f32.xlu0 %v195
  %v197 = vpop.xlane.xlu0 %196
  %v198 = vsel %vm158, %v27, 0.0
  %199 = vadd.xlane.f32.xlu0 %v198
  %v200 = vpop.xlane.xlu0 %199
  %v201 = vsel %vm158, %v28, 0.0
  %202 = vadd.xlane.f32.xlu0 %v201
  %v203 = vpop.xlane.xlu0 %202
  %v204 = vsel %vm158, %v29, 0.0
  %205 = vadd.xlane.f32.xlu0 %v204
  %v206 = vpop.xlane.xlu0 %205
  %v207 = vsel %vm158, %v30, 0.0
  %208 = vadd.xlane.f32.xlu0 %v207
  %v209 = vpop.xlane.xlu0 %208
  %v210 = vsel %vm158, %v31, 0.0
  %211 = vadd.xlane.f32.xlu0 %v210
  %v212 = vpop.xlane.xlu0 %211
  %v213 = vsel %vm158, %v32, 0.0
  %214 = vadd.xlane.f32.xlu0 %v213
  %v215 = vpop.xlane.xlu0 %214
  %v216 = vsel %vm158, %v33, 0.0
  %217 = vadd.xlane.f32.xlu0 %v216
  %v218 = vpop.xlane.xlu0 %217
  %v219 = vsel %vm158, %v34, 0.0
  %220 = vadd.xlane.f32.xlu0 %v219
  %v221 = vpop.xlane.xlu0 %220
  %v222 = vsel %vm158, %v35, 0.0
  %223 = vadd.xlane.f32.xlu0 %v222
  %v224 = vpop.xlane.xlu0 %223
  %v225 = vsel %vm158, %v36, 0.0
  %226 = vadd.xlane.f32.xlu0 %v225
  %v227 = vpop.xlane.xlu0 %226
  %v228 = vsel %vm158, %v37, 0.0
  %229 = vadd.xlane.f32.xlu0 %v228
  %v230 = vpop.xlane.xlu0 %229
  %v231 = vsel %vm158, %v38, 0.0
  %232 = vadd.xlane.f32.xlu0 %v231
  %v233 = vpop.xlane.xlu0 %232
  %v234 = vsel %vm158, %v39, 0.0
  %235 = vadd.xlane.f32.xlu0 %v234
  %v236 = vpop.xlane.xlu0 %235
  %v237 = vsel %vm158, %v40, 0.0
  %238 = vadd.xlane.f32.xlu0 %v237
  %v239 = vpop.xlane.xlu0 %238
  %v240 = vsel %vm158, %v41, 0.0
  %241 = vadd.xlane.f32.xlu0 %v240
  %v242 = vpop.xlane.xlu0 %241
  %v243 = vsel %vm158, %v42, 0.0
  %244 = vadd.xlane.f32.xlu0 %v243
  %v245 = vpop.xlane.xlu0 %244
  %v246 = vsel %vm158, %v43, 0.0
  %247 = vadd.xlane.f32.xlu0 %v246
  %v248 = vpop.xlane.xlu0 %247
  %v249 = vsel %vm158, %v44, 0.0
  %250 = vadd.xlane.f32.xlu0 %v249
  %v251 = vpop.xlane.xlu0 %250
  %v252 = vsel %vm158, %v45, 0.0
  %253 = vadd.xlane.f32.xlu0 %v252
  %v254 = vpop.xlane.xlu0 %253
  %v255 = vsel %vm158, %v46, 0.0
  %256 = vadd.xlane.f32.xlu0 %v255
  %v257 = vpop.xlane.xlu0 %256
  %v258 = vsel %vm158, %v47, 0.0
  %259 = vadd.xlane.f32.xlu0 %v258
  %v260 = vpop.xlane.xlu0 %259
  %v261 = vsel %vm158, %v48, 0.0
  %262 = vadd.xlane.f32.xlu0 %v261
  %v263 = vpop.xlane.xlu0 %262
  %v264 = vsel %vm158, %v49, 0.0
  %265 = vadd.xlane.f32.xlu0 %v264
  %v266 = vpop.xlane.xlu0 %265
  %v267 = vsel %vm158, %v50, 0.0
  %268 = vadd.xlane.f32.xlu0 %v267
  %v269 = vpop.xlane.xlu0 %268
  %v270 = vsel %vm158, %v51, 0.0
  %271 = vadd.xlane.f32.xlu0 %v270
  %v272 = vpop.xlane.xlu0 %271
  %v273 = vsel %vm158, %v52, 0.0
  %274 = vadd.xlane.f32.xlu0 %v273
  %v275 = vpop.xlane.xlu0 %274
  %v276 = vsel %vm158, %v53, 0.0
  %277 = vadd.xlane.f32.xlu0 %v276
  %v278 = vpop.xlane.xlu0 %277
  %v279 = vsel %vm158, %v54, 0.0
  %280 = vadd.xlane.f32.xlu0 %v279
  %v281 = vpop.xlane.xlu0 %280
  %v282 = vsel %vm158, %v55, 0.0
  %283 = vadd.xlane.f32.xlu0 %v282
  %v284 = vpop.xlane.xlu0 %283
  %v285 = vsel %vm158, %v56, 0.0
  %286 = vadd.xlane.f32.xlu0 %v285
  %v287 = vpop.xlane.xlu0 %286
  %v288 = vsel %vm158, %v57, 0.0
  %289 = vadd.xlane.f32.xlu0 %v288
  %v290 = vpop.xlane.xlu0 %289
  %v291 = vsel %vm158, %v58, 0.0
  %292 = vadd.xlane.f32.xlu0 %v291
  %v293 = vpop.xlane.xlu0 %292
  %v294 = vsel %vm158, %v59, 0.0
  %295 = vadd.xlane.f32.xlu0 %v294
  %v296 = vpop.xlane.xlu0 %295
  %v297 = vsel %vm158, %v60, 0.0
  %298 = vadd.xlane.f32.xlu0 %v297
  %v299 = vpop.xlane.xlu0 %298
  %v300 = vsel %vm158, %v61, 0.0
  %301 = vadd.xlane.f32.xlu0 %v300
  %v302 = vpop.xlane.xlu0 %301
  %v303 = vsel %vm158, %v62, 0.0
  %304 = vadd.xlane.f32.xlu0 %v303
  %v305 = vpop.xlane.xlu0 %304
  %v306 = vsel %vm158, %v63, 0.0
  %307 = vadd.xlane.f32.xlu0 %v306
  %v308 = vpop.xlane.xlu0 %307
  %v309 = vsel %vm158, %v64, 0.0
  %310 = vadd.xlane.f32.xlu0 %v309
  %v311 = vpop.xlane.xlu0 %310
  %v312 = vsel %vm158, %v65, 0.0
  %313 = vadd.xlane.f32.xlu0 %v312
  %v314 = vpop.xlane.xlu0 %313
  %v315 = vsel %vm158, %v66, 0.0
  %316 = vadd.xlane.f32.xlu0 %v315
  %v317 = vpop.xlane.xlu0 %316
  %v318 = vsel %vm158, %v67, 0.0
  %319 = vadd.xlane.f32.xlu0 %v318
  %v320 = vpop.xlane.xlu0 %319
  %v321 = vsel %vm158, %v68, 0.0
  %322 = vadd.xlane.f32.xlu0 %v321
  %v323 = vpop.xlane.xlu0 %322
  %v324 = vsel %vm158, %v69, 0.0
  %325 = vadd.xlane.f32.xlu0 %v324
  %v326 = vpop.xlane.xlu0 %325
  %v327 = vsel %vm158, %v70, 0.0
  %328 = vadd.xlane.f32.xlu0 %v327
  %v329 = vpop.xlane.xlu0 %328
  %v330 = vsel %vm158, %v71, 0.0
  %331 = vadd.xlane.f32.xlu0 %v330
  %v332 = vpop.xlane.xlu0 %331
  %v333 = vsel %vm158, %v72, 0.0
  %334 = vadd.xlane.f32.xlu0 %v333
  %v335 = vpop.xlane.xlu0 %334
  %v336 = vsel %vm158, %v73, 0.0
  %337 = vadd.xlane.f32.xlu0 %v336
  %v338 = vpop.xlane.xlu0 %337
  %v339 = vsel %vm158, %v74, 0.0
  %340 = vadd.xlane.f32.xlu0 %v339
  %v341 = vpop.xlane.xlu0 %340
  %v342 = vsel %vm158, %v75, 0.0
  %343 = vadd.xlane.f32.xlu0 %v342
  %v344 = vpop.xlane.xlu0 %343
  %v345 = vsel %vm158, %v76, 0.0
  %346 = vadd.xlane.f32.xlu0 %v345
  %v347 = vpop.xlane.xlu0 %346
  %v348 = vsel %vm158, %v77, 0.0
  %349 = vadd.xlane.f32.xlu0 %v348
  %v350 = vpop.xlane.xlu0 %349
  %v351 = vsel %vm158, %v78, 0.0
  %352 = vadd.xlane.f32.xlu0 %v351
  %v353 = vpop.xlane.xlu0 %352
  %v354 = vsel %vm158, %v79, 0.0
  %355 = vadd.xlane.f32.xlu0 %v354
  %v356 = vpop.xlane.xlu0 %355
  %v357 = vsel %vm158, %v80, 0.0
  %358 = vadd.xlane.f32.xlu0 %v357
  %v359 = vpop.xlane.xlu0 %358
  %v360 = vsel %vm158, %v81, 0.0
  %361 = vadd.xlane.f32.xlu0 %v360
  %v362 = vpop.xlane.xlu0 %361
  %v363 = vsel %vm158, %v82, 0.0
  %364 = vadd.xlane.f32.xlu0 %v363
  %v365 = vpop.xlane.xlu0 %364
  %v366 = vsel %vm158, %v83, 0.0
  %367 = vadd.xlane.f32.xlu0 %v366
  %v368 = vpop.xlane.xlu0 %367
  %v369 = vsel %vm158, %v84, 0.0
  %370 = vadd.xlane.f32.xlu0 %v369
  %v371 = vpop.xlane.xlu0 %370
  %v372 = vsel %vm158, %v85, 0.0
  %373 = vadd.xlane.f32.xlu0 %v372
  %v374 = vpop.xlane.xlu0 %373
  %v375 = vsel %vm158, %v86, 0.0
  %376 = vadd.xlane.f32.xlu0 %v375
  %v377 = vpop.xlane.xlu0 %376
  %v378 = vsel %vm158, %v87, 0.0
  %379 = vadd.xlane.f32.xlu0 %v378
  %v380 = vpop.xlane.xlu0 %379
  %v381 = vsel %vm158, %v88, 0.0
  %382 = vadd.xlane.f32.xlu0 %v381
  %v383 = vpop.xlane.xlu0 %382
  %v384 = vsel %vm158, %v89, 0.0
  %385 = vadd.xlane.f32.xlu0 %v384
  %v386 = vpop.xlane.xlu0 %385
  %v387 = vsel %vm158, %v90, 0.0
  %388 = vadd.xlane.f32.xlu0 %v387
  %v389 = vpop.xlane.xlu0 %388
  %v390 = vsel %vm158, %v91, 0.0
  %391 = vadd.xlane.f32.xlu0 %v390
  %v392 = vpop.xlane.xlu0 %391
  %v393 = vsel %vm158, %v92, 0.0
  %394 = vadd.xlane.f32.xlu0 %v393
  %v395 = vpop.xlane.xlu0 %394
  %v396 = vsel %vm158, %v93, 0.0
  %397 = vadd.xlane.f32.xlu0 %v396
  %v398 = vpop.xlane.xlu0 %397
  %v399 = vsel %vm158, %v94, 0.0
  %400 = vadd.xlane.f32.xlu0 %v399
  %v401 = vpop.xlane.xlu0 %400
  %v402 = vsel %vm158, %v95, 0.0
  %403 = vadd.xlane.f32.xlu0 %v402
  %v404 = vpop.xlane.xlu0 %403
  %v405 = vsel %vm158, %v96, 0.0
  %406 = vadd.xlane.f32.xlu0 %v405
  %v407 = vpop.xlane.xlu0 %406
  %v408 = vsel %vm158, %v97, 0.0
  %409 = vadd.xlane.f32.xlu0 %v408
  %v410 = vpop.xlane.xlu0 %409
  %v411 = vsel %vm158, %v98, 0.0
  %412 = vadd.xlane.f32.xlu0 %v411
  %v413 = vpop.xlane.xlu0 %412
  %v414 = vsel %vm158, %v99, 0.0
  %415 = vadd.xlane.f32.xlu0 %v414
  %v416 = vpop.xlane.xlu0 %415
  %v417 = vsel %vm158, %v100, 0.0
  %418 = vadd.xlane.f32.xlu0 %v417
  %v419 = vpop.xlane.xlu0 %418
  %v420 = vsel %vm158, %v101, 0.0
  %421 = vadd.xlane.f32.xlu0 %v420
  %v422 = vpop.xlane.xlu0 %421
  %v423 = vsel %vm158, %v102, 0.0
  %424 = vadd.xlane.f32.xlu0 %v423
  %v425 = vpop.xlane.xlu0 %424
  %v426 = vsel %vm158, %v103, 0.0
  %427 = vadd.xlane.f32.xlu0 %v426
  %v428 = vpop.xlane.xlu0 %427
  %v429 = vsel %vm158, %v104, 0.0
  %430 = vadd.xlane.f32.xlu0 %v429
  %v431 = vpop.xlane.xlu0 %430
  %v432 = vsel %vm158, %v105, 0.0
  %433 = vadd.xlane.f32.xlu0 %v432
  %v434 = vpop.xlane.xlu0 %433
  %v435 = vsel %vm158, %v106, 0.0
  %436 = vadd.xlane.f32.xlu0 %v435
  %v437 = vpop.xlane.xlu0 %436
  %v438 = vsel %vm158, %v107, 0.0
  %439 = vadd.xlane.f32.xlu0 %v438
  %v440 = vpop.xlane.xlu0 %439
  %v441 = vsel %vm158, %v108, 0.0
  %442 = vadd.xlane.f32.xlu0 %v441
  %v443 = vpop.xlane.xlu0 %442
  %v444 = vsel %vm158, %v109, 0.0
  %445 = vadd.xlane.f32.xlu0 %v444
  %v446 = vpop.xlane.xlu0 %445
  %v447 = vsel %vm158, %v110, 0.0
  %448 = vadd.xlane.f32.xlu0 %v447
  %v449 = vpop.xlane.xlu0 %448
  %v450 = vsel %vm158, %v111, 0.0
  %451 = vadd.xlane.f32.xlu0 %v450
  %v452 = vpop.xlane.xlu0 %451
  %v453 = vsel %vm158, %v112, 0.0
  %454 = vadd.xlane.f32.xlu0 %v453
  %v455 = vpop.xlane.xlu0 %454
  %v456 = vsel %vm158, %v113, 0.0
  %457 = vadd.xlane.f32.xlu0 %v456
  %v458 = vpop.xlane.xlu0 %457
  %v459 = vsel %vm158, %v114, 0.0
  %460 = vadd.xlane.f32.xlu0 %v459
  %v461 = vpop.xlane.xlu0 %460
  %v462 = vsel %vm158, %v115, 0.0
  %463 = vadd.xlane.f32.xlu0 %v462
  %v464 = vpop.xlane.xlu0 %463
  %v465 = vsel %vm158, %v116, 0.0
  %466 = vadd.xlane.f32.xlu0 %v465
  %v467 = vpop.xlane.xlu0 %466
  %v468 = vsel %vm158, %v117, 0.0
  %469 = vadd.xlane.f32.xlu0 %v468
  %v470 = vpop.xlane.xlu0 %469
  %v471 = vsel %vm158, %v118, 0.0
  %472 = vadd.xlane.f32.xlu0 %v471
  %v473 = vpop.xlane.xlu0 %472
  %v474 = vsel %vm158, %v119, 0.0
  %475 = vadd.xlane.f32.xlu0 %v474
  %v476 = vpop.xlane.xlu0 %475
  %v477 = vsel %vm158, %v120, 0.0
  %478 = vadd.xlane.f32.xlu0 %v477
  %v479 = vpop.xlane.xlu0 %478
  %v480 = vsel %vm158, %v121, 0.0
  %481 = vadd.xlane.f32.xlu0 %v480
  %v482 = vpop.xlane.xlu0 %481
  %v483 = vsel %vm158, %v122, 0.0
  %484 = vadd.xlane.f32.xlu0 %v483
  %v485 = vpop.xlane.xlu0 %484
  %v486 = vsel %vm158, %v123, 0.0
  %487 = vadd.xlane.f32.xlu0 %v486
  %v488 = vpop.xlane.xlu0 %487
  %v489 = vsel %vm158, %v124, 0.0
  %490 = vadd.xlane.f32.xlu0 %v489
  %v491 = vpop.xlane.xlu0 %490
  %v492 = vsel %vm158, %v125, 0.0
  %493 = vadd.xlane.f32.xlu0 %v492
  %v494 = vpop.xlane.xlu0 %493
  %v495 = vsel %vm158, %v126, 0.0
  %496 = vadd.xlane.f32.xlu0 %v495
  %v497 = vpop.xlane.xlu0 %496
  %v498 = vsel %vm158, %v127, 0.0
  %499 = vadd.xlane.f32.xlu0 %v498
  %v500 = vpop.xlane.xlu0 %499
  %v501 = vsel %vm158, %v128, 0.0
  %502 = vadd.xlane.f32.xlu0 %v501
  %v503 = vpop.xlane.xlu0 %502
  %v504 = vsel %vm158, %v129, 0.0
  %505 = vadd.xlane.f32.xlu0 %v504
  %v506 = vpop.xlane.xlu0 %505
  %v507 = vsel %vm158, %v130, 0.0
  %508 = vadd.xlane.f32.xlu0 %v507
  %v509 = vpop.xlane.xlu0 %508
  %v510 = vsel %vm158, %v131, 0.0
  %511 = vadd.xlane.f32.xlu0 %v510
  %v512 = vpop.xlane.xlu0 %511
  %v513 = vsel %vm158, %v132, 0.0
  %514 = vadd.xlane.f32.xlu0 %v513
  %v515 = vpop.xlane.xlu0 %514
  %v516 = vsel %vm158, %v133, 0.0
  %517 = vadd.xlane.f32.xlu0 %v516
  %v518 = vpop.xlane.xlu0 %517
  %v519 = vsel %vm158, %v134, 0.0
  %520 = vadd.xlane.f32.xlu0 %v519
  %v521 = vpop.xlane.xlu0 %520
  %v522 = vsel %vm158, %v135, 0.0
  %523 = vadd.xlane.f32.xlu0 %v522
  %v524 = vpop.xlane.xlu0 %523
  %v525 = vsel %vm158, %v136, 0.0
  %526 = vadd.xlane.f32.xlu0 %v525
  %v527 = vpop.xlane.xlu0 %526
  %v528 = vsel %vm158, %v137, 0.0
  %529 = vadd.xlane.f32.xlu0 %v528
  %v530 = vpop.xlane.xlu0 %529
  %v531 = vsel %vm158, %v138, 0.0
  %532 = vadd.xlane.f32.xlu0 %v531
  %v533 = vpop.xlane.xlu0 %532
  %v534 = vsel %vm158, %v139, 0.0
  %535 = vadd.xlane.f32.xlu0 %v534
  %v536 = vpop.xlane.xlu0 %535
  %v537 = vsel %vm158, %v140, 0.0
  %538 = vadd.xlane.f32.xlu0 %v537
  %v539 = vpop.xlane.xlu0 %538
  %v540 = vsel %vm158, %v141, 0.0
  %541 = vadd.xlane.f32.xlu0 %v540
  %v542 = vpop.xlane.xlu0 %541
  %v543 = vsel %vm158, %v142, 0.0
  %544 = vadd.xlane.f32.xlu0 %v543
  %v545 = vpop.xlane.xlu0 %544
  %v546 = vsel %vm158, %v143, 0.0
  %547 = vadd.xlane.f32.xlu0 %v546
  %v548 = vpop.xlane.xlu0 %547
  %v549 = vsel %vm158, %v144, 0.0
  %550 = vadd.xlane.f32.xlu0 %v549
  %v551 = vpop.xlane.xlu0 %550
  %v552 = vsel %vm158, %v145, 0.0
  %553 = vadd.xlane.f32.xlu0 %v552
  %v554 = vpop.xlane.xlu0 %553
  %v555 = vsel %vm158, %v146, 0.0
  %556 = vadd.xlane.f32.xlu0 %v555
  %v557 = vpop.xlane.xlu0 %556
  %v558 = vsel %vm158, %v147, 0.0
  %559 = vadd.xlane.f32.xlu0 %v558
  %v560 = vpop.xlane.xlu0 %559
  %v561 = vsel %vm158, %v148, 0.0
  %562 = vadd.xlane.f32.xlu0 %v561
  %v563 = vpop.xlane.xlu0 %562
  %v564 = vsel %vm158, %v149, 0.0
  %565 = vadd.xlane.f32.xlu0 %v564
  %v566 = vpop.xlane.xlu0 %565
  %v567 = vsel %vm158, %v150, 0.0
  %568 = vadd.xlane.f32.xlu0 %v567
  %v569 = vpop.xlane.xlu0 %568
  %v570 = vsel %vm158, %v151, 0.0
  %571 = vadd.xlane.f32.xlu0 %v570
  %v572 = vpop.xlane.xlu0 %571
  %v573 = vsel %vm158, %v152, 0.0
  %574 = vadd.xlane.f32.xlu0 %v573
  %v575 = vpop.xlane.xlu0 %574
  %v576 = vsel %vm158, %v153, 0.0
  %577 = vadd.xlane.f32.xlu0 %v576
  %v578 = vpop.xlane.xlu0 %577
  %v579 = vsel %vm158, %v154, 0.0
  %580 = vadd.xlane.f32.xlu0 %v579
  %v581 = vpop.xlane.xlu0 %580
  %v582 = vsel %vm158, %v155, 0.0
  %583 = vadd.xlane.f32.xlu0 %v582
  %v584 = vpop.xlane.xlu0 %583
  %v585 = vsel %vm158, %v156, 0.0
  %586 = vadd.xlane.f32.xlu0 %v585
  %v587 = vpop.xlane.xlu0 %586
  %v588 = vsel %vm158, %v157, 0.0
  %589 = vadd.xlane.f32.xlu0 %v588
  %v590 = vpop.xlane.xlu0 %589
  %v591 = vmul.f32 %v14, %v14
  %v592 = vmul.f32 %v15, %v15
  %v593 = vmul.f32 %v16, %v16
  %v594 = vmul.f32 %v17, %v17
  %v595 = vmul.f32 %v18, %v18
  %v596 = vmul.f32 %v19, %v19
  %v597 = vmul.f32 %v20, %v20
  %v598 = vmul.f32 %v21, %v21
  %v599 = vmul.f32 %v22, %v22
  %v600 = vmul.f32 %v23, %v23
  %v601 = vmul.f32 %v24, %v24
  %v602 = vmul.f32 %v25, %v25
  %v603 = vmul.f32 %v26, %v26
  %v604 = vmul.f32 %v27, %v27
  %v605 = vmul.f32 %v28, %v28
  %v606 = vmul.f32 %v29, %v29
  %v607 = vmul.f32 %v30, %v30
  %v608 = vmul.f32 %v31, %v31
  %v609 = vmul.f32 %v32, %v32
  %v610 = vmul.f32 %v33, %v33
  %v611 = vmul.f32 %v34, %v34
  %v612 = vmul.f32 %v35, %v35
  %v613 = vmul.f32 %v36, %v36
  %v614 = vmul.f32 %v37, %v37
  %v615 = vmul.f32 %v38, %v38
  %v616 = vmul.f32 %v39, %v39
  %v617 = vmul.f32 %v40, %v40
  %v618 = vmul.f32 %v41, %v41
  %v619 = vmul.f32 %v42, %v42
  %v620 = vmul.f32 %v43, %v43
  %v621 = vmul.f32 %v44, %v44
  %v622 = vmul.f32 %v45, %v45
  %v623 = vmul.f32 %v46, %v46
  %v624 = vmul.f32 %v47, %v47
  %v625 = vmul.f32 %v48, %v48
  %v626 = vmul.f32 %v49, %v49
  %v627 = vmul.f32 %v50, %v50
  %v628 = vmul.f32 %v51, %v51
  %v629 = vmul.f32 %v52, %v52
  %v630 = vmul.f32 %v53, %v53
  %v631 = vmul.f32 %v54, %v54
  %v632 = vmul.f32 %v55, %v55
  %v633 = vmul.f32 %v56, %v56
  %v634 = vmul.f32 %v57, %v57
  %v635 = vmul.f32 %v58, %v58
  %v636 = vmul.f32 %v59, %v59
  %v637 = vmul.f32 %v60, %v60
  %v638 = vmul.f32 %v61, %v61
  %v639 = vmul.f32 %v62, %v62
  %v640 = vmul.f32 %v63, %v63
  %v641 = vmul.f32 %v64, %v64
  %v642 = vmul.f32 %v65, %v65
  %v643 = vmul.f32 %v66, %v66
  %v644 = vmul.f32 %v67, %v67
  %v645 = vmul.f32 %v68, %v68
  %v646 = vmul.f32 %v69, %v69
  %v647 = vmul.f32 %v70, %v70
  %v648 = vmul.f32 %v71, %v71
  %v649 = vmul.f32 %v72, %v72
  %v650 = vmul.f32 %v73, %v73
  %v651 = vmul.f32 %v74, %v74
  %v652 = vmul.f32 %v75, %v75
  %v653 = vmul.f32 %v76, %v76
  %v654 = vmul.f32 %v77, %v77
  %v655 = vmul.f32 %v78, %v78
  %v656 = vmul.f32 %v79, %v79
  %v657 = vmul.f32 %v80, %v80
  %v658 = vmul.f32 %v81, %v81
  %v659 = vmul.f32 %v82, %v82
  %v660 = vmul.f32 %v83, %v83
  %v661 = vmul.f32 %v84, %v84
  %v662 = vmul.f32 %v85, %v85
  %v663 = vmul.f32 %v86, %v86
  %v664 = vmul.f32 %v87, %v87
  %v665 = vmul.f32 %v88, %v88
  %v666 = vmul.f32 %v89, %v89
  %v667 = vmul.f32 %v90, %v90
  %v668 = vmul.f32 %v91, %v91
  %v669 = vmul.f32 %v92, %v92
  %v670 = vmul.f32 %v93, %v93
  %v671 = vmul.f32 %v94, %v94
  %v672 = vmul.f32 %v95, %v95
  %v673 = vmul.f32 %v96, %v96
  %v674 = vmul.f32 %v97, %v97
  %v675 = vmul.f32 %v98, %v98
  %v676 = vmul.f32 %v99, %v99
  %v677 = vmul.f32 %v100, %v100
  %v678 = vmul.f32 %v101, %v101
  %v679 = vmul.f32 %v102, %v102
  %v680 = vmul.f32 %v103, %v103
  %v681 = vmul.f32 %v104, %v104
  %v682 = vmul.f32 %v105, %v105
  %v683 = vmul.f32 %v106, %v106
  %v684 = vmul.f32 %v107, %v107
  %v685 = vmul.f32 %v108, %v108
  %v686 = vmul.f32 %v109, %v109
  %v687 = vmul.f32 %v110, %v110
  %v688 = vmul.f32 %v111, %v111
  %v689 = vmul.f32 %v112, %v112
  %v690 = vmul.f32 %v113, %v113
  %v691 = vmul.f32 %v114, %v114
  %v692 = vmul.f32 %v115, %v115
  %v693 = vmul.f32 %v116, %v116
  %v694 = vmul.f32 %v117, %v117
  %v695 = vmul.f32 %v118, %v118
  %v696 = vmul.f32 %v119, %v119
  %v697 = vmul.f32 %v120, %v120
  %v698 = vmul.f32 %v121, %v121
  %v699 = vmul.f32 %v122, %v122
  %v700 = vmul.f32 %v123, %v123
  %v701 = vmul.f32 %v124, %v124
  %v702 = vmul.f32 %v125, %v125
  %v703 = vmul.f32 %v126, %v126
  %v704 = vmul.f32 %v127, %v127
  %v705 = vmul.f32 %v128, %v128
  %v706 = vmul.f32 %v129, %v129
  %v707 = vmul.f32 %v130, %v130
  %v708 = vmul.f32 %v131, %v131
  %v709 = vmul.f32 %v132, %v132
  %v710 = vmul.f32 %v133, %v133
  %v711 = vmul.f32 %v134, %v134
  %v712 = vmul.f32 %v135, %v135
  %v713 = vmul.f32 %v136, %v136
  %v714 = vmul.f32 %v137, %v137
  %v715 = vmul.f32 %v138, %v138
  %v716 = vmul.f32 %v139, %v139
  %v717 = vmul.f32 %v140, %v140
  %v718 = vmul.f32 %v141, %v141
  %v719 = vmul.f32 %v142, %v142
  %v720 = vmul.f32 %v143, %v143
  %v721 = vmul.f32 %v144, %v144
  %v722 = vmul.f32 %v145, %v145
  %v723 = vmul.f32 %v146, %v146
  %v724 = vmul.f32 %v147, %v147
  %v725 = vmul.f32 %v148, %v148
  %v726 = vmul.f32 %v149, %v149
  %v727 = vmul.f32 %v150, %v150
  %v728 = vmul.f32 %v151, %v151
  %v729 = vmul.f32 %v152, %v152
  %v730 = vmul.f32 %v153, %v153
  %v731 = vmul.f32 %v154, %v154
  %v732 = vmul.f32 %v155, %v155
  %v733 = vmul.f32 %v156, %v156
  %v734 = vmul.f32 %v157, %v157
  %v735 = vsel %vm158, %v591, 0.0
  %736 = vadd.xlane.f32.xlu0 %v735
  %v737 = vpop.xlane.xlu0 %736
  %v738 = vsel %vm158, %v592, 0.0
  %739 = vadd.xlane.f32.xlu0 %v738
  %v740 = vpop.xlane.xlu0 %739
  %v741 = vsel %vm158, %v593, 0.0
  %742 = vadd.xlane.f32.xlu0 %v741
  %v743 = vpop.xlane.xlu0 %742
  %v744 = vsel %vm158, %v594, 0.0
  %745 = vadd.xlane.f32.xlu0 %v744
  %v746 = vpop.xlane.xlu0 %745
  %v747 = vsel %vm158, %v595, 0.0
  %748 = vadd.xlane.f32.xlu0 %v747
  %v749 = vpop.xlane.xlu0 %748
  %v750 = vsel %vm158, %v596, 0.0
  %751 = vadd.xlane.f32.xlu0 %v750
  %v752 = vpop.xlane.xlu0 %751
  %v753 = vsel %vm158, %v597, 0.0
  %754 = vadd.xlane.f32.xlu0 %v753
  %v755 = vpop.xlane.xlu0 %754
  %v756 = vsel %vm158, %v598, 0.0
  %757 = vadd.xlane.f32.xlu0 %v756
  %v758 = vpop.xlane.xlu0 %757
  %v759 = vsel %vm158, %v599, 0.0
  %760 = vadd.xlane.f32.xlu0 %v759
  %v761 = vpop.xlane.xlu0 %760
  %v762 = vsel %vm158, %v600, 0.0
  %763 = vadd.xlane.f32.xlu0 %v762
  %v764 = vpop.xlane.xlu0 %763
  %v765 = vsel %vm158, %v601, 0.0
  %766 = vadd.xlane.f32.xlu0 %v765
  %v767 = vpop.xlane.xlu0 %766
  %v768 = vsel %vm158, %v602, 0.0
  %769 = vadd.xlane.f32.xlu0 %v768
  %v770 = vpop.xlane.xlu0 %769
  %v771 = vsel %vm158, %v603, 0.0
  %772 = vadd.xlane.f32.xlu0 %v771
  %v773 = vpop.xlane.xlu0 %772
  %v774 = vsel %vm158, %v604, 0.0
  %775 = vadd.xlane.f32.xlu0 %v774
  %v776 = vpop.xlane.xlu0 %775
  %v777 = vsel %vm158, %v605, 0.0
  %778 = vadd.xlane.f32.xlu0 %v777
  %v779 = vpop.xlane.xlu0 %778
  %v780 = vsel %vm158, %v606, 0.0
  %781 = vadd.xlane.f32.xlu0 %v780
  %v782 = vpop.xlane.xlu0 %781
  %v783 = vsel %vm158, %v607, 0.0
  %784 = vadd.xlane.f32.xlu0 %v783
  %v785 = vpop.xlane.xlu0 %784
  %v786 = vsel %vm158, %v608, 0.0
  %787 = vadd.xlane.f32.xlu0 %v786
  %v788 = vpop.xlane.xlu0 %787
  %v789 = vsel %vm158, %v609, 0.0
  %790 = vadd.xlane.f32.xlu0 %v789
  %v791 = vpop.xlane.xlu0 %790
  %v792 = vsel %vm158, %v610, 0.0
  %793 = vadd.xlane.f32.xlu0 %v792
  %v794 = vpop.xlane.xlu0 %793
  %v795 = vsel %vm158, %v611, 0.0
  %796 = vadd.xlane.f32.xlu0 %v795
  %v797 = vpop.xlane.xlu0 %796
  %v798 = vsel %vm158, %v612, 0.0
  %799 = vadd.xlane.f32.xlu0 %v798
  %v800 = vpop.xlane.xlu0 %799
  %v801 = vsel %vm158, %v613, 0.0
  %802 = vadd.xlane.f32.xlu0 %v801
  %v803 = vpop.xlane.xlu0 %802
  %v804 = vsel %vm158, %v614, 0.0
  %805 = vadd.xlane.f32.xlu0 %v804
  %v806 = vpop.xlane.xlu0 %805
  %v807 = vsel %vm158, %v615, 0.0
  %808 = vadd.xlane.f32.xlu0 %v807
  %v809 = vpop.xlane.xlu0 %808
  %v810 = vsel %vm158, %v616, 0.0
  %811 = vadd.xlane.f32.xlu0 %v810
  %v812 = vpop.xlane.xlu0 %811
  %v813 = vsel %vm158, %v617, 0.0
  %814 = vadd.xlane.f32.xlu0 %v813
  %v815 = vpop.xlane.xlu0 %814
  %v816 = vsel %vm158, %v618, 0.0
  %817 = vadd.xlane.f32.xlu0 %v816
  %v818 = vpop.xlane.xlu0 %817
  %v819 = vsel %vm158, %v619, 0.0
  %820 = vadd.xlane.f32.xlu0 %v819
  %v821 = vpop.xlane.xlu0 %820
  %v822 = vsel %vm158, %v620, 0.0
  %823 = vadd.xlane.f32.xlu0 %v822
  %v824 = vpop.xlane.xlu0 %823
  %v825 = vsel %vm158, %v621, 0.0
  %826 = vadd.xlane.f32.xlu0 %v825
  %v827 = vpop.xlane.xlu0 %826
  %v828 = vsel %vm158, %v622, 0.0
  %829 = vadd.xlane.f32.xlu0 %v828
  %v830 = vpop.xlane.xlu0 %829
  %v831 = vsel %vm158, %v623, 0.0
  %832 = vadd.xlane.f32.xlu0 %v831
  %v833 = vpop.xlane.xlu0 %832
  %v834 = vsel %vm158, %v624, 0.0
  %835 = vadd.xlane.f32.xlu0 %v834
  %v836 = vpop.xlane.xlu0 %835
  %v837 = vsel %vm158, %v625, 0.0
  %838 = vadd.xlane.f32.xlu0 %v837
  %v839 = vpop.xlane.xlu0 %838
  %v840 = vsel %vm158, %v626, 0.0
  %841 = vadd.xlane.f32.xlu0 %v840
  %v842 = vpop.xlane.xlu0 %841
  %v843 = vsel %vm158, %v627, 0.0
  %844 = vadd.xlane.f32.xlu0 %v843
  %v845 = vpop.xlane.xlu0 %844
  %v846 = vsel %vm158, %v628, 0.0
  %847 = vadd.xlane.f32.xlu0 %v846
  %v848 = vpop.xlane.xlu0 %847
  %v849 = vsel %vm158, %v629, 0.0
  %850 = vadd.xlane.f32.xlu0 %v849
  %v851 = vpop.xlane.xlu0 %850
  %v852 = vsel %vm158, %v630, 0.0
  %853 = vadd.xlane.f32.xlu0 %v852
  %v854 = vpop.xlane.xlu0 %853
  %v855 = vsel %vm158, %v631, 0.0
  %856 = vadd.xlane.f32.xlu0 %v855
  %v857 = vpop.xlane.xlu0 %856
  %v858 = vsel %vm158, %v632, 0.0
  %859 = vadd.xlane.f32.xlu0 %v858
  %v860 = vpop.xlane.xlu0 %859
  %v861 = vsel %vm158, %v633, 0.0
  %862 = vadd.xlane.f32.xlu0 %v861
  %v863 = vpop.xlane.xlu0 %862
  %v864 = vsel %vm158, %v634, 0.0
  %865 = vadd.xlane.f32.xlu0 %v864
  %v866 = vpop.xlane.xlu0 %865
  %v867 = vsel %vm158, %v635, 0.0
  %868 = vadd.xlane.f32.xlu0 %v867
  %v869 = vpop.xlane.xlu0 %868
  %v870 = vsel %vm158, %v636, 0.0
  %871 = vadd.xlane.f32.xlu0 %v870
  %v872 = vpop.xlane.xlu0 %871
  %v873 = vsel %vm158, %v637, 0.0
  %874 = vadd.xlane.f32.xlu0 %v873
  %v875 = vpop.xlane.xlu0 %874
  %v876 = vsel %vm158, %v638, 0.0
  %877 = vadd.xlane.f32.xlu0 %v876
  %v878 = vpop.xlane.xlu0 %877
  %v879 = vsel %vm158, %v639, 0.0
  %880 = vadd.xlane.f32.xlu0 %v879
  %v881 = vpop.xlane.xlu0 %880
  %v882 = vsel %vm158, %v640, 0.0
  %883 = vadd.xlane.f32.xlu0 %v882
  %v884 = vpop.xlane.xlu0 %883
  %v885 = vsel %vm158, %v641, 0.0
  %886 = vadd.xlane.f32.xlu0 %v885
  %v887 = vpop.xlane.xlu0 %886
  %v888 = vsel %vm158, %v642, 0.0
  %889 = vadd.xlane.f32.xlu0 %v888
  %v890 = vpop.xlane.xlu0 %889
  %v891 = vsel %vm158, %v643, 0.0
  %892 = vadd.xlane.f32.xlu0 %v891
  %v893 = vpop.xlane.xlu0 %892
  %v894 = vsel %vm158, %v644, 0.0
  %895 = vadd.xlane.f32.xlu0 %v894
  %v896 = vpop.xlane.xlu0 %895
  %v897 = vsel %vm158, %v645, 0.0
  %898 = vadd.xlane.f32.xlu0 %v897
  %v899 = vpop.xlane.xlu0 %898
  %v900 = vsel %vm158, %v646, 0.0
  %901 = vadd.xlane.f32.xlu0 %v900
  %v902 = vpop.xlane.xlu0 %901
  %v903 = vsel %vm158, %v647, 0.0
  %904 = vadd.xlane.f32.xlu0 %v903
  %v905 = vpop.xlane.xlu0 %904
  %v906 = vsel %vm158, %v648, 0.0
  %907 = vadd.xlane.f32.xlu0 %v906
  %v908 = vpop.xlane.xlu0 %907
  %v909 = vsel %vm158, %v649, 0.0
  %910 = vadd.xlane.f32.xlu0 %v909
  %v911 = vpop.xlane.xlu0 %910
  %v912 = vsel %vm158, %v650, 0.0
  %913 = vadd.xlane.f32.xlu0 %v912
  %v914 = vpop.xlane.xlu0 %913
  %v915 = vsel %vm158, %v651, 0.0
  %916 = vadd.xlane.f32.xlu0 %v915
  %v917 = vpop.xlane.xlu0 %916
  %v918 = vsel %vm158, %v652, 0.0
  %919 = vadd.xlane.f32.xlu0 %v918
  %v920 = vpop.xlane.xlu0 %919
  %v921 = vsel %vm158, %v653, 0.0
  %922 = vadd.xlane.f32.xlu0 %v921
  %v923 = vpop.xlane.xlu0 %922
  %v924 = vsel %vm158, %v654, 0.0
  %925 = vadd.xlane.f32.xlu0 %v924
  %v926 = vpop.xlane.xlu0 %925
  %v927 = vsel %vm158, %v655, 0.0
  %928 = vadd.xlane.f32.xlu0 %v927
  %v929 = vpop.xlane.xlu0 %928
  %v930 = vsel %vm158, %v656, 0.0
  %931 = vadd.xlane.f32.xlu0 %v930
  %v932 = vpop.xlane.xlu0 %931
  %v933 = vsel %vm158, %v657, 0.0
  %934 = vadd.xlane.f32.xlu0 %v933
  %v935 = vpop.xlane.xlu0 %934
  %v936 = vsel %vm158, %v658, 0.0
  %937 = vadd.xlane.f32.xlu0 %v936
  %v938 = vpop.xlane.xlu0 %937
  %v939 = vsel %vm158, %v659, 0.0
  %940 = vadd.xlane.f32.xlu0 %v939
  %v941 = vpop.xlane.xlu0 %940
  %v942 = vsel %vm158, %v660, 0.0
  %943 = vadd.xlane.f32.xlu0 %v942
  %v944 = vpop.xlane.xlu0 %943
  %v945 = vsel %vm158, %v661, 0.0
  %946 = vadd.xlane.f32.xlu0 %v945
  %v947 = vpop.xlane.xlu0 %946
  %v948 = vsel %vm158, %v662, 0.0
  %949 = vadd.xlane.f32.xlu0 %v948
  %v950 = vpop.xlane.xlu0 %949
  %v951 = vsel %vm158, %v663, 0.0
  %952 = vadd.xlane.f32.xlu0 %v951
  %v953 = vpop.xlane.xlu0 %952
  %v954 = vsel %vm158, %v664, 0.0
  %955 = vadd.xlane.f32.xlu0 %v954
  %v956 = vpop.xlane.xlu0 %955
  %v957 = vsel %vm158, %v665, 0.0
  %958 = vadd.xlane.f32.xlu0 %v957
  %v959 = vpop.xlane.xlu0 %958
  %v960 = vsel %vm158, %v666, 0.0
  %961 = vadd.xlane.f32.xlu0 %v960
  %v962 = vpop.xlane.xlu0 %961
  %v963 = vsel %vm158, %v667, 0.0
  %964 = vadd.xlane.f32.xlu0 %v963
  %v965 = vpop.xlane.xlu0 %964
  %v966 = vsel %vm158, %v668, 0.0
  %967 = vadd.xlane.f32.xlu0 %v966
  %v968 = vpop.xlane.xlu0 %967
  %v969 = vsel %vm158, %v669, 0.0
  %970 = vadd.xlane.f32.xlu0 %v969
  %v971 = vpop.xlane.xlu0 %970
  %v972 = vsel %vm158, %v670, 0.0
  %973 = vadd.xlane.f32.xlu0 %v972
  %v974 = vpop.xlane.xlu0 %973
  %v975 = vsel %vm158, %v671, 0.0
  %976 = vadd.xlane.f32.xlu0 %v975
  %v977 = vpop.xlane.xlu0 %976
  %v978 = vsel %vm158, %v672, 0.0
  %979 = vadd.xlane.f32.xlu0 %v978
  %v980 = vpop.xlane.xlu0 %979
  %v981 = vsel %vm158, %v673, 0.0
  %982 = vadd.xlane.f32.xlu0 %v981
  %v983 = vpop.xlane.xlu0 %982
  %v984 = vsel %vm158, %v674, 0.0
  %985 = vadd.xlane.f32.xlu0 %v984
  %v986 = vpop.xlane.xlu0 %985
  %v987 = vsel %vm158, %v675, 0.0
  %988 = vadd.xlane.f32.xlu0 %v987
  %v989 = vpop.xlane.xlu0 %988
  %v990 = vsel %vm158, %v676, 0.0
  %991 = vadd.xlane.f32.xlu0 %v990
  %v992 = vpop.xlane.xlu0 %991
  %v993 = vsel %vm158, %v677, 0.0
  %994 = vadd.xlane.f32.xlu0 %v993
  %v995 = vpop.xlane.xlu0 %994
  %v996 = vsel %vm158, %v678, 0.0
  %997 = vadd.xlane.f32.xlu0 %v996
  %v998 = vpop.xlane.xlu0 %997
  %v999 = vsel %vm158, %v679, 0.0
  %1000 = vadd.xlane.f32.xlu0 %v999
  %v1001 = vpop.xlane.xlu0 %1000
  %v1002 = vsel %vm158, %v680, 0.0
  %1003 = vadd.xlane.f32.xlu0 %v1002
  %v1004 = vpop.xlane.xlu0 %1003
  %v1005 = vsel %vm158, %v681, 0.0
  %1006 = vadd.xlane.f32.xlu0 %v1005
  %v1007 = vpop.xlane.xlu0 %1006
  %v1008 = vsel %vm158, %v682, 0.0
  %1009 = vadd.xlane.f32.xlu0 %v1008
  %v1010 = vpop.xlane.xlu0 %1009
  %v1011 = vsel %vm158, %v683, 0.0
  %1012 = vadd.xlane.f32.xlu0 %v1011
  %v1013 = vpop.xlane.xlu0 %1012
  %v1014 = vsel %vm158, %v684, 0.0
  %1015 = vadd.xlane.f32.xlu0 %v1014
  %v1016 = vpop.xlane.xlu0 %1015
  %v1017 = vsel %vm158, %v685, 0.0
  %1018 = vadd.xlane.f32.xlu0 %v1017
  %v1019 = vpop.xlane.xlu0 %1018
  %v1020 = vsel %vm158, %v686, 0.0
  %1021 = vadd.xlane.f32.xlu0 %v1020
  %v1022 = vpop.xlane.xlu0 %1021
  %v1023 = vsel %vm158, %v687, 0.0
  %1024 = vadd.xlane.f32.xlu0 %v1023
  %v1025 = vpop.xlane.xlu0 %1024
  %v1026 = vsel %vm158, %v688, 0.0
  %1027 = vadd.xlane.f32.xlu0 %v1026
  %v1028 = vpop.xlane.xlu0 %1027
  %v1029 = vsel %vm158, %v689, 0.0
  %1030 = vadd.xlane.f32.xlu0 %v1029
  %v1031 = vpop.xlane.xlu0 %1030
  %v1032 = vsel %vm158, %v690, 0.0
  %1033 = vadd.xlane.f32.xlu0 %v1032
  %v1034 = vpop.xlane.xlu0 %1033
  %v1035 = vsel %vm158, %v691, 0.0
  %1036 = vadd.xlane.f32.xlu0 %v1035
  %v1037 = vpop.xlane.xlu0 %1036
  %v1038 = vsel %vm158, %v692, 0.0
  %1039 = vadd.xlane.f32.xlu0 %v1038
  %v1040 = vpop.xlane.xlu0 %1039
  %v1041 = vsel %vm158, %v693, 0.0
  %1042 = vadd.xlane.f32.xlu0 %v1041
  %v1043 = vpop.xlane.xlu0 %1042
  %v1044 = vsel %vm158, %v694, 0.0
  %1045 = vadd.xlane.f32.xlu0 %v1044
  %v1046 = vpop.xlane.xlu0 %1045
  %v1047 = vsel %vm158, %v695, 0.0
  %1048 = vadd.xlane.f32.xlu0 %v1047
  %v1049 = vpop.xlane.xlu0 %1048
  %v1050 = vsel %vm158, %v696, 0.0
  %1051 = vadd.xlane.f32.xlu0 %v1050
  %v1052 = vpop.xlane.xlu0 %1051
  %v1053 = vsel %vm158, %v697, 0.0
  %1054 = vadd.xlane.f32.xlu0 %v1053
  %v1055 = vpop.xlane.xlu0 %1054
  %v1056 = vsel %vm158, %v698, 0.0
  %1057 = vadd.xlane.f32.xlu0 %v1056
  %v1058 = vpop.xlane.xlu0 %1057
  %v1059 = vsel %vm158, %v699, 0.0
  %1060 = vadd.xlane.f32.xlu0 %v1059
  %v1061 = vpop.xlane.xlu0 %1060
  %v1062 = vsel %vm158, %v700, 0.0
  %1063 = vadd.xlane.f32.xlu0 %v1062
  %v1064 = vpop.xlane.xlu0 %1063
  %v1065 = vsel %vm158, %v701, 0.0
  %1066 = vadd.xlane.f32.xlu0 %v1065
  %v1067 = vpop.xlane.xlu0 %1066
  %v1068 = vsel %vm158, %v702, 0.0
  %1069 = vadd.xlane.f32.xlu0 %v1068
  %v1070 = vpop.xlane.xlu0 %1069
  %v1071 = vsel %vm158, %v703, 0.0
  %1072 = vadd.xlane.f32.xlu0 %v1071
  %v1073 = vpop.xlane.xlu0 %1072
  %v1074 = vsel %vm158, %v704, 0.0
  %1075 = vadd.xlane.f32.xlu0 %v1074
  %v1076 = vpop.xlane.xlu0 %1075
  %v1077 = vsel %vm158, %v705, 0.0
  %1078 = vadd.xlane.f32.xlu0 %v1077
  %v1079 = vpop.xlane.xlu0 %1078
  %v1080 = vsel %vm158, %v706, 0.0
  %1081 = vadd.xlane.f32.xlu0 %v1080
  %v1082 = vpop.xlane.xlu0 %1081
  %v1083 = vsel %vm158, %v707, 0.0
  %1084 = vadd.xlane.f32.xlu0 %v1083
  %v1085 = vpop.xlane.xlu0 %1084
  %v1086 = vsel %vm158, %v708, 0.0
  %1087 = vadd.xlane.f32.xlu0 %v1086
  %v1088 = vpop.xlane.xlu0 %1087
  %v1089 = vsel %vm158, %v709, 0.0
  %1090 = vadd.xlane.f32.xlu0 %v1089
  %v1091 = vpop.xlane.xlu0 %1090
  %v1092 = vsel %vm158, %v710, 0.0
  %1093 = vadd.xlane.f32.xlu0 %v1092
  %v1094 = vpop.xlane.xlu0 %1093
  %v1095 = vsel %vm158, %v711, 0.0
  %1096 = vadd.xlane.f32.xlu0 %v1095
  %v1097 = vpop.xlane.xlu0 %1096
  %v1098 = vsel %vm158, %v712, 0.0
  %1099 = vadd.xlane.f32.xlu0 %v1098
  %v1100 = vpop.xlane.xlu0 %1099
  %v1101 = vsel %vm158, %v713, 0.0
  %1102 = vadd.xlane.f32.xlu0 %v1101
  %v1103 = vpop.xlane.xlu0 %1102
  %v1104 = vsel %vm158, %v714, 0.0
  %1105 = vadd.xlane.f32.xlu0 %v1104
  %v1106 = vpop.xlane.xlu0 %1105
  %v1107 = vsel %vm158, %v715, 0.0
  %1108 = vadd.xlane.f32.xlu0 %v1107
  %v1109 = vpop.xlane.xlu0 %1108
  %v1110 = vsel %vm158, %v716, 0.0
  %1111 = vadd.xlane.f32.xlu0 %v1110
  %v1112 = vpop.xlane.xlu0 %1111
  %v1113 = vsel %vm158, %v717, 0.0
  %1114 = vadd.xlane.f32.xlu0 %v1113
  %v1115 = vpop.xlane.xlu0 %1114
  %v1116 = vsel %vm158, %v718, 0.0
  %1117 = vadd.xlane.f32.xlu0 %v1116
  %v1118 = vpop.xlane.xlu0 %1117
  %v1119 = vsel %vm158, %v719, 0.0
  %1120 = vadd.xlane.f32.xlu0 %v1119
  %v1121 = vpop.xlane.xlu0 %1120
  %v1122 = vsel %vm158, %v720, 0.0
  %1123 = vadd.xlane.f32.xlu0 %v1122
  %v1124 = vpop.xlane.xlu0 %1123
  %v1125 = vsel %vm158, %v721, 0.0
  %1126 = vadd.xlane.f32.xlu0 %v1125
  %v1127 = vpop.xlane.xlu0 %1126
  %v1128 = vsel %vm158, %v722, 0.0
  %1129 = vadd.xlane.f32.xlu0 %v1128
  %v1130 = vpop.xlane.xlu0 %1129
  %v1131 = vsel %vm158, %v723, 0.0
  %1132 = vadd.xlane.f32.xlu0 %v1131
  %v1133 = vpop.xlane.xlu0 %1132
  %v1134 = vsel %vm158, %v724, 0.0
  %1135 = vadd.xlane.f32.xlu0 %v1134
  %v1136 = vpop.xlane.xlu0 %1135
  %v1137 = vsel %vm158, %v725, 0.0
  %1138 = vadd.xlane.f32.xlu0 %v1137
  %v1139 = vpop.xlane.xlu0 %1138
  %v1140 = vsel %vm158, %v726, 0.0
  %1141 = vadd.xlane.f32.xlu0 %v1140
  %v1142 = vpop.xlane.xlu0 %1141
  %v1143 = vsel %vm158, %v727, 0.0
  %1144 = vadd.xlane.f32.xlu0 %v1143
  %v1145 = vpop.xlane.xlu0 %1144
  %v1146 = vsel %vm158, %v728, 0.0
  %1147 = vadd.xlane.f32.xlu0 %v1146
  %v1148 = vpop.xlane.xlu0 %1147
  %v1149 = vsel %vm158, %v729, 0.0
  %1150 = vadd.xlane.f32.xlu0 %v1149
  %v1151 = vpop.xlane.xlu0 %1150
  %v1152 = vsel %vm158, %v730, 0.0
  %1153 = vadd.xlane.f32.xlu0 %v1152
  %v1154 = vpop.xlane.xlu0 %1153
  %v1155 = vsel %vm158, %v731, 0.0
  %1156 = vadd.xlane.f32.xlu0 %v1155
  %v1157 = vpop.xlane.xlu0 %1156
  %v1158 = vsel %vm158, %v732, 0.0
  %1159 = vadd.xlane.f32.xlu0 %v1158
  %v1160 = vpop.xlane.xlu0 %1159
  %v1161 = vsel %vm158, %v733, 0.0
  %1162 = vadd.xlane.f32.xlu0 %v1161
  %v1163 = vpop.xlane.xlu0 %1162
  %v1164 = vsel %vm158, %v734, 0.0
  %1165 = vadd.xlane.f32.xlu0 %v1164
  %v1166 = vpop.xlane.xlu0 %1165
  %v1167 = vmul.f32 %v161, 0.020408163
  %v1168 = vmul.f32 %v164, 0.020408163
  %v1169 = vmul.f32 %v167, 0.020408163
  %v1170 = vmul.f32 %v170, 0.020408163
  %v1171 = vmul.f32 %v173, 0.020408163
  %v1172 = vmul.f32 %v176, 0.020408163
  %v1173 = vmul.f32 %v179, 0.020408163
  %v1174 = vmul.f32 %v182, 0.020408163
  %v1175 = vmul.f32 %v185, 0.020408163
  %v1176 = vmul.f32 %v188, 0.020408163
  %v1177 = vmul.f32 %v191, 0.020408163
  %v1178 = vmul.f32 %v194, 0.020408163
  %v1179 = vmul.f32 %v197, 0.020408163
  %v1180 = vmul.f32 %v200, 0.020408163
  %v1181 = vmul.f32 %v203, 0.020408163
  %v1182 = vmul.f32 %v206, 0.020408163
  %v1183 = vmul.f32 %v209, 0.020408163
  %v1184 = vmul.f32 %v212, 0.020408163
  %v1185 = vmul.f32 %v215, 0.020408163
  %v1186 = vmul.f32 %v218, 0.020408163
  %v1187 = vmul.f32 %v221, 0.020408163
  %v1188 = vmul.f32 %v224, 0.020408163
  %v1189 = vmul.f32 %v227, 0.020408163
  %v1190 = vmul.f32 %v230, 0.020408163
  %v1191 = vmul.f32 %v233, 0.020408163
  %v1192 = vmul.f32 %v236, 0.020408163
  %v1193 = vmul.f32 %v239, 0.020408163
  %v1194 = vmul.f32 %v242, 0.020408163
  %v1195 = vmul.f32 %v245, 0.020408163
  %v1196 = vmul.f32 %v248, 0.020408163
  %v1197 = vmul.f32 %v251, 0.020408163
  %v1198 = vmul.f32 %v254, 0.020408163
  %v1199 = vmul.f32 %v257, 0.020408163
  %v1200 = vmul.f32 %v260, 0.020408163
  %v1201 = vmul.f32 %v263, 0.020408163
  %v1202 = vmul.f32 %v266, 0.020408163
  %v1203 = vmul.f32 %v269, 0.020408163
  %v1204 = vmul.f32 %v272, 0.020408163
  %v1205 = vmul.f32 %v275, 0.020408163
  %v1206 = vmul.f32 %v278, 0.020408163
  %v1207 = vmul.f32 %v281, 0.020408163
  %v1208 = vmul.f32 %v284, 0.020408163
  %v1209 = vmul.f32 %v287, 0.020408163
  %v1210 = vmul.f32 %v290, 0.020408163
  %v1211 = vmul.f32 %v293, 0.020408163
  %v1212 = vmul.f32 %v296, 0.020408163
  %v1213 = vmul.f32 %v299, 0.020408163
  %v1214 = vmul.f32 %v302, 0.020408163
  %v1215 = vmul.f32 %v305, 0.020408163
  %v1216 = vmul.f32 %v308, 0.020408163
  %v1217 = vmul.f32 %v311, 0.020408163
  %v1218 = vmul.f32 %v314, 0.020408163
  %v1219 = vmul.f32 %v317, 0.020408163
  %v1220 = vmul.f32 %v320, 0.020408163
  %v1221 = vmul.f32 %v323, 0.020408163
  %v1222 = vmul.f32 %v326, 0.020408163
  %v1223 = vmul.f32 %v329, 0.020408163
  %v1224 = vmul.f32 %v332, 0.020408163
  %v1225 = vmul.f32 %v335, 0.020408163
  %v1226 = vmul.f32 %v338, 0.020408163
  %v1227 = vmul.f32 %v341, 0.020408163
  %v1228 = vmul.f32 %v344, 0.020408163
  %v1229 = vmul.f32 %v347, 0.020408163
  %v1230 = vmul.f32 %v350, 0.020408163
  %v1231 = vmul.f32 %v353, 0.020408163
  %v1232 = vmul.f32 %v356, 0.020408163
  %v1233 = vmul.f32 %v359, 0.020408163
  %v1234 = vmul.f32 %v362, 0.020408163
  %v1235 = vmul.f32 %v365, 0.020408163
  %v1236 = vmul.f32 %v368, 0.020408163
  %v1237 = vmul.f32 %v371, 0.020408163
  %v1238 = vmul.f32 %v374, 0.020408163
  %v1239 = vmul.f32 %v377, 0.020408163
  %v1240 = vmul.f32 %v380, 0.020408163
  %v1241 = vmul.f32 %v383, 0.020408163
  %v1242 = vmul.f32 %v386, 0.020408163
  %v1243 = vmul.f32 %v389, 0.020408163
  %v1244 = vmul.f32 %v392, 0.020408163
  %v1245 = vmul.f32 %v395, 0.020408163
  %v1246 = vmul.f32 %v398, 0.020408163
  %v1247 = vmul.f32 %v401, 0.020408163
  %v1248 = vmul.f32 %v404, 0.020408163
  %v1249 = vmul.f32 %v407, 0.020408163
  %v1250 = vmul.f32 %v410, 0.020408163
  %v1251 = vmul.f32 %v413, 0.020408163
  %v1252 = vmul.f32 %v416, 0.020408163
  %v1253 = vmul.f32 %v419, 0.020408163
  %v1254 = vmul.f32 %v422, 0.020408163
  %v1255 = vmul.f32 %v425, 0.020408163
  %v1256 = vmul.f32 %v428, 0.020408163
  %v1257 = vmul.f32 %v431, 0.020408163
  %v1258 = vmul.f32 %v434, 0.020408163
  %v1259 = vmul.f32 %v437, 0.020408163
  %v1260 = vmul.f32 %v440, 0.020408163
  %v1261 = vmul.f32 %v443, 0.020408163
  %v1262 = vmul.f32 %v446, 0.020408163
  %v1263 = vmul.f32 %v449, 0.020408163
  %v1264 = vmul.f32 %v452, 0.020408163
  %v1265 = vmul.f32 %v455, 0.020408163
  %v1266 = vmul.f32 %v458, 0.020408163
  %v1267 = vmul.f32 %v461, 0.020408163
  %v1268 = vmul.f32 %v464, 0.020408163
  %v1269 = vmul.f32 %v467, 0.020408163
  %v1270 = vmul.f32 %v470, 0.020408163
  %v1271 = vmul.f32 %v473, 0.020408163
  %v1272 = vmul.f32 %v476, 0.020408163
  %v1273 = vmul.f32 %v479, 0.020408163
  %v1274 = vmul.f32 %v482, 0.020408163
  %v1275 = vmul.f32 %v485, 0.020408163
  %v1276 = vmul.f32 %v488, 0.020408163
  %v1277 = vmul.f32 %v491, 0.020408163
  %v1278 = vmul.f32 %v494, 0.020408163
  %v1279 = vmul.f32 %v497, 0.020408163
  %v1280 = vmul.f32 %v500, 0.020408163
  %v1281 = vmul.f32 %v503, 0.020408163
  %v1282 = vmul.f32 %v506, 0.020408163
  %v1283 = vmul.f32 %v509, 0.020408163
  %v1284 = vmul.f32 %v512, 0.020408163
  %v1285 = vmul.f32 %v515, 0.020408163
  %v1286 = vmul.f32 %v518, 0.020408163
  %v1287 = vmul.f32 %v521, 0.020408163
  %v1288 = vmul.f32 %v524, 0.020408163
  %v1289 = vmul.f32 %v527, 0.020408163
  %v1290 = vmul.f32 %v530, 0.020408163
  %v1291 = vmul.f32 %v533, 0.020408163
  %v1292 = vmul.f32 %v536, 0.020408163
  %v1293 = vmul.f32 %v539, 0.020408163
  %v1294 = vmul.f32 %v542, 0.020408163
  %v1295 = vmul.f32 %v545, 0.020408163
  %v1296 = vmul.f32 %v548, 0.020408163
  %v1297 = vmul.f32 %v551, 0.020408163
  %v1298 = vmul.f32 %v554, 0.020408163
  %v1299 = vmul.f32 %v557, 0.020408163
  %v1300 = vmul.f32 %v560, 0.020408163
  %v1301 = vmul.f32 %v563, 0.020408163
  %v1302 = vmul.f32 %v566, 0.020408163
  %v1303 = vmul.f32 %v569, 0.020408163
  %v1304 = vmul.f32 %v572, 0.020408163
  %v1305 = vmul.f32 %v575, 0.020408163
  %v1306 = vmul.f32 %v578, 0.020408163
  %v1307 = vmul.f32 %v581, 0.020408163
  %v1308 = vmul.f32 %v584, 0.020408163
  %v1309 = vmul.f32 %v587, 0.020408163
  %v1310 = vmul.f32 %v590, 0.020408163
  %v1311 = vmul.f32 %v737, 0.020408163
  %v1312 = vmul.f32 %v740, 0.020408163
  %v1313 = vmul.f32 %v743, 0.020408163
  %v1314 = vmul.f32 %v746, 0.020408163
  %v1315 = vmul.f32 %v749, 0.020408163
  %v1316 = vmul.f32 %v752, 0.020408163
  %v1317 = vmul.f32 %v755, 0.020408163
  %v1318 = vmul.f32 %v758, 0.020408163
  %v1319 = vmul.f32 %v761, 0.020408163
  %v1320 = vmul.f32 %v764, 0.020408163
  %v1321 = vmul.f32 %v767, 0.020408163
  %v1322 = vmul.f32 %v770, 0.020408163
  %v1323 = vmul.f32 %v773, 0.020408163
  %v1324 = vmul.f32 %v776, 0.020408163
  %v1325 = vmul.f32 %v779, 0.020408163
  %v1326 = vmul.f32 %v782, 0.020408163
  %v1327 = vmul.f32 %v785, 0.020408163
  %v1328 = vmul.f32 %v788, 0.020408163
  %v1329 = vmul.f32 %v791, 0.020408163
  %v1330 = vmul.f32 %v794, 0.020408163
  %v1331 = vmul.f32 %v797, 0.020408163
  %v1332 = vmul.f32 %v800, 0.020408163
  %v1333 = vmul.f32 %v803, 0.020408163
  %v1334 = vmul.f32 %v806, 0.020408163
  %v1335 = vmul.f32 %v809, 0.020408163
  %v1336 = vmul.f32 %v812, 0.020408163
  %v1337 = vmul.f32 %v815, 0.020408163
  %v1338 = vmul.f32 %v818, 0.020408163
  %v1339 = vmul.f32 %v821, 0.020408163
  %v1340 = vmul.f32 %v824, 0.020408163
  %v1341 = vmul.f32 %v827, 0.020408163
  %v1342 = vmul.f32 %v830, 0.020408163
  %v1343 = vmul.f32 %v833, 0.020408163
  %v1344 = vmul.f32 %v836, 0.020408163
  %v1345 = vmul.f32 %v839, 0.020408163
  %v1346 = vmul.f32 %v842, 0.020408163
  %v1347 = vmul.f32 %v845, 0.020408163
  %v1348 = vmul.f32 %v848, 0.020408163
  %v1349 = vmul.f32 %v851, 0.020408163
  %v1350 = vmul.f32 %v854, 0.020408163
  %v1351 = vmul.f32 %v857, 0.020408163
  %v1352 = vmul.f32 %v860, 0.020408163
  %v1353 = vmul.f32 %v863, 0.020408163
  %v1354 = vmul.f32 %v866, 0.020408163
  %v1355 = vmul.f32 %v869, 0.020408163
  %v1356 = vmul.f32 %v872, 0.020408163
  %v1357 = vmul.f32 %v875, 0.020408163
  %v1358 = vmul.f32 %v878, 0.020408163
  %v1359 = vmul.f32 %v881, 0.020408163
  %v1360 = vmul.f32 %v884, 0.020408163
  %v1361 = vmul.f32 %v887, 0.020408163
  %v1362 = vmul.f32 %v890, 0.020408163
  %v1363 = vmul.f32 %v893, 0.020408163
  %v1364 = vmul.f32 %v896, 0.020408163
  %v1365 = vmul.f32 %v899, 0.020408163
  %v1366 = vmul.f32 %v902, 0.020408163
  %v1367 = vmul.f32 %v905, 0.020408163
  %v1368 = vmul.f32 %v908, 0.020408163
  %v1369 = vmul.f32 %v911, 0.020408163
  %v1370 = vmul.f32 %v914, 0.020408163
  %v1371 = vmul.f32 %v917, 0.020408163
  %v1372 = vmul.f32 %v920, 0.020408163
  %v1373 = vmul.f32 %v923, 0.020408163
  %v1374 = vmul.f32 %v926, 0.020408163
  %v1375 = vmul.f32 %v929, 0.020408163
  %v1376 = vmul.f32 %v932, 0.020408163
  %v1377 = vmul.f32 %v935, 0.020408163
  %v1378 = vmul.f32 %v938, 0.020408163
  %v1379 = vmul.f32 %v941, 0.020408163
  %v1380 = vmul.f32 %v944, 0.020408163
  %v1381 = vmul.f32 %v947, 0.020408163
  %v1382 = vmul.f32 %v950, 0.020408163
  %v1383 = vmul.f32 %v953, 0.020408163
  %v1384 = vmul.f32 %v956, 0.020408163
  %v1385 = vmul.f32 %v959, 0.020408163
  %v1386 = vmul.f32 %v962, 0.020408163
  %v1387 = vmul.f32 %v965, 0.020408163
  %v1388 = vmul.f32 %v968, 0.020408163
  %v1389 = vmul.f32 %v971, 0.020408163
  %v1390 = vmul.f32 %v974, 0.020408163
  %v1391 = vmul.f32 %v977, 0.020408163
  %v1392 = vmul.f32 %v980, 0.020408163
  %v1393 = vmul.f32 %v983, 0.020408163
  %v1394 = vmul.f32 %v986, 0.020408163
  %v1395 = vmul.f32 %v989, 0.020408163
  %v1396 = vmul.f32 %v992, 0.020408163
  %v1397 = vmul.f32 %v995, 0.020408163
  %v1398 = vmul.f32 %v998, 0.020408163
  %v1399 = vmul.f32 %v1001, 0.020408163
  %v1400 = vmul.f32 %v1004, 0.020408163
  %v1401 = vmul.f32 %v1007, 0.020408163
  %v1402 = vmul.f32 %v1010, 0.020408163
  %v1403 = vmul.f32 %v1013, 0.020408163
  %v1404 = vmul.f32 %v1016, 0.020408163
  %v1405 = vmul.f32 %v1019, 0.020408163
  %v1406 = vmul.f32 %v1022, 0.020408163
  %v1407 = vmul.f32 %v1025, 0.020408163
  %v1408 = vmul.f32 %v1028, 0.020408163
  %v1409 = vmul.f32 %v1031, 0.020408163
  %v1410 = vmul.f32 %v1034, 0.020408163
  %v1411 = vmul.f32 %v1037, 0.020408163
  %v1412 = vmul.f32 %v1040, 0.020408163
  %v1413 = vmul.f32 %v1043, 0.020408163
  %v1414 = vmul.f32 %v1046, 0.020408163
  %v1415 = vmul.f32 %v1049, 0.020408163
  %v1416 = vmul.f32 %v1052, 0.020408163
  %v1417 = vmul.f32 %v1055, 0.020408163
  %v1418 = vmul.f32 %v1058, 0.020408163
  %v1419 = vmul.f32 %v1061, 0.020408163
  %v1420 = vmul.f32 %v1064, 0.020408163
  %v1421 = vmul.f32 %v1067, 0.020408163
  %v1422 = vmul.f32 %v1070, 0.020408163
  %v1423 = vmul.f32 %v1073, 0.020408163
  %v1424 = vmul.f32 %v1076, 0.020408163
  %v1425 = vmul.f32 %v1079, 0.020408163
  %v1426 = vmul.f32 %v1082, 0.020408163
  %v1427 = vmul.f32 %v1085, 0.020408163
  %v1428 = vmul.f32 %v1088, 0.020408163
  %v1429 = vmul.f32 %v1091, 0.020408163
  %v1430 = vmul.f32 %v1094, 0.020408163
  %v1431 = vmul.f32 %v1097, 0.020408163
  %v1432 = vmul.f32 %v1100, 0.020408163
  %v1433 = vmul.f32 %v1103, 0.020408163
  %v1434 = vmul.f32 %v1106, 0.020408163
  %v1435 = vmul.f32 %v1109, 0.020408163
  %v1436 = vmul.f32 %v1112, 0.020408163
  %v1437 = vmul.f32 %v1115, 0.020408163
  %v1438 = vmul.f32 %v1118, 0.020408163
  %v1439 = vmul.f32 %v1121, 0.020408163
  %v1440 = vmul.f32 %v1124, 0.020408163
  %v1441 = vmul.f32 %v1127, 0.020408163
  %v1442 = vmul.f32 %v1130, 0.020408163
  %v1443 = vmul.f32 %v1133, 0.020408163
  %v1444 = vmul.f32 %v1136, 0.020408163
  %v1445 = vmul.f32 %v1139, 0.020408163
  %v1446 = vmul.f32 %v1142, 0.020408163
  %v1447 = vmul.f32 %v1145, 0.020408163
  %v1448 = vmul.f32 %v1148, 0.020408163
  %v1449 = vmul.f32 %v1151, 0.020408163
  %v1450 = vmul.f32 %v1154, 0.020408163
  %v1451 = vmul.f32 %v1157, 0.020408163
  %v1452 = vmul.f32 %v1160, 0.020408163
  %v1453 = vmul.f32 %v1163, 0.020408163
  %v1454 = vmul.f32 %v1166, 0.020408163
  %v1455 = vmul.f32 %v1167, %v1167
  %v1456 = vmul.f32 %v1168, %v1168
  %v1457 = vmul.f32 %v1169, %v1169
  %v1458 = vmul.f32 %v1170, %v1170
  %v1459 = vmul.f32 %v1171, %v1171
  %v1460 = vmul.f32 %v1172, %v1172
  %v1461 = vmul.f32 %v1173, %v1173
  %v1462 = vmul.f32 %v1174, %v1174
  %v1463 = vmul.f32 %v1175, %v1175
  %v1464 = vmul.f32 %v1176, %v1176
  %v1465 = vmul.f32 %v1177, %v1177
  %v1466 = vmul.f32 %v1178, %v1178
  %v1467 = vmul.f32 %v1179, %v1179
  %v1468 = vmul.f32 %v1180, %v1180
  %v1469 = vmul.f32 %v1181, %v1181
  %v1470 = vmul.f32 %v1182, %v1182
  %v1471 = vmul.f32 %v1183, %v1183
  %v1472 = vmul.f32 %v1184, %v1184
  %v1473 = vmul.f32 %v1185, %v1185
  %v1474 = vmul.f32 %v1186, %v1186
  %v1475 = vmul.f32 %v1187, %v1187
  %v1476 = vmul.f32 %v1188, %v1188
  %v1477 = vmul.f32 %v1189, %v1189
  %v1478 = vmul.f32 %v1190, %v1190
  %v1479 = vmul.f32 %v1191, %v1191
  %v1480 = vmul.f32 %v1192, %v1192
  %v1481 = vmul.f32 %v1193, %v1193
  %v1482 = vmul.f32 %v1194, %v1194
  %v1483 = vmul.f32 %v1195, %v1195
  %v1484 = vmul.f32 %v1196, %v1196
  %v1485 = vmul.f32 %v1197, %v1197
  %v1486 = vmul.f32 %v1198, %v1198
  %v1487 = vmul.f32 %v1199, %v1199
  %v1488 = vmul.f32 %v1200, %v1200
  %v1489 = vmul.f32 %v1201, %v1201
  %v1490 = vmul.f32 %v1202, %v1202
  %v1491 = vmul.f32 %v1203, %v1203
  %v1492 = vmul.f32 %v1204, %v1204
  %v1493 = vmul.f32 %v1205, %v1205
  %v1494 = vmul.f32 %v1206, %v1206
  %v1495 = vmul.f32 %v1207, %v1207
  %v1496 = vmul.f32 %v1208, %v1208
  %v1497 = vmul.f32 %v1209, %v1209
  %v1498 = vmul.f32 %v1210, %v1210
  %v1499 = vmul.f32 %v1211, %v1211
  %v1500 = vmul.f32 %v1212, %v1212
  %v1501 = vmul.f32 %v1213, %v1213
  %v1502 = vmul.f32 %v1214, %v1214
  %v1503 = vmul.f32 %v1215, %v1215
  %v1504 = vmul.f32 %v1216, %v1216
  %v1505 = vmul.f32 %v1217, %v1217
  %v1506 = vmul.f32 %v1218, %v1218
  %v1507 = vmul.f32 %v1219, %v1219
  %v1508 = vmul.f32 %v1220, %v1220
  %v1509 = vmul.f32 %v1221, %v1221
  %v1510 = vmul.f32 %v1222, %v1222
  %v1511 = vmul.f32 %v1223, %v1223
  %v1512 = vmul.f32 %v1224, %v1224
  %v1513 = vmul.f32 %v1225, %v1225
  %v1514 = vmul.f32 %v1226, %v1226
  %v1515 = vmul.f32 %v1227, %v1227
  %v1516 = vmul.f32 %v1228, %v1228
  %v1517 = vmul.f32 %v1229, %v1229
  %v1518 = vmul.f32 %v1230, %v1230
  %v1519 = vmul.f32 %v1231, %v1231
  %v1520 = vmul.f32 %v1232, %v1232
  %v1521 = vmul.f32 %v1233, %v1233
  %v1522 = vmul.f32 %v1234, %v1234
  %v1523 = vmul.f32 %v1235, %v1235
  %v1524 = vmul.f32 %v1236, %v1236
  %v1525 = vmul.f32 %v1237, %v1237
  %v1526 = vmul.f32 %v1238, %v1238
  %v1527 = vmul.f32 %v1239, %v1239
  %v1528 = vmul.f32 %v1240, %v1240
  %v1529 = vmul.f32 %v1241, %v1241
  %v1530 = vmul.f32 %v1242, %v1242
  %v1531 = vmul.f32 %v1243, %v1243
  %v1532 = vmul.f32 %v1244, %v1244
  %v1533 = vmul.f32 %v1245, %v1245
  %v1534 = vmul.f32 %v1246, %v1246
  %v1535 = vmul.f32 %v1247, %v1247
  %v1536 = vmul.f32 %v1248, %v1248
  %v1537 = vmul.f32 %v1249, %v1249
  %v1538 = vmul.f32 %v1250, %v1250
  %v1539 = vmul.f32 %v1251, %v1251
  %v1540 = vmul.f32 %v1252, %v1252
  %v1541 = vmul.f32 %v1253, %v1253
  %v1542 = vmul.f32 %v1254, %v1254
  %v1543 = vmul.f32 %v1255, %v1255
  %v1544 = vmul.f32 %v1256, %v1256
  %v1545 = vmul.f32 %v1257, %v1257
  %v1546 = vmul.f32 %v1258, %v1258
  %v1547 = vmul.f32 %v1259, %v1259
  %v1548 = vmul.f32 %v1260, %v1260
  %v1549 = vmul.f32 %v1261, %v1261
  %v1550 = vmul.f32 %v1262, %v1262
  %v1551 = vmul.f32 %v1263, %v1263
  %v1552 = vmul.f32 %v1264, %v1264
  %v1553 = vmul.f32 %v1265, %v1265
  %v1554 = vmul.f32 %v1266, %v1266
  %v1555 = vmul.f32 %v1267, %v1267
  %v1556 = vmul.f32 %v1268, %v1268
  %v1557 = vmul.f32 %v1269, %v1269
  %v1558 = vmul.f32 %v1270, %v1270
  %v1559 = vmul.f32 %v1271, %v1271
  %v1560 = vmul.f32 %v1272, %v1272
  %v1561 = vmul.f32 %v1273, %v1273
  %v1562 = vmul.f32 %v1274, %v1274
  %v1563 = vmul.f32 %v1275, %v1275
  %v1564 = vmul.f32 %v1276, %v1276
  %v1565 = vmul.f32 %v1277, %v1277
  %v1566 = vmul.f32 %v1278, %v1278
  %v1567 = vmul.f32 %v1279, %v1279
  %v1568 = vmul.f32 %v1280, %v1280
  %v1569 = vmul.f32 %v1281, %v1281
  %v1570 = vmul.f32 %v1282, %v1282
  %v1571 = vmul.f32 %v1283, %v1283
  %v1572 = vmul.f32 %v1284, %v1284
  %v1573 = vmul.f32 %v1285, %v1285
  %v1574 = vmul.f32 %v1286, %v1286
  %v1575 = vmul.f32 %v1287, %v1287
  %v1576 = vmul.f32 %v1288, %v1288
  %v1577 = vmul.f32 %v1289, %v1289
  %v1578 = vmul.f32 %v1290, %v1290
  %v1579 = vmul.f32 %v1291, %v1291
  %v1580 = vmul.f32 %v1292, %v1292
  %v1581 = vmul.f32 %v1293, %v1293
  %v1582 = vmul.f32 %v1294, %v1294
  %v1583 = vmul.f32 %v1295, %v1295
  %v1584 = vmul.f32 %v1296, %v1296
  %v1585 = vmul.f32 %v1297, %v1297
  %v1586 = vmul.f32 %v1298, %v1298
  %v1587 = vmul.f32 %v1299, %v1299
  %v1588 = vmul.f32 %v1300, %v1300
  %v1589 = vmul.f32 %v1301, %v1301
  %v1590 = vmul.f32 %v1302, %v1302
  %v1591 = vmul.f32 %v1303, %v1303
  %v1592 = vmul.f32 %v1304, %v1304
  %v1593 = vmul.f32 %v1305, %v1305
  %v1594 = vmul.f32 %v1306, %v1306
  %v1595 = vmul.f32 %v1307, %v1307
  %v1596 = vmul.f32 %v1308, %v1308
  %v1597 = vmul.f32 %v1309, %v1309
  %v1598 = vmul.f32 %v1310, %v1310
  %v1599 = vsub.f32 %v1311, %v1455
  %v1600 = vsub.f32 %v1312, %v1456
  %v1601 = vsub.f32 %v1313, %v1457
  %v1602 = vsub.f32 %v1314, %v1458
  %v1603 = vsub.f32 %v1315, %v1459
  %v1604 = vsub.f32 %v1316, %v1460
  %v1605 = vsub.f32 %v1317, %v1461
  %v1606 = vsub.f32 %v1318, %v1462
  %v1607 = vsub.f32 %v1319, %v1463
  %v1608 = vsub.f32 %v1320, %v1464
  %v1609 = vsub.f32 %v1321, %v1465
  %v1610 = vsub.f32 %v1322, %v1466
  %v1611 = vsub.f32 %v1323, %v1467
  %v1612 = vsub.f32 %v1324, %v1468
  %v1613 = vsub.f32 %v1325, %v1469
  %v1614 = vsub.f32 %v1326, %v1470
  %v1615 = vsub.f32 %v1327, %v1471
  %v1616 = vsub.f32 %v1328, %v1472
  %v1617 = vsub.f32 %v1329, %v1473
  %v1618 = vsub.f32 %v1330, %v1474
  %v1619 = vsub.f32 %v1331, %v1475
  %v1620 = vsub.f32 %v1332, %v1476
  %v1621 = vsub.f32 %v1333, %v1477
  %v1622 = vsub.f32 %v1334, %v1478
  %v1623 = vsub.f32 %v1335, %v1479
  %v1624 = vsub.f32 %v1336, %v1480
  %v1625 = vsub.f32 %v1337, %v1481
  %v1626 = vsub.f32 %v1338, %v1482
  %v1627 = vsub.f32 %v1339, %v1483
  %v1628 = vsub.f32 %v1340, %v1484
  %v1629 = vsub.f32 %v1341, %v1485
  %v1630 = vsub.f32 %v1342, %v1486
  %v1631 = vsub.f32 %v1343, %v1487
  %v1632 = vsub.f32 %v1344, %v1488
  %v1633 = vsub.f32 %v1345, %v1489
  %v1634 = vsub.f32 %v1346, %v1490
  %v1635 = vsub.f32 %v1347, %v1491
  %v1636 = vsub.f32 %v1348, %v1492
  %v1637 = vsub.f32 %v1349, %v1493
  %v1638 = vsub.f32 %v1350, %v1494
  %v1639 = vsub.f32 %v1351, %v1495
  %v1640 = vsub.f32 %v1352, %v1496
  %v1641 = vsub.f32 %v1353, %v1497
  %v1642 = vsub.f32 %v1354, %v1498
  %v1643 = vsub.f32 %v1355, %v1499
  %v1644 = vsub.f32 %v1356, %v1500
  %v1645 = vsub.f32 %v1357, %v1501
  %v1646 = vsub.f32 %v1358, %v1502
  %v1647 = vsub.f32 %v1359, %v1503
  %v1648 = vsub.f32 %v1360, %v1504
  %v1649 = vsub.f32 %v1361, %v1505
  %v1650 = vsub.f32 %v1362, %v1506
  %v1651 = vsub.f32 %v1363, %v1507
  %v1652 = vsub.f32 %v1364, %v1508
  %v1653 = vsub.f32 %v1365, %v1509
  %v1654 = vsub.f32 %v1366, %v1510
  %v1655 = vsub.f32 %v1367, %v1511
  %v1656 = vsub.f32 %v1368, %v1512
  %v1657 = vsub.f32 %v1369, %v1513
  %v1658 = vsub.f32 %v1370, %v1514
  %v1659 = vsub.f32 %v1371, %v1515
  %v1660 = vsub.f32 %v1372, %v1516
  %v1661 = vsub.f32 %v1373, %v1517
  %v1662 = vsub.f32 %v1374, %v1518
  %v1663 = vsub.f32 %v1375, %v1519
  %v1664 = vsub.f32 %v1376, %v1520
  %v1665 = vsub.f32 %v1377, %v1521
  %v1666 = vsub.f32 %v1378, %v1522
  %v1667 = vsub.f32 %v1379, %v1523
  %v1668 = vsub.f32 %v1380, %v1524
  %v1669 = vsub.f32 %v1381, %v1525
  %v1670 = vsub.f32 %v1382, %v1526
  %v1671 = vsub.f32 %v1383, %v1527
  %v1672 = vsub.f32 %v1384, %v1528
  %v1673 = vsub.f32 %v1385, %v1529
  %v1674 = vsub.f32 %v1386, %v1530
  %v1675 = vsub.f32 %v1387, %v1531
  %v1676 = vsub.f32 %v1388, %v1532
  %v1677 = vsub.f32 %v1389, %v1533
  %v1678 = vsub.f32 %v1390, %v1534
  %v1679 = vsub.f32 %v1391, %v1535
  %v1680 = vsub.f32 %v1392, %v1536
  %v1681 = vsub.f32 %v1393, %v1537
  %v1682 = vsub.f32 %v1394, %v1538
  %v1683 = vsub.f32 %v1395, %v1539
  %v1684 = vsub.f32 %v1396, %v1540
  %v1685 = vsub.f32 %v1397, %v1541
  %v1686 = vsub.f32 %v1398, %v1542
  %v1687 = vsub.f32 %v1399, %v1543
  %v1688 = vsub.f32 %v1400, %v1544
  %v1689 = vsub.f32 %v1401, %v1545
  %v1690 = vsub.f32 %v1402, %v1546
  %v1691 = vsub.f32 %v1403, %v1547
  %v1692 = vsub.f32 %v1404, %v1548
  %v1693 = vsub.f32 %v1405, %v1549
  %v1694 = vsub.f32 %v1406, %v1550
  %v1695 = vsub.f32 %v1407, %v1551
  %v1696 = vsub.f32 %v1408, %v1552
  %v1697 = vsub.f32 %v1409, %v1553
  %v1698 = vsub.f32 %v1410, %v1554
  %v1699 = vsub.f32 %v1411, %v1555
  %v1700 = vsub.f32 %v1412, %v1556
  %v1701 = vsub.f32 %v1413, %v1557
  %v1702 = vsub.f32 %v1414, %v1558
  %v1703 = vsub.f32 %v1415, %v1559
  %v1704 = vsub.f32 %v1416, %v1560
  %v1705 = vsub.f32 %v1417, %v1561
  %v1706 = vsub.f32 %v1418, %v1562
  %v1707 = vsub.f32 %v1419, %v1563
  %v1708 = vsub.f32 %v1420, %v1564
  %v1709 = vsub.f32 %v1421, %v1565
  %v1710 = vsub.f32 %v1422, %v1566
  %v1711 = vsub.f32 %v1423, %v1567
  %v1712 = vsub.f32 %v1424, %v1568
  %v1713 = vsub.f32 %v1425, %v1569
  %v1714 = vsub.f32 %v1426, %v1570
  %v1715 = vsub.f32 %v1427, %v1571
  %v1716 = vsub.f32 %v1428, %v1572
  %v1717 = vsub.f32 %v1429, %v1573
  %v1718 = vsub.f32 %v1430, %v1574
  %v1719 = vsub.f32 %v1431, %v1575
  %v1720 = vsub.f32 %v1432, %v1576
  %v1721 = vsub.f32 %v1433, %v1577
  %v1722 = vsub.f32 %v1434, %v1578
  %v1723 = vsub.f32 %v1435, %v1579
  %v1724 = vsub.f32 %v1436, %v1580
  %v1725 = vsub.f32 %v1437, %v1581
  %v1726 = vsub.f32 %v1438, %v1582
  %v1727 = vsub.f32 %v1439, %v1583
  %v1728 = vsub.f32 %v1440, %v1584
  %v1729 = vsub.f32 %v1441, %v1585
  %v1730 = vsub.f32 %v1442, %v1586
  %v1731 = vsub.f32 %v1443, %v1587
  %v1732 = vsub.f32 %v1444, %v1588
  %v1733 = vsub.f32 %v1445, %v1589
  %v1734 = vsub.f32 %v1446, %v1590
  %v1735 = vsub.f32 %v1447, %v1591
  %v1736 = vsub.f32 %v1448, %v1592
  %v1737 = vsub.f32 %v1449, %v1593
  %v1738 = vsub.f32 %v1450, %v1594
  %v1739 = vsub.f32 %v1451, %v1595
  %v1740 = vsub.f32 %v1452, %v1596
  %v1741 = vsub.f32 %v1453, %v1597
  %v1742 = vsub.f32 %v1454, %v1598
  %v1743 = vmax.f32 %v1599, 0.0
  %v1744 = vmax.f32 %v1600, 0.0
  %v1745 = vmax.f32 %v1601, 0.0
  %v1746 = vmax.f32 %v1602, 0.0
  %v1747 = vmax.f32 %v1603, 0.0
  %v1748 = vmax.f32 %v1604, 0.0
  %v1749 = vmax.f32 %v1605, 0.0
  %v1750 = vmax.f32 %v1606, 0.0
  %v1751 = vmax.f32 %v1607, 0.0
  %v1752 = vmax.f32 %v1608, 0.0
  %v1753 = vmax.f32 %v1609, 0.0
  %v1754 = vmax.f32 %v1610, 0.0
  %v1755 = vmax.f32 %v1611, 0.0
  %v1756 = vmax.f32 %v1612, 0.0
  %v1757 = vmax.f32 %v1613, 0.0
  %v1758 = vmax.f32 %v1614, 0.0
  %v1759 = vmax.f32 %v1615, 0.0
  %v1760 = vmax.f32 %v1616, 0.0
  %v1761 = vmax.f32 %v1617, 0.0
  %v1762 = vmax.f32 %v1618, 0.0
  %v1763 = vmax.f32 %v1619, 0.0
  %v1764 = vmax.f32 %v1620, 0.0
  %v1765 = vmax.f32 %v1621, 0.0
  %v1766 = vmax.f32 %v1622, 0.0
  %v1767 = vmax.f32 %v1623, 0.0
  %v1768 = vmax.f32 %v1624, 0.0
  %v1769 = vmax.f32 %v1625, 0.0
  %v1770 = vmax.f32 %v1626, 0.0
  %v1771 = vmax.f32 %v1627, 0.0
  %v1772 = vmax.f32 %v1628, 0.0
  %v1773 = vmax.f32 %v1629, 0.0
  %v1774 = vmax.f32 %v1630, 0.0
  %v1775 = vmax.f32 %v1631, 0.0
  %v1776 = vmax.f32 %v1632, 0.0
  %v1777 = vmax.f32 %v1633, 0.0
  %v1778 = vmax.f32 %v1634, 0.0
  %v1779 = vmax.f32 %v1635, 0.0
  %v1780 = vmax.f32 %v1636, 0.0
  %v1781 = vmax.f32 %v1637, 0.0
  %v1782 = vmax.f32 %v1638, 0.0
  %v1783 = vmax.f32 %v1639, 0.0
  %v1784 = vmax.f32 %v1640, 0.0
  %v1785 = vmax.f32 %v1641, 0.0
  %v1786 = vmax.f32 %v1642, 0.0
  %v1787 = vmax.f32 %v1643, 0.0
  %v1788 = vmax.f32 %v1644, 0.0
  %v1789 = vmax.f32 %v1645, 0.0
  %v1790 = vmax.f32 %v1646, 0.0
  %v1791 = vmax.f32 %v1647, 0.0
  %v1792 = vmax.f32 %v1648, 0.0
  %v1793 = vmax.f32 %v1649, 0.0
  %v1794 = vmax.f32 %v1650, 0.0
  %v1795 = vmax.f32 %v1651, 0.0
  %v1796 = vmax.f32 %v1652, 0.0
  %v1797 = vmax.f32 %v1653, 0.0
  %v1798 = vmax.f32 %v1654, 0.0
  %v1799 = vmax.f32 %v1655, 0.0
  %v1800 = vmax.f32 %v1656, 0.0
  %v1801 = vmax.f32 %v1657, 0.0
  %v1802 = vmax.f32 %v1658, 0.0
  %v1803 = vmax.f32 %v1659, 0.0
  %v1804 = vmax.f32 %v1660, 0.0
  %v1805 = vmax.f32 %v1661, 0.0
  %v1806 = vmax.f32 %v1662, 0.0
  %v1807 = vmax.f32 %v1663, 0.0
  %v1808 = vmax.f32 %v1664, 0.0
  %v1809 = vmax.f32 %v1665, 0.0
  %v1810 = vmax.f32 %v1666, 0.0
  %v1811 = vmax.f32 %v1667, 0.0
  %v1812 = vmax.f32 %v1668, 0.0
  %v1813 = vmax.f32 %v1669, 0.0
  %v1814 = vmax.f32 %v1670, 0.0
  %v1815 = vmax.f32 %v1671, 0.0
  %v1816 = vmax.f32 %v1672, 0.0
  %v1817 = vmax.f32 %v1673, 0.0
  %v1818 = vmax.f32 %v1674, 0.0
  %v1819 = vmax.f32 %v1675, 0.0
  %v1820 = vmax.f32 %v1676, 0.0
  %v1821 = vmax.f32 %v1677, 0.0
  %v1822 = vmax.f32 %v1678, 0.0
  %v1823 = vmax.f32 %v1679, 0.0
  %v1824 = vmax.f32 %v1680, 0.0
  %v1825 = vmax.f32 %v1681, 0.0
  %v1826 = vmax.f32 %v1682, 0.0
  %v1827 = vmax.f32 %v1683, 0.0
  %v1828 = vmax.f32 %v1684, 0.0
  %v1829 = vmax.f32 %v1685, 0.0
  %v1830 = vmax.f32 %v1686, 0.0
  %v1831 = vmax.f32 %v1687, 0.0
  %v1832 = vmax.f32 %v1688, 0.0
  %v1833 = vmax.f32 %v1689, 0.0
  %v1834 = vmax.f32 %v1690, 0.0
  %v1835 = vmax.f32 %v1691, 0.0
  %v1836 = vmax.f32 %v1692, 0.0
  %v1837 = vmax.f32 %v1693, 0.0
  %v1838 = vmax.f32 %v1694, 0.0
  %v1839 = vmax.f32 %v1695, 0.0
  %v1840 = vmax.f32 %v1696, 0.0
  %v1841 = vmax.f32 %v1697, 0.0
  %v1842 = vmax.f32 %v1698, 0.0
  %v1843 = vmax.f32 %v1699, 0.0
  %v1844 = vmax.f32 %v1700, 0.0
  %v1845 = vmax.f32 %v1701, 0.0
  %v1846 = vmax.f32 %v1702, 0.0
  %v1847 = vmax.f32 %v1703, 0.0
  %v1848 = vmax.f32 %v1704, 0.0
  %v1849 = vmax.f32 %v1705, 0.0
  %v1850 = vmax.f32 %v1706, 0.0
  %v1851 = vmax.f32 %v1707, 0.0
  %v1852 = vmax.f32 %v1708, 0.0
  %v1853 = vmax.f32 %v1709, 0.0
  %v1854 = vmax.f32 %v1710, 0.0
  %v1855 = vmax.f32 %v1711, 0.0
  %v1856 = vmax.f32 %v1712, 0.0
  %v1857 = vmax.f32 %v1713, 0.0
  %v1858 = vmax.f32 %v1714, 0.0
  %v1859 = vmax.f32 %v1715, 0.0
  %v1860 = vmax.f32 %v1716, 0.0
  %v1861 = vmax.f32 %v1717, 0.0
  %v1862 = vmax.f32 %v1718, 0.0
  %v1863 = vmax.f32 %v1719, 0.0
  %v1864 = vmax.f32 %v1720, 0.0
  %v1865 = vmax.f32 %v1721, 0.0
  %v1866 = vmax.f32 %v1722, 0.0
  %v1867 = vmax.f32 %v1723, 0.0
  %v1868 = vmax.f32 %v1724, 0.0
  %v1869 = vmax.f32 %v1725, 0.0
  %v1870 = vmax.f32 %v1726, 0.0
  %v1871 = vmax.f32 %v1727, 0.0
  %v1872 = vmax.f32 %v1728, 0.0
  %v1873 = vmax.f32 %v1729, 0.0
  %v1874 = vmax.f32 %v1730, 0.0
  %v1875 = vmax.f32 %v1731, 0.0
  %v1876 = vmax.f32 %v1732, 0.0
  %v1877 = vmax.f32 %v1733, 0.0
  %v1878 = vmax.f32 %v1734, 0.0
  %v1879 = vmax.f32 %v1735, 0.0
  %v1880 = vmax.f32 %v1736, 0.0
  %v1881 = vmax.f32 %v1737, 0.0
  %v1882 = vmax.f32 %v1738, 0.0
  %v1883 = vmax.f32 %v1739, 0.0
  %v1884 = vmax.f32 %v1740, 0.0
  %v1885 = vmax.f32 %v1741, 0.0
  %v1886 = vmax.f32 %v1742, 0.0
  %v1887 = vadd.f32 %v1743, 1e-05
  %v1888 = vadd.f32 %v1744, 1e-05
  %v1889 = vadd.f32 %v1745, 1e-05
  %v1890 = vadd.f32 %v1746, 1e-05
  %v1891 = vadd.f32 %v1747, 1e-05
  %v1892 = vadd.f32 %v1748, 1e-05
  %v1893 = vadd.f32 %v1749, 1e-05
  %v1894 = vadd.f32 %v1750, 1e-05
  %v1895 = vadd.f32 %v1751, 1e-05
  %v1896 = vadd.f32 %v1752, 1e-05
  %v1897 = vadd.f32 %v1753, 1e-05
  %v1898 = vadd.f32 %v1754, 1e-05
  %v1899 = vadd.f32 %v1755, 1e-05
  %v1900 = vadd.f32 %v1756, 1e-05
  %v1901 = vadd.f32 %v1757, 1e-05
  %v1902 = vadd.f32 %v1758, 1e-05
  %v1903 = vadd.f32 %v1759, 1e-05
  %v1904 = vadd.f32 %v1760, 1e-05
  %v1905 = vadd.f32 %v1761, 1e-05
  %v1906 = vadd.f32 %v1762, 1e-05
  %v1907 = vadd.f32 %v1763, 1e-05
  %v1908 = vadd.f32 %v1764, 1e-05
  %v1909 = vadd.f32 %v1765, 1e-05
  %v1910 = vadd.f32 %v1766, 1e-05
  %v1911 = vadd.f32 %v1767, 1e-05
  %v1912 = vadd.f32 %v1768, 1e-05
  %v1913 = vadd.f32 %v1769, 1e-05
  %v1914 = vadd.f32 %v1770, 1e-05
  %v1915 = vadd.f32 %v1771, 1e-05
  %v1916 = vadd.f32 %v1772, 1e-05
  %v1917 = vadd.f32 %v1773, 1e-05
  %v1918 = vadd.f32 %v1774, 1e-05
  %v1919 = vadd.f32 %v1775, 1e-05
  %v1920 = vadd.f32 %v1776, 1e-05
  %v1921 = vadd.f32 %v1777, 1e-05
  %v1922 = vadd.f32 %v1778, 1e-05
  %v1923 = vadd.f32 %v1779, 1e-05
  %v1924 = vadd.f32 %v1780, 1e-05
  %v1925 = vadd.f32 %v1781, 1e-05
  %v1926 = vadd.f32 %v1782, 1e-05
  %v1927 = vadd.f32 %v1783, 1e-05
  %v1928 = vadd.f32 %v1784, 1e-05
  %v1929 = vadd.f32 %v1785, 1e-05
  %v1930 = vadd.f32 %v1786, 1e-05
  %v1931 = vadd.f32 %v1787, 1e-05
  %v1932 = vadd.f32 %v1788, 1e-05
  %v1933 = vadd.f32 %v1789, 1e-05
  %v1934 = vadd.f32 %v1790, 1e-05
  %v1935 = vadd.f32 %v1791, 1e-05
  %v1936 = vadd.f32 %v1792, 1e-05
  %v1937 = vadd.f32 %v1793, 1e-05
  %v1938 = vadd.f32 %v1794, 1e-05
  %v1939 = vadd.f32 %v1795, 1e-05
  %v1940 = vadd.f32 %v1796, 1e-05
  %v1941 = vadd.f32 %v1797, 1e-05
  %v1942 = vadd.f32 %v1798, 1e-05
  %v1943 = vadd.f32 %v1799, 1e-05
  %v1944 = vadd.f32 %v1800, 1e-05
  %v1945 = vadd.f32 %v1801, 1e-05
  %v1946 = vadd.f32 %v1802, 1e-05
  %v1947 = vadd.f32 %v1803, 1e-05
  %v1948 = vadd.f32 %v1804, 1e-05
  %v1949 = vadd.f32 %v1805, 1e-05
  %v1950 = vadd.f32 %v1806, 1e-05
  %v1951 = vadd.f32 %v1807, 1e-05
  %v1952 = vadd.f32 %v1808, 1e-05
  %v1953 = vadd.f32 %v1809, 1e-05
  %v1954 = vadd.f32 %v1810, 1e-05
  %v1955 = vadd.f32 %v1811, 1e-05
  %v1956 = vadd.f32 %v1812, 1e-05
  %v1957 = vadd.f32 %v1813, 1e-05
  %v1958 = vadd.f32 %v1814, 1e-05
  %v1959 = vadd.f32 %v1815, 1e-05
  %v1960 = vadd.f32 %v1816, 1e-05
  %v1961 = vadd.f32 %v1817, 1e-05
  %v1962 = vadd.f32 %v1818, 1e-05
  %v1963 = vadd.f32 %v1819, 1e-05
  %v1964 = vadd.f32 %v1820, 1e-05
  %v1965 = vadd.f32 %v1821, 1e-05
  %v1966 = vadd.f32 %v1822, 1e-05
  %v1967 = vadd.f32 %v1823, 1e-05
  %v1968 = vadd.f32 %v1824, 1e-05
  %v1969 = vadd.f32 %v1825, 1e-05
  %v1970 = vadd.f32 %v1826, 1e-05
  %v1971 = vadd.f32 %v1827, 1e-05
  %v1972 = vadd.f32 %v1828, 1e-05
  %v1973 = vadd.f32 %v1829, 1e-05
  %v1974 = vadd.f32 %v1830, 1e-05
  %v1975 = vadd.f32 %v1831, 1e-05
  %v1976 = vadd.f32 %v1832, 1e-05
  %v1977 = vadd.f32 %v1833, 1e-05
  %v1978 = vadd.f32 %v1834, 1e-05
  %v1979 = vadd.f32 %v1835, 1e-05
  %v1980 = vadd.f32 %v1836, 1e-05
  %v1981 = vadd.f32 %v1837, 1e-05
  %v1982 = vadd.f32 %v1838, 1e-05
  %v1983 = vadd.f32 %v1839, 1e-05
  %v1984 = vadd.f32 %v1840, 1e-05
  %v1985 = vadd.f32 %v1841, 1e-05
  %v1986 = vadd.f32 %v1842, 1e-05
  %v1987 = vadd.f32 %v1843, 1e-05
  %v1988 = vadd.f32 %v1844, 1e-05
  %v1989 = vadd.f32 %v1845, 1e-05
  %v1990 = vadd.f32 %v1846, 1e-05
  %v1991 = vadd.f32 %v1847, 1e-05
  %v1992 = vadd.f32 %v1848, 1e-05
  %v1993 = vadd.f32 %v1849, 1e-05
  %v1994 = vadd.f32 %v1850, 1e-05
  %v1995 = vadd.f32 %v1851, 1e-05
  %v1996 = vadd.f32 %v1852, 1e-05
  %v1997 = vadd.f32 %v1853, 1e-05
  %v1998 = vadd.f32 %v1854, 1e-05
  %v1999 = vadd.f32 %v1855, 1e-05
  %v2000 = vadd.f32 %v1856, 1e-05
  %v2001 = vadd.f32 %v1857, 1e-05
  %v2002 = vadd.f32 %v1858, 1e-05
  %v2003 = vadd.f32 %v1859, 1e-05
  %v2004 = vadd.f32 %v1860, 1e-05
  %v2005 = vadd.f32 %v1861, 1e-05
  %v2006 = vadd.f32 %v1862, 1e-05
  %v2007 = vadd.f32 %v1863, 1e-05
  %v2008 = vadd.f32 %v1864, 1e-05
  %v2009 = vadd.f32 %v1865, 1e-05
  %v2010 = vadd.f32 %v1866, 1e-05
  %v2011 = vadd.f32 %v1867, 1e-05
  %v2012 = vadd.f32 %v1868, 1e-05
  %v2013 = vadd.f32 %v1869, 1e-05
  %v2014 = vadd.f32 %v1870, 1e-05
  %v2015 = vadd.f32 %v1871, 1e-05
  %v2016 = vadd.f32 %v1872, 1e-05
  %v2017 = vadd.f32 %v1873, 1e-05
  %v2018 = vadd.f32 %v1874, 1e-05
  %v2019 = vadd.f32 %v1875, 1e-05
  %v2020 = vadd.f32 %v1876, 1e-05
  %v2021 = vadd.f32 %v1877, 1e-05
  %v2022 = vadd.f32 %v1878, 1e-05
  %v2023 = vadd.f32 %v1879, 1e-05
  %v2024 = vadd.f32 %v1880, 1e-05
  %v2025 = vadd.f32 %v1881, 1e-05
  %v2026 = vadd.f32 %v1882, 1e-05
  %v2027 = vadd.f32 %v1883, 1e-05
  %v2028 = vadd.f32 %v1884, 1e-05
  %v2029 = vadd.f32 %v1885, 1e-05
  %v2030 = vadd.f32 %v1886, 1e-05
  %v2031 = vrsqrt.pop %v1887
  %v2032 = vmul.f32 %v2031, %v1887
  %v2033 = vmul.f32 %v2032, %v2031
  %v2034 = vmul.f32 0.5, %v2033
  %v2035 = vsub.f32 1.5, %v2034
  %v2036 = vmul.f32 %v2031, %v2035
  %vm2037 = vweird.f32 %v1887
  %vm2038 = vweird.f32 %v2031
  %vm2039 = vmor %vm2037, %vm2038
  %v2040 = vsel %vm2039, %v2031, %v2036
  %v2041 = vrsqrt.pop %v1888
  %v2042 = vmul.f32 %v2041, %v1888
  %v2043 = vmul.f32 %v2042, %v2041
  %v2044 = vmul.f32 0.5, %v2043
  %v2045 = vsub.f32 1.5, %v2044
  %v2046 = vmul.f32 %v2041, %v2045
  %vm2047 = vweird.f32 %v1888
  %vm2048 = vweird.f32 %v2041
  %vm2049 = vmor %vm2047, %vm2048
  %v2050 = vsel %vm2049, %v2041, %v2046
  %v2051 = vrsqrt.pop %v1889
  %v2052 = vmul.f32 %v2051, %v1889
  %v2053 = vmul.f32 %v2052, %v2051
  %v2054 = vmul.f32 0.5, %v2053
  %v2055 = vsub.f32 1.5, %v2054
  %v2056 = vmul.f32 %v2051, %v2055
  %vm2057 = vweird.f32 %v1889
  %vm2058 = vweird.f32 %v2051
  %vm2059 = vmor %vm2057, %vm2058
  %v2060 = vsel %vm2059, %v2051, %v2056
  %v2061 = vrsqrt.pop %v1890
  %v2062 = vmul.f32 %v2061, %v1890
  %v2063 = vmul.f32 %v2062, %v2061
  %v2064 = vmul.f32 0.5, %v2063
  %v2065 = vsub.f32 1.5, %v2064
  %v2066 = vmul.f32 %v2061, %v2065
  %vm2067 = vweird.f32 %v1890
  %vm2068 = vweird.f32 %v2061
  %vm2069 = vmor %vm2067, %vm2068
  %v2070 = vsel %vm2069, %v2061, %v2066
  %v2071 = vrsqrt.pop %v1891
  %v2072 = vmul.f32 %v2071, %v1891
  %v2073 = vmul.f32 %v2072, %v2071
  %v2074 = vmul.f32 0.5, %v2073
  %v2075 = vsub.f32 1.5, %v2074
  %v2076 = vmul.f32 %v2071, %v2075
  %vm2077 = vweird.f32 %v1891
  %vm2078 = vweird.f32 %v2071
  %vm2079 = vmor %vm2077, %vm2078
  %v2080 = vsel %vm2079, %v2071, %v2076
  %v2081 = vrsqrt.pop %v1892
  %v2082 = vmul.f32 %v2081, %v1892
  %v2083 = vmul.f32 %v2082, %v2081
  %v2084 = vmul.f32 0.5, %v2083
  %v2085 = vsub.f32 1.5, %v2084
  %v2086 = vmul.f32 %v2081, %v2085
  %vm2087 = vweird.f32 %v1892
  %vm2088 = vweird.f32 %v2081
  %vm2089 = vmor %vm2087, %vm2088
  %v2090 = vsel %vm2089, %v2081, %v2086
  %v2091 = vrsqrt.pop %v1893
  %v2092 = vmul.f32 %v2091, %v1893
  %v2093 = vmul.f32 %v2092, %v2091
  %v2094 = vmul.f32 0.5, %v2093
  %v2095 = vsub.f32 1.5, %v2094
  %v2096 = vmul.f32 %v2091, %v2095
  %vm2097 = vweird.f32 %v1893
  %vm2098 = vweird.f32 %v2091
  %vm2099 = vmor %vm2097, %vm2098
  %v2100 = vsel %vm2099, %v2091, %v2096
  %v2101 = vrsqrt.pop %v1894
  %v2102 = vmul.f32 %v2101, %v1894
  %v2103 = vmul.f32 %v2102, %v2101
  %v2104 = vmul.f32 0.5, %v2103
  %v2105 = vsub.f32 1.5, %v2104
  %v2106 = vmul.f32 %v2101, %v2105
  %vm2107 = vweird.f32 %v1894
  %vm2108 = vweird.f32 %v2101
  %vm2109 = vmor %vm2107, %vm2108
  %v2110 = vsel %vm2109, %v2101, %v2106
  %v2111 = vrsqrt.pop %v1895
  %v2112 = vmul.f32 %v2111, %v1895
  %v2113 = vmul.f32 %v2112, %v2111
  %v2114 = vmul.f32 0.5, %v2113
  %v2115 = vsub.f32 1.5, %v2114
  %v2116 = vmul.f32 %v2111, %v2115
  %vm2117 = vweird.f32 %v1895
  %vm2118 = vweird.f32 %v2111
  %vm2119 = vmor %vm2117, %vm2118
  %v2120 = vsel %vm2119, %v2111, %v2116
  %v2121 = vrsqrt.pop %v1896
  %v2122 = vmul.f32 %v2121, %v1896
  %v2123 = vmul.f32 %v2122, %v2121
  %v2124 = vmul.f32 0.5, %v2123
  %v2125 = vsub.f32 1.5, %v2124
  %v2126 = vmul.f32 %v2121, %v2125
  %vm2127 = vweird.f32 %v1896
  %vm2128 = vweird.f32 %v2121
  %vm2129 = vmor %vm2127, %vm2128
  %v2130 = vsel %vm2129, %v2121, %v2126
  %v2131 = vrsqrt.pop %v1897
  %v2132 = vmul.f32 %v2131, %v1897
  %v2133 = vmul.f32 %v2132, %v2131
  %v2134 = vmul.f32 0.5, %v2133
  %v2135 = vsub.f32 1.5, %v2134
  %v2136 = vmul.f32 %v2131, %v2135
  %vm2137 = vweird.f32 %v1897
  %vm2138 = vweird.f32 %v2131
  %vm2139 = vmor %vm2137, %vm2138
  %v2140 = vsel %vm2139, %v2131, %v2136
  %v2141 = vrsqrt.pop %v1898
  %v2142 = vmul.f32 %v2141, %v1898
  %v2143 = vmul.f32 %v2142, %v2141
  %v2144 = vmul.f32 0.5, %v2143
  %v2145 = vsub.f32 1.5, %v2144
  %v2146 = vmul.f32 %v2141, %v2145
  %vm2147 = vweird.f32 %v1898
  %vm2148 = vweird.f32 %v2141
  %vm2149 = vmor %vm2147, %vm2148
  %v2150 = vsel %vm2149, %v2141, %v2146
  %v2151 = vrsqrt.pop %v1899
  %v2152 = vmul.f32 %v2151, %v1899
  %v2153 = vmul.f32 %v2152, %v2151
  %v2154 = vmul.f32 0.5, %v2153
  %v2155 = vsub.f32 1.5, %v2154
  %v2156 = vmul.f32 %v2151, %v2155
  %vm2157 = vweird.f32 %v1899
  %vm2158 = vweird.f32 %v2151
  %vm2159 = vmor %vm2157, %vm2158
  %v2160 = vsel %vm2159, %v2151, %v2156
  %v2161 = vrsqrt.pop %v1900
  %v2162 = vmul.f32 %v2161, %v1900
  %v2163 = vmul.f32 %v2162, %v2161
  %v2164 = vmul.f32 0.5, %v2163
  %v2165 = vsub.f32 1.5, %v2164
  %v2166 = vmul.f32 %v2161, %v2165
  %vm2167 = vweird.f32 %v1900
  %vm2168 = vweird.f32 %v2161
  %vm2169 = vmor %vm2167, %vm2168
  %v2170 = vsel %vm2169, %v2161, %v2166
  %v2171 = vrsqrt.pop %v1901
  %v2172 = vmul.f32 %v2171, %v1901
  %v2173 = vmul.f32 %v2172, %v2171
  %v2174 = vmul.f32 0.5, %v2173
  %v2175 = vsub.f32 1.5, %v2174
  %v2176 = vmul.f32 %v2171, %v2175
  %vm2177 = vweird.f32 %v1901
  %vm2178 = vweird.f32 %v2171
  %vm2179 = vmor %vm2177, %vm2178
  %v2180 = vsel %vm2179, %v2171, %v2176
  %v2181 = vrsqrt.pop %v1902
  %v2182 = vmul.f32 %v2181, %v1902
  %v2183 = vmul.f32 %v2182, %v2181
  %v2184 = vmul.f32 0.5, %v2183
  %v2185 = vsub.f32 1.5, %v2184
  %v2186 = vmul.f32 %v2181, %v2185
  %vm2187 = vweird.f32 %v1902
  %vm2188 = vweird.f32 %v2181
  %vm2189 = vmor %vm2187, %vm2188
  %v2190 = vsel %vm2189, %v2181, %v2186
  %v2191 = vrsqrt.pop %v1903
  %v2192 = vmul.f32 %v2191, %v1903
  %v2193 = vmul.f32 %v2192, %v2191
  %v2194 = vmul.f32 0.5, %v2193
  %v2195 = vsub.f32 1.5, %v2194
  %v2196 = vmul.f32 %v2191, %v2195
  %vm2197 = vweird.f32 %v1903
  %vm2198 = vweird.f32 %v2191
  %vm2199 = vmor %vm2197, %vm2198
  %v2200 = vsel %vm2199, %v2191, %v2196
  %v2201 = vrsqrt.pop %v1904
  %v2202 = vmul.f32 %v2201, %v1904
  %v2203 = vmul.f32 %v2202, %v2201
  %v2204 = vmul.f32 0.5, %v2203
  %v2205 = vsub.f32 1.5, %v2204
  %v2206 = vmul.f32 %v2201, %v2205
  %vm2207 = vweird.f32 %v1904
  %vm2208 = vweird.f32 %v2201
  %vm2209 = vmor %vm2207, %vm2208
  %v2210 = vsel %vm2209, %v2201, %v2206
  %v2211 = vrsqrt.pop %v1905
  %v2212 = vmul.f32 %v2211, %v1905
  %v2213 = vmul.f32 %v2212, %v2211
  %v2214 = vmul.f32 0.5, %v2213
  %v2215 = vsub.f32 1.5, %v2214
  %v2216 = vmul.f32 %v2211, %v2215
  %vm2217 = vweird.f32 %v1905
  %vm2218 = vweird.f32 %v2211
  %vm2219 = vmor %vm2217, %vm2218
  %v2220 = vsel %vm2219, %v2211, %v2216
  %v2221 = vrsqrt.pop %v1906
  %v2222 = vmul.f32 %v2221, %v1906
  %v2223 = vmul.f32 %v2222, %v2221
  %v2224 = vmul.f32 0.5, %v2223
  %v2225 = vsub.f32 1.5, %v2224
  %v2226 = vmul.f32 %v2221, %v2225
  %vm2227 = vweird.f32 %v1906
  %vm2228 = vweird.f32 %v2221
  %vm2229 = vmor %vm2227, %vm2228
  %v2230 = vsel %vm2229, %v2221, %v2226
  %v2231 = vrsqrt.pop %v1907
  %v2232 = vmul.f32 %v2231, %v1907
  %v2233 = vmul.f32 %v2232, %v2231
  %v2234 = vmul.f32 0.5, %v2233
  %v2235 = vsub.f32 1.5, %v2234
  %v2236 = vmul.f32 %v2231, %v2235
  %vm2237 = vweird.f32 %v1907
  %vm2238 = vweird.f32 %v2231
  %vm2239 = vmor %vm2237, %vm2238
  %v2240 = vsel %vm2239, %v2231, %v2236
  %v2241 = vrsqrt.pop %v1908
  %v2242 = vmul.f32 %v2241, %v1908
  %v2243 = vmul.f32 %v2242, %v2241
  %v2244 = vmul.f32 0.5, %v2243
  %v2245 = vsub.f32 1.5, %v2244
  %v2246 = vmul.f32 %v2241, %v2245
  %vm2247 = vweird.f32 %v1908
  %vm2248 = vweird.f32 %v2241
  %vm2249 = vmor %vm2247, %vm2248
  %v2250 = vsel %vm2249, %v2241, %v2246
  %v2251 = vrsqrt.pop %v1909
  %v2252 = vmul.f32 %v2251, %v1909
  %v2253 = vmul.f32 %v2252, %v2251
  %v2254 = vmul.f32 0.5, %v2253
  %v2255 = vsub.f32 1.5, %v2254
  %v2256 = vmul.f32 %v2251, %v2255
  %vm2257 = vweird.f32 %v1909
  %vm2258 = vweird.f32 %v2251
  %vm2259 = vmor %vm2257, %vm2258
  %v2260 = vsel %vm2259, %v2251, %v2256
  %v2261 = vrsqrt.pop %v1910
  %v2262 = vmul.f32 %v2261, %v1910
  %v2263 = vmul.f32 %v2262, %v2261
  %v2264 = vmul.f32 0.5, %v2263
  %v2265 = vsub.f32 1.5, %v2264
  %v2266 = vmul.f32 %v2261, %v2265
  %vm2267 = vweird.f32 %v1910
  %vm2268 = vweird.f32 %v2261
  %vm2269 = vmor %vm2267, %vm2268
  %v2270 = vsel %vm2269, %v2261, %v2266
  %v2271 = vrsqrt.pop %v1911
  %v2272 = vmul.f32 %v2271, %v1911
  %v2273 = vmul.f32 %v2272, %v2271
  %v2274 = vmul.f32 0.5, %v2273
  %v2275 = vsub.f32 1.5, %v2274
  %v2276 = vmul.f32 %v2271, %v2275
  %vm2277 = vweird.f32 %v1911
  %vm2278 = vweird.f32 %v2271
  %vm2279 = vmor %vm2277, %vm2278
  %v2280 = vsel %vm2279, %v2271, %v2276
  %v2281 = vrsqrt.pop %v1912
  %v2282 = vmul.f32 %v2281, %v1912
  %v2283 = vmul.f32 %v2282, %v2281
  %v2284 = vmul.f32 0.5, %v2283
  %v2285 = vsub.f32 1.5, %v2284
  %v2286 = vmul.f32 %v2281, %v2285
  %vm2287 = vweird.f32 %v1912
  %vm2288 = vweird.f32 %v2281
  %vm2289 = vmor %vm2287, %vm2288
  %v2290 = vsel %vm2289, %v2281, %v2286
  %v2291 = vrsqrt.pop %v1913
  %v2292 = vmul.f32 %v2291, %v1913
  %v2293 = vmul.f32 %v2292, %v2291
  %v2294 = vmul.f32 0.5, %v2293
  %v2295 = vsub.f32 1.5, %v2294
  %v2296 = vmul.f32 %v2291, %v2295
  %vm2297 = vweird.f32 %v1913
  %vm2298 = vweird.f32 %v2291
  %vm2299 = vmor %vm2297, %vm2298
  %v2300 = vsel %vm2299, %v2291, %v2296
  %v2301 = vrsqrt.pop %v1914
  %v2302 = vmul.f32 %v2301, %v1914
  %v2303 = vmul.f32 %v2302, %v2301
  %v2304 = vmul.f32 0.5, %v2303
  %v2305 = vsub.f32 1.5, %v2304
  %v2306 = vmul.f32 %v2301, %v2305
  %vm2307 = vweird.f32 %v1914
  %vm2308 = vweird.f32 %v2301
  %vm2309 = vmor %vm2307, %vm2308
  %v2310 = vsel %vm2309, %v2301, %v2306
  %v2311 = vrsqrt.pop %v1915
  %v2312 = vmul.f32 %v2311, %v1915
  %v2313 = vmul.f32 %v2312, %v2311
  %v2314 = vmul.f32 0.5, %v2313
  %v2315 = vsub.f32 1.5, %v2314
  %v2316 = vmul.f32 %v2311, %v2315
  %vm2317 = vweird.f32 %v1915
  %vm2318 = vweird.f32 %v2311
  %vm2319 = vmor %vm2317, %vm2318
  %v2320 = vsel %vm2319, %v2311, %v2316
  %v2321 = vrsqrt.pop %v1916
  %v2322 = vmul.f32 %v2321, %v1916
  %v2323 = vmul.f32 %v2322, %v2321
  %v2324 = vmul.f32 0.5, %v2323
  %v2325 = vsub.f32 1.5, %v2324
  %v2326 = vmul.f32 %v2321, %v2325
  %vm2327 = vweird.f32 %v1916
  %vm2328 = vweird.f32 %v2321
  %vm2329 = vmor %vm2327, %vm2328
  %v2330 = vsel %vm2329, %v2321, %v2326
  %v2331 = vrsqrt.pop %v1917
  %v2332 = vmul.f32 %v2331, %v1917
  %v2333 = vmul.f32 %v2332, %v2331
  %v2334 = vmul.f32 0.5, %v2333
  %v2335 = vsub.f32 1.5, %v2334
  %v2336 = vmul.f32 %v2331, %v2335
  %vm2337 = vweird.f32 %v1917
  %vm2338 = vweird.f32 %v2331
  %vm2339 = vmor %vm2337, %vm2338
  %v2340 = vsel %vm2339, %v2331, %v2336
  %v2341 = vrsqrt.pop %v1918
  %v2342 = vmul.f32 %v2341, %v1918
  %v2343 = vmul.f32 %v2342, %v2341
  %v2344 = vmul.f32 0.5, %v2343
  %v2345 = vsub.f32 1.5, %v2344
  %v2346 = vmul.f32 %v2341, %v2345
  %vm2347 = vweird.f32 %v1918
  %vm2348 = vweird.f32 %v2341
  %vm2349 = vmor %vm2347, %vm2348
  %v2350 = vsel %vm2349, %v2341, %v2346
  %v2351 = vrsqrt.pop %v1919
  %v2352 = vmul.f32 %v2351, %v1919
  %v2353 = vmul.f32 %v2352, %v2351
  %v2354 = vmul.f32 0.5, %v2353
  %v2355 = vsub.f32 1.5, %v2354
  %v2356 = vmul.f32 %v2351, %v2355
  %vm2357 = vweird.f32 %v1919
  %vm2358 = vweird.f32 %v2351
  %vm2359 = vmor %vm2357, %vm2358
  %v2360 = vsel %vm2359, %v2351, %v2356
  %v2361 = vrsqrt.pop %v1920
  %v2362 = vmul.f32 %v2361, %v1920
  %v2363 = vmul.f32 %v2362, %v2361
  %v2364 = vmul.f32 0.5, %v2363
  %v2365 = vsub.f32 1.5, %v2364
  %v2366 = vmul.f32 %v2361, %v2365
  %vm2367 = vweird.f32 %v1920
  %vm2368 = vweird.f32 %v2361
  %vm2369 = vmor %vm2367, %vm2368
  %v2370 = vsel %vm2369, %v2361, %v2366
  %v2371 = vrsqrt.pop %v1921
  %v2372 = vmul.f32 %v2371, %v1921
  %v2373 = vmul.f32 %v2372, %v2371
  %v2374 = vmul.f32 0.5, %v2373
  %v2375 = vsub.f32 1.5, %v2374
  %v2376 = vmul.f32 %v2371, %v2375
  %vm2377 = vweird.f32 %v1921
  %vm2378 = vweird.f32 %v2371
  %vm2379 = vmor %vm2377, %vm2378
  %v2380 = vsel %vm2379, %v2371, %v2376
  %v2381 = vrsqrt.pop %v1922
  %v2382 = vmul.f32 %v2381, %v1922
  %v2383 = vmul.f32 %v2382, %v2381
  %v2384 = vmul.f32 0.5, %v2383
  %v2385 = vsub.f32 1.5, %v2384
  %v2386 = vmul.f32 %v2381, %v2385
  %vm2387 = vweird.f32 %v1922
  %vm2388 = vweird.f32 %v2381
  %vm2389 = vmor %vm2387, %vm2388
  %v2390 = vsel %vm2389, %v2381, %v2386
  %v2391 = vrsqrt.pop %v1923
  %v2392 = vmul.f32 %v2391, %v1923
  %v2393 = vmul.f32 %v2392, %v2391
  %v2394 = vmul.f32 0.5, %v2393
  %v2395 = vsub.f32 1.5, %v2394
  %v2396 = vmul.f32 %v2391, %v2395
  %vm2397 = vweird.f32 %v1923
  %vm2398 = vweird.f32 %v2391
  %vm2399 = vmor %vm2397, %vm2398
  %v2400 = vsel %vm2399, %v2391, %v2396
  %v2401 = vrsqrt.pop %v1924
  %v2402 = vmul.f32 %v2401, %v1924
  %v2403 = vmul.f32 %v2402, %v2401
  %v2404 = vmul.f32 0.5, %v2403
  %v2405 = vsub.f32 1.5, %v2404
  %v2406 = vmul.f32 %v2401, %v2405
  %vm2407 = vweird.f32 %v1924
  %vm2408 = vweird.f32 %v2401
  %vm2409 = vmor %vm2407, %vm2408
  %v2410 = vsel %vm2409, %v2401, %v2406
  %v2411 = vrsqrt.pop %v1925
  %v2412 = vmul.f32 %v2411, %v1925
  %v2413 = vmul.f32 %v2412, %v2411
  %v2414 = vmul.f32 0.5, %v2413
  %v2415 = vsub.f32 1.5, %v2414
  %v2416 = vmul.f32 %v2411, %v2415
  %vm2417 = vweird.f32 %v1925
  %vm2418 = vweird.f32 %v2411
  %vm2419 = vmor %vm2417, %vm2418
  %v2420 = vsel %vm2419, %v2411, %v2416
  %v2421 = vrsqrt.pop %v1926
  %v2422 = vmul.f32 %v2421, %v1926
  %v2423 = vmul.f32 %v2422, %v2421
  %v2424 = vmul.f32 0.5, %v2423
  %v2425 = vsub.f32 1.5, %v2424
  %v2426 = vmul.f32 %v2421, %v2425
  %vm2427 = vweird.f32 %v1926
  %vm2428 = vweird.f32 %v2421
  %vm2429 = vmor %vm2427, %vm2428
  %v2430 = vsel %vm2429, %v2421, %v2426
  %v2431 = vrsqrt.pop %v1927
  %v2432 = vmul.f32 %v2431, %v1927
  %v2433 = vmul.f32 %v2432, %v2431
  %v2434 = vmul.f32 0.5, %v2433
  %v2435 = vsub.f32 1.5, %v2434
  %v2436 = vmul.f32 %v2431, %v2435
  %vm2437 = vweird.f32 %v1927
  %vm2438 = vweird.f32 %v2431
  %vm2439 = vmor %vm2437, %vm2438
  %v2440 = vsel %vm2439, %v2431, %v2436
  %v2441 = vrsqrt.pop %v1928
  %v2442 = vmul.f32 %v2441, %v1928
  %v2443 = vmul.f32 %v2442, %v2441
  %v2444 = vmul.f32 0.5, %v2443
  %v2445 = vsub.f32 1.5, %v2444
  %v2446 = vmul.f32 %v2441, %v2445
  %vm2447 = vweird.f32 %v1928
  %vm2448 = vweird.f32 %v2441
  %vm2449 = vmor %vm2447, %vm2448
  %v2450 = vsel %vm2449, %v2441, %v2446
  %v2451 = vrsqrt.pop %v1929
  %v2452 = vmul.f32 %v2451, %v1929
  %v2453 = vmul.f32 %v2452, %v2451
  %v2454 = vmul.f32 0.5, %v2453
  %v2455 = vsub.f32 1.5, %v2454
  %v2456 = vmul.f32 %v2451, %v2455
  %vm2457 = vweird.f32 %v1929
  %vm2458 = vweird.f32 %v2451
  %vm2459 = vmor %vm2457, %vm2458
  %v2460 = vsel %vm2459, %v2451, %v2456
  %v2461 = vrsqrt.pop %v1930
  %v2462 = vmul.f32 %v2461, %v1930
  %v2463 = vmul.f32 %v2462, %v2461
  %v2464 = vmul.f32 0.5, %v2463
  %v2465 = vsub.f32 1.5, %v2464
  %v2466 = vmul.f32 %v2461, %v2465
  %vm2467 = vweird.f32 %v1930
  %vm2468 = vweird.f32 %v2461
  %vm2469 = vmor %vm2467, %vm2468
  %v2470 = vsel %vm2469, %v2461, %v2466
  %v2471 = vrsqrt.pop %v1931
  %v2472 = vmul.f32 %v2471, %v1931
  %v2473 = vmul.f32 %v2472, %v2471
  %v2474 = vmul.f32 0.5, %v2473
  %v2475 = vsub.f32 1.5, %v2474
  %v2476 = vmul.f32 %v2471, %v2475
  %vm2477 = vweird.f32 %v1931
  %vm2478 = vweird.f32 %v2471
  %vm2479 = vmor %vm2477, %vm2478
  %v2480 = vsel %vm2479, %v2471, %v2476
  %v2481 = vrsqrt.pop %v1932
  %v2482 = vmul.f32 %v2481, %v1932
  %v2483 = vmul.f32 %v2482, %v2481
  %v2484 = vmul.f32 0.5, %v2483
  %v2485 = vsub.f32 1.5, %v2484
  %v2486 = vmul.f32 %v2481, %v2485
  %vm2487 = vweird.f32 %v1932
  %vm2488 = vweird.f32 %v2481
  %vm2489 = vmor %vm2487, %vm2488
  %v2490 = vsel %vm2489, %v2481, %v2486
  %v2491 = vrsqrt.pop %v1933
  %v2492 = vmul.f32 %v2491, %v1933
  %v2493 = vmul.f32 %v2492, %v2491
  %v2494 = vmul.f32 0.5, %v2493
  %v2495 = vsub.f32 1.5, %v2494
  %v2496 = vmul.f32 %v2491, %v2495
  %vm2497 = vweird.f32 %v1933
  %vm2498 = vweird.f32 %v2491
  %vm2499 = vmor %vm2497, %vm2498
  %v2500 = vsel %vm2499, %v2491, %v2496
  %v2501 = vrsqrt.pop %v1934
  %v2502 = vmul.f32 %v2501, %v1934
  %v2503 = vmul.f32 %v2502, %v2501
  %v2504 = vmul.f32 0.5, %v2503
  %v2505 = vsub.f32 1.5, %v2504
  %v2506 = vmul.f32 %v2501, %v2505
  %vm2507 = vweird.f32 %v1934
  %vm2508 = vweird.f32 %v2501
  %vm2509 = vmor %vm2507, %vm2508
  %v2510 = vsel %vm2509, %v2501, %v2506
  %v2511 = vrsqrt.pop %v1935
  %v2512 = vmul.f32 %v2511, %v1935
  %v2513 = vmul.f32 %v2512, %v2511
  %v2514 = vmul.f32 0.5, %v2513
  %v2515 = vsub.f32 1.5, %v2514
  %v2516 = vmul.f32 %v2511, %v2515
  %vm2517 = vweird.f32 %v1935
  %vm2518 = vweird.f32 %v2511
  %vm2519 = vmor %vm2517, %vm2518
  %v2520 = vsel %vm2519, %v2511, %v2516
  %v2521 = vrsqrt.pop %v1936
  %v2522 = vmul.f32 %v2521, %v1936
  %v2523 = vmul.f32 %v2522, %v2521
  %v2524 = vmul.f32 0.5, %v2523
  %v2525 = vsub.f32 1.5, %v2524
  %v2526 = vmul.f32 %v2521, %v2525
  %vm2527 = vweird.f32 %v1936
  %vm2528 = vweird.f32 %v2521
  %vm2529 = vmor %vm2527, %vm2528
  %v2530 = vsel %vm2529, %v2521, %v2526
  %v2531 = vrsqrt.pop %v1937
  %v2532 = vmul.f32 %v2531, %v1937
  %v2533 = vmul.f32 %v2532, %v2531
  %v2534 = vmul.f32 0.5, %v2533
  %v2535 = vsub.f32 1.5, %v2534
  %v2536 = vmul.f32 %v2531, %v2535
  %vm2537 = vweird.f32 %v1937
  %vm2538 = vweird.f32 %v2531
  %vm2539 = vmor %vm2537, %vm2538
  %v2540 = vsel %vm2539, %v2531, %v2536
  %v2541 = vrsqrt.pop %v1938
  %v2542 = vmul.f32 %v2541, %v1938
  %v2543 = vmul.f32 %v2542, %v2541
  %v2544 = vmul.f32 0.5, %v2543
  %v2545 = vsub.f32 1.5, %v2544
  %v2546 = vmul.f32 %v2541, %v2545
  %vm2547 = vweird.f32 %v1938
  %vm2548 = vweird.f32 %v2541
  %vm2549 = vmor %vm2547, %vm2548
  %v2550 = vsel %vm2549, %v2541, %v2546
  %v2551 = vrsqrt.pop %v1939
  %v2552 = vmul.f32 %v2551, %v1939
  %v2553 = vmul.f32 %v2552, %v2551
  %v2554 = vmul.f32 0.5, %v2553
  %v2555 = vsub.f32 1.5, %v2554
  %v2556 = vmul.f32 %v2551, %v2555
  %vm2557 = vweird.f32 %v1939
  %vm2558 = vweird.f32 %v2551
  %vm2559 = vmor %vm2557, %vm2558
  %v2560 = vsel %vm2559, %v2551, %v2556
  %v2561 = vrsqrt.pop %v1940
  %v2562 = vmul.f32 %v2561, %v1940
  %v2563 = vmul.f32 %v2562, %v2561
  %v2564 = vmul.f32 0.5, %v2563
  %v2565 = vsub.f32 1.5, %v2564
  %v2566 = vmul.f32 %v2561, %v2565
  %vm2567 = vweird.f32 %v1940
  %vm2568 = vweird.f32 %v2561
  %vm2569 = vmor %vm2567, %vm2568
  %v2570 = vsel %vm2569, %v2561, %v2566
  %v2571 = vrsqrt.pop %v1941
  %v2572 = vmul.f32 %v2571, %v1941
  %v2573 = vmul.f32 %v2572, %v2571
  %v2574 = vmul.f32 0.5, %v2573
  %v2575 = vsub.f32 1.5, %v2574
  %v2576 = vmul.f32 %v2571, %v2575
  %vm2577 = vweird.f32 %v1941
  %vm2578 = vweird.f32 %v2571
  %vm2579 = vmor %vm2577, %vm2578
  %v2580 = vsel %vm2579, %v2571, %v2576
  %v2581 = vrsqrt.pop %v1942
  %v2582 = vmul.f32 %v2581, %v1942
  %v2583 = vmul.f32 %v2582, %v2581
  %v2584 = vmul.f32 0.5, %v2583
  %v2585 = vsub.f32 1.5, %v2584
  %v2586 = vmul.f32 %v2581, %v2585
  %vm2587 = vweird.f32 %v1942
  %vm2588 = vweird.f32 %v2581
  %vm2589 = vmor %vm2587, %vm2588
  %v2590 = vsel %vm2589, %v2581, %v2586
  %v2591 = vrsqrt.pop %v1943
  %v2592 = vmul.f32 %v2591, %v1943
  %v2593 = vmul.f32 %v2592, %v2591
  %v2594 = vmul.f32 0.5, %v2593
  %v2595 = vsub.f32 1.5, %v2594
  %v2596 = vmul.f32 %v2591, %v2595
  %vm2597 = vweird.f32 %v1943
  %vm2598 = vweird.f32 %v2591
  %vm2599 = vmor %vm2597, %vm2598
  %v2600 = vsel %vm2599, %v2591, %v2596
  %v2601 = vrsqrt.pop %v1944
  %v2602 = vmul.f32 %v2601, %v1944
  %v2603 = vmul.f32 %v2602, %v2601
  %v2604 = vmul.f32 0.5, %v2603
  %v2605 = vsub.f32 1.5, %v2604
  %v2606 = vmul.f32 %v2601, %v2605
  %vm2607 = vweird.f32 %v1944
  %vm2608 = vweird.f32 %v2601
  %vm2609 = vmor %vm2607, %vm2608
  %v2610 = vsel %vm2609, %v2601, %v2606
  %v2611 = vrsqrt.pop %v1945
  %v2612 = vmul.f32 %v2611, %v1945
  %v2613 = vmul.f32 %v2612, %v2611
  %v2614 = vmul.f32 0.5, %v2613
  %v2615 = vsub.f32 1.5, %v2614
  %v2616 = vmul.f32 %v2611, %v2615
  %vm2617 = vweird.f32 %v1945
  %vm2618 = vweird.f32 %v2611
  %vm2619 = vmor %vm2617, %vm2618
  %v2620 = vsel %vm2619, %v2611, %v2616
  %v2621 = vrsqrt.pop %v1946
  %v2622 = vmul.f32 %v2621, %v1946
  %v2623 = vmul.f32 %v2622, %v2621
  %v2624 = vmul.f32 0.5, %v2623
  %v2625 = vsub.f32 1.5, %v2624
  %v2626 = vmul.f32 %v2621, %v2625
  %vm2627 = vweird.f32 %v1946
  %vm2628 = vweird.f32 %v2621
  %vm2629 = vmor %vm2627, %vm2628
  %v2630 = vsel %vm2629, %v2621, %v2626
  %v2631 = vrsqrt.pop %v1947
  %v2632 = vmul.f32 %v2631, %v1947
  %v2633 = vmul.f32 %v2632, %v2631
  %v2634 = vmul.f32 0.5, %v2633
  %v2635 = vsub.f32 1.5, %v2634
  %v2636 = vmul.f32 %v2631, %v2635
  %vm2637 = vweird.f32 %v1947
  %vm2638 = vweird.f32 %v2631
  %vm2639 = vmor %vm2637, %vm2638
  %v2640 = vsel %vm2639, %v2631, %v2636
  %v2641 = vrsqrt.pop %v1948
  %v2642 = vmul.f32 %v2641, %v1948
  %v2643 = vmul.f32 %v2642, %v2641
  %v2644 = vmul.f32 0.5, %v2643
  %v2645 = vsub.f32 1.5, %v2644
  %v2646 = vmul.f32 %v2641, %v2645
  %vm2647 = vweird.f32 %v1948
  %vm2648 = vweird.f32 %v2641
  %vm2649 = vmor %vm2647, %vm2648
  %v2650 = vsel %vm2649, %v2641, %v2646
  %v2651 = vrsqrt.pop %v1949
  %v2652 = vmul.f32 %v2651, %v1949
  %v2653 = vmul.f32 %v2652, %v2651
  %v2654 = vmul.f32 0.5, %v2653
  %v2655 = vsub.f32 1.5, %v2654
  %v2656 = vmul.f32 %v2651, %v2655
  %vm2657 = vweird.f32 %v1949
  %vm2658 = vweird.f32 %v2651
  %vm2659 = vmor %vm2657, %vm2658
  %v2660 = vsel %vm2659, %v2651, %v2656
  %v2661 = vrsqrt.pop %v1950
  %v2662 = vmul.f32 %v2661, %v1950
  %v2663 = vmul.f32 %v2662, %v2661
  %v2664 = vmul.f32 0.5, %v2663
  %v2665 = vsub.f32 1.5, %v2664
  %v2666 = vmul.f32 %v2661, %v2665
  %vm2667 = vweird.f32 %v1950
  %vm2668 = vweird.f32 %v2661
  %vm2669 = vmor %vm2667, %vm2668
  %v2670 = vsel %vm2669, %v2661, %v2666
  %v2671 = vrsqrt.pop %v1951
  %v2672 = vmul.f32 %v2671, %v1951
  %v2673 = vmul.f32 %v2672, %v2671
  %v2674 = vmul.f32 0.5, %v2673
  %v2675 = vsub.f32 1.5, %v2674
  %v2676 = vmul.f32 %v2671, %v2675
  %vm2677 = vweird.f32 %v1951
  %vm2678 = vweird.f32 %v2671
  %vm2679 = vmor %vm2677, %vm2678
  %v2680 = vsel %vm2679, %v2671, %v2676
  %v2681 = vrsqrt.pop %v1952
  %v2682 = vmul.f32 %v2681, %v1952
  %v2683 = vmul.f32 %v2682, %v2681
  %v2684 = vmul.f32 0.5, %v2683
  %v2685 = vsub.f32 1.5, %v2684
  %v2686 = vmul.f32 %v2681, %v2685
  %vm2687 = vweird.f32 %v1952
  %vm2688 = vweird.f32 %v2681
  %vm2689 = vmor %vm2687, %vm2688
  %v2690 = vsel %vm2689, %v2681, %v2686
  %v2691 = vrsqrt.pop %v1953
  %v2692 = vmul.f32 %v2691, %v1953
  %v2693 = vmul.f32 %v2692, %v2691
  %v2694 = vmul.f32 0.5, %v2693
  %v2695 = vsub.f32 1.5, %v2694
  %v2696 = vmul.f32 %v2691, %v2695
  %vm2697 = vweird.f32 %v1953
  %vm2698 = vweird.f32 %v2691
  %vm2699 = vmor %vm2697, %vm2698
  %v2700 = vsel %vm2699, %v2691, %v2696
  %v2701 = vrsqrt.pop %v1954
  %v2702 = vmul.f32 %v2701, %v1954
  %v2703 = vmul.f32 %v2702, %v2701
  %v2704 = vmul.f32 0.5, %v2703
  %v2705 = vsub.f32 1.5, %v2704
  %v2706 = vmul.f32 %v2701, %v2705
  %vm2707 = vweird.f32 %v1954
  %vm2708 = vweird.f32 %v2701
  %vm2709 = vmor %vm2707, %vm2708
  %v2710 = vsel %vm2709, %v2701, %v2706
  %v2711 = vrsqrt.pop %v1955
  %v2712 = vmul.f32 %v2711, %v1955
  %v2713 = vmul.f32 %v2712, %v2711
  %v2714 = vmul.f32 0.5, %v2713
  %v2715 = vsub.f32 1.5, %v2714
  %v2716 = vmul.f32 %v2711, %v2715
  %vm2717 = vweird.f32 %v1955
  %vm2718 = vweird.f32 %v2711
  %vm2719 = vmor %vm2717, %vm2718
  %v2720 = vsel %vm2719, %v2711, %v2716
  %v2721 = vrsqrt.pop %v1956
  %v2722 = vmul.f32 %v2721, %v1956
  %v2723 = vmul.f32 %v2722, %v2721
  %v2724 = vmul.f32 0.5, %v2723
  %v2725 = vsub.f32 1.5, %v2724
  %v2726 = vmul.f32 %v2721, %v2725
  %vm2727 = vweird.f32 %v1956
  %vm2728 = vweird.f32 %v2721
  %vm2729 = vmor %vm2727, %vm2728
  %v2730 = vsel %vm2729, %v2721, %v2726
  %v2731 = vrsqrt.pop %v1957
  %v2732 = vmul.f32 %v2731, %v1957
  %v2733 = vmul.f32 %v2732, %v2731
  %v2734 = vmul.f32 0.5, %v2733
  %v2735 = vsub.f32 1.5, %v2734
  %v2736 = vmul.f32 %v2731, %v2735
  %vm2737 = vweird.f32 %v1957
  %vm2738 = vweird.f32 %v2731
  %vm2739 = vmor %vm2737, %vm2738
  %v2740 = vsel %vm2739, %v2731, %v2736
  %v2741 = vrsqrt.pop %v1958
  %v2742 = vmul.f32 %v2741, %v1958
  %v2743 = vmul.f32 %v2742, %v2741
  %v2744 = vmul.f32 0.5, %v2743
  %v2745 = vsub.f32 1.5, %v2744
  %v2746 = vmul.f32 %v2741, %v2745
  %vm2747 = vweird.f32 %v1958
  %vm2748 = vweird.f32 %v2741
  %vm2749 = vmor %vm2747, %vm2748
  %v2750 = vsel %vm2749, %v2741, %v2746
  %v2751 = vrsqrt.pop %v1959
  %v2752 = vmul.f32 %v2751, %v1959
  %v2753 = vmul.f32 %v2752, %v2751
  %v2754 = vmul.f32 0.5, %v2753
  %v2755 = vsub.f32 1.5, %v2754
  %v2756 = vmul.f32 %v2751, %v2755
  %vm2757 = vweird.f32 %v1959
  %vm2758 = vweird.f32 %v2751
  %vm2759 = vmor %vm2757, %vm2758
  %v2760 = vsel %vm2759, %v2751, %v2756
  %v2761 = vrsqrt.pop %v1960
  %v2762 = vmul.f32 %v2761, %v1960
  %v2763 = vmul.f32 %v2762, %v2761
  %v2764 = vmul.f32 0.5, %v2763
  %v2765 = vsub.f32 1.5, %v2764
  %v2766 = vmul.f32 %v2761, %v2765
  %vm2767 = vweird.f32 %v1960
  %vm2768 = vweird.f32 %v2761
  %vm2769 = vmor %vm2767, %vm2768
  %v2770 = vsel %vm2769, %v2761, %v2766
  %v2771 = vrsqrt.pop %v1961
  %v2772 = vmul.f32 %v2771, %v1961
  %v2773 = vmul.f32 %v2772, %v2771
  %v2774 = vmul.f32 0.5, %v2773
  %v2775 = vsub.f32 1.5, %v2774
  %v2776 = vmul.f32 %v2771, %v2775
  %vm2777 = vweird.f32 %v1961
  %vm2778 = vweird.f32 %v2771
  %vm2779 = vmor %vm2777, %vm2778
  %v2780 = vsel %vm2779, %v2771, %v2776
  %v2781 = vrsqrt.pop %v1962
  %v2782 = vmul.f32 %v2781, %v1962
  %v2783 = vmul.f32 %v2782, %v2781
  %v2784 = vmul.f32 0.5, %v2783
  %v2785 = vsub.f32 1.5, %v2784
  %v2786 = vmul.f32 %v2781, %v2785
  %vm2787 = vweird.f32 %v1962
  %vm2788 = vweird.f32 %v2781
  %vm2789 = vmor %vm2787, %vm2788
  %v2790 = vsel %vm2789, %v2781, %v2786
  %v2791 = vrsqrt.pop %v1963
  %v2792 = vmul.f32 %v2791, %v1963
  %v2793 = vmul.f32 %v2792, %v2791
  %v2794 = vmul.f32 0.5, %v2793
  %v2795 = vsub.f32 1.5, %v2794
  %v2796 = vmul.f32 %v2791, %v2795
  %vm2797 = vweird.f32 %v1963
  %vm2798 = vweird.f32 %v2791
  %vm2799 = vmor %vm2797, %vm2798
  %v2800 = vsel %vm2799, %v2791, %v2796
  %v2801 = vrsqrt.pop %v1964
  %v2802 = vmul.f32 %v2801, %v1964
  %v2803 = vmul.f32 %v2802, %v2801
  %v2804 = vmul.f32 0.5, %v2803
  %v2805 = vsub.f32 1.5, %v2804
  %v2806 = vmul.f32 %v2801, %v2805
  %vm2807 = vweird.f32 %v1964
  %vm2808 = vweird.f32 %v2801
  %vm2809 = vmor %vm2807, %vm2808
  %v2810 = vsel %vm2809, %v2801, %v2806
  %v2811 = vrsqrt.pop %v1965
  %v2812 = vmul.f32 %v2811, %v1965
  %v2813 = vmul.f32 %v2812, %v2811
  %v2814 = vmul.f32 0.5, %v2813
  %v2815 = vsub.f32 1.5, %v2814
  %v2816 = vmul.f32 %v2811, %v2815
  %vm2817 = vweird.f32 %v1965
  %vm2818 = vweird.f32 %v2811
  %vm2819 = vmor %vm2817, %vm2818
  %v2820 = vsel %vm2819, %v2811, %v2816
  %v2821 = vrsqrt.pop %v1966
  %v2822 = vmul.f32 %v2821, %v1966
  %v2823 = vmul.f32 %v2822, %v2821
  %v2824 = vmul.f32 0.5, %v2823
  %v2825 = vsub.f32 1.5, %v2824
  %v2826 = vmul.f32 %v2821, %v2825
  %vm2827 = vweird.f32 %v1966
  %vm2828 = vweird.f32 %v2821
  %vm2829 = vmor %vm2827, %vm2828
  %v2830 = vsel %vm2829, %v2821, %v2826
  %v2831 = vrsqrt.pop %v1967
  %v2832 = vmul.f32 %v2831, %v1967
  %v2833 = vmul.f32 %v2832, %v2831
  %v2834 = vmul.f32 0.5, %v2833
  %v2835 = vsub.f32 1.5, %v2834
  %v2836 = vmul.f32 %v2831, %v2835
  %vm2837 = vweird.f32 %v1967
  %vm2838 = vweird.f32 %v2831
  %vm2839 = vmor %vm2837, %vm2838
  %v2840 = vsel %vm2839, %v2831, %v2836
  %v2841 = vrsqrt.pop %v1968
  %v2842 = vmul.f32 %v2841, %v1968
  %v2843 = vmul.f32 %v2842, %v2841
  %v2844 = vmul.f32 0.5, %v2843
  %v2845 = vsub.f32 1.5, %v2844
  %v2846 = vmul.f32 %v2841, %v2845
  %vm2847 = vweird.f32 %v1968
  %vm2848 = vweird.f32 %v2841
  %vm2849 = vmor %vm2847, %vm2848
  %v2850 = vsel %vm2849, %v2841, %v2846
  %v2851 = vrsqrt.pop %v1969
  %v2852 = vmul.f32 %v2851, %v1969
  %v2853 = vmul.f32 %v2852, %v2851
  %v2854 = vmul.f32 0.5, %v2853
  %v2855 = vsub.f32 1.5, %v2854
  %v2856 = vmul.f32 %v2851, %v2855
  %vm2857 = vweird.f32 %v1969
  %vm2858 = vweird.f32 %v2851
  %vm2859 = vmor %vm2857, %vm2858
  %v2860 = vsel %vm2859, %v2851, %v2856
  %v2861 = vrsqrt.pop %v1970
  %v2862 = vmul.f32 %v2861, %v1970
  %v2863 = vmul.f32 %v2862, %v2861
  %v2864 = vmul.f32 0.5, %v2863
  %v2865 = vsub.f32 1.5, %v2864
  %v2866 = vmul.f32 %v2861, %v2865
  %vm2867 = vweird.f32 %v1970
  %vm2868 = vweird.f32 %v2861
  %vm2869 = vmor %vm2867, %vm2868
  %v2870 = vsel %vm2869, %v2861, %v2866
  %v2871 = vrsqrt.pop %v1971
  %v2872 = vmul.f32 %v2871, %v1971
  %v2873 = vmul.f32 %v2872, %v2871
  %v2874 = vmul.f32 0.5, %v2873
  %v2875 = vsub.f32 1.5, %v2874
  %v2876 = vmul.f32 %v2871, %v2875
  %vm2877 = vweird.f32 %v1971
  %vm2878 = vweird.f32 %v2871
  %vm2879 = vmor %vm2877, %vm2878
  %v2880 = vsel %vm2879, %v2871, %v2876
  %v2881 = vrsqrt.pop %v1972
  %v2882 = vmul.f32 %v2881, %v1972
  %v2883 = vmul.f32 %v2882, %v2881
  %v2884 = vmul.f32 0.5, %v2883
  %v2885 = vsub.f32 1.5, %v2884
  %v2886 = vmul.f32 %v2881, %v2885
  %vm2887 = vweird.f32 %v1972
  %vm2888 = vweird.f32 %v2881
  %vm2889 = vmor %vm2887, %vm2888
  %v2890 = vsel %vm2889, %v2881, %v2886
  %v2891 = vrsqrt.pop %v1973
  %v2892 = vmul.f32 %v2891, %v1973
  %v2893 = vmul.f32 %v2892, %v2891
  %v2894 = vmul.f32 0.5, %v2893
  %v2895 = vsub.f32 1.5, %v2894
  %v2896 = vmul.f32 %v2891, %v2895
  %vm2897 = vweird.f32 %v1973
  %vm2898 = vweird.f32 %v2891
  %vm2899 = vmor %vm2897, %vm2898
  %v2900 = vsel %vm2899, %v2891, %v2896
  %v2901 = vrsqrt.pop %v1974
  %v2902 = vmul.f32 %v2901, %v1974
  %v2903 = vmul.f32 %v2902, %v2901
  %v2904 = vmul.f32 0.5, %v2903
  %v2905 = vsub.f32 1.5, %v2904
  %v2906 = vmul.f32 %v2901, %v2905
  %vm2907 = vweird.f32 %v1974
  %vm2908 = vweird.f32 %v2901
  %vm2909 = vmor %vm2907, %vm2908
  %v2910 = vsel %vm2909, %v2901, %v2906
  %v2911 = vrsqrt.pop %v1975
  %v2912 = vmul.f32 %v2911, %v1975
  %v2913 = vmul.f32 %v2912, %v2911
  %v2914 = vmul.f32 0.5, %v2913
  %v2915 = vsub.f32 1.5, %v2914
  %v2916 = vmul.f32 %v2911, %v2915
  %vm2917 = vweird.f32 %v1975
  %vm2918 = vweird.f32 %v2911
  %vm2919 = vmor %vm2917, %vm2918
  %v2920 = vsel %vm2919, %v2911, %v2916
  %v2921 = vrsqrt.pop %v1976
  %v2922 = vmul.f32 %v2921, %v1976
  %v2923 = vmul.f32 %v2922, %v2921
  %v2924 = vmul.f32 0.5, %v2923
  %v2925 = vsub.f32 1.5, %v2924
  %v2926 = vmul.f32 %v2921, %v2925
  %vm2927 = vweird.f32 %v1976
  %vm2928 = vweird.f32 %v2921
  %vm2929 = vmor %vm2927, %vm2928
  %v2930 = vsel %vm2929, %v2921, %v2926
  %v2931 = vrsqrt.pop %v1977
  %v2932 = vmul.f32 %v2931, %v1977
  %v2933 = vmul.f32 %v2932, %v2931
  %v2934 = vmul.f32 0.5, %v2933
  %v2935 = vsub.f32 1.5, %v2934
  %v2936 = vmul.f32 %v2931, %v2935
  %vm2937 = vweird.f32 %v1977
  %vm2938 = vweird.f32 %v2931
  %vm2939 = vmor %vm2937, %vm2938
  %v2940 = vsel %vm2939, %v2931, %v2936
  %v2941 = vrsqrt.pop %v1978
  %v2942 = vmul.f32 %v2941, %v1978
  %v2943 = vmul.f32 %v2942, %v2941
  %v2944 = vmul.f32 0.5, %v2943
  %v2945 = vsub.f32 1.5, %v2944
  %v2946 = vmul.f32 %v2941, %v2945
  %vm2947 = vweird.f32 %v1978
  %vm2948 = vweird.f32 %v2941
  %vm2949 = vmor %vm2947, %vm2948
  %v2950 = vsel %vm2949, %v2941, %v2946
  %v2951 = vrsqrt.pop %v1979
  %v2952 = vmul.f32 %v2951, %v1979
  %v2953 = vmul.f32 %v2952, %v2951
  %v2954 = vmul.f32 0.5, %v2953
  %v2955 = vsub.f32 1.5, %v2954
  %v2956 = vmul.f32 %v2951, %v2955
  %vm2957 = vweird.f32 %v1979
  %vm2958 = vweird.f32 %v2951
  %vm2959 = vmor %vm2957, %vm2958
  %v2960 = vsel %vm2959, %v2951, %v2956
  %v2961 = vrsqrt.pop %v1980
  %v2962 = vmul.f32 %v2961, %v1980
  %v2963 = vmul.f32 %v2962, %v2961
  %v2964 = vmul.f32 0.5, %v2963
  %v2965 = vsub.f32 1.5, %v2964
  %v2966 = vmul.f32 %v2961, %v2965
  %vm2967 = vweird.f32 %v1980
  %vm2968 = vweird.f32 %v2961
  %vm2969 = vmor %vm2967, %vm2968
  %v2970 = vsel %vm2969, %v2961, %v2966
  %v2971 = vrsqrt.pop %v1981
  %v2972 = vmul.f32 %v2971, %v1981
  %v2973 = vmul.f32 %v2972, %v2971
  %v2974 = vmul.f32 0.5, %v2973
  %v2975 = vsub.f32 1.5, %v2974
  %v2976 = vmul.f32 %v2971, %v2975
  %vm2977 = vweird.f32 %v1981
  %vm2978 = vweird.f32 %v2971
  %vm2979 = vmor %vm2977, %vm2978
  %v2980 = vsel %vm2979, %v2971, %v2976
  %v2981 = vrsqrt.pop %v1982
  %v2982 = vmul.f32 %v2981, %v1982
  %v2983 = vmul.f32 %v2982, %v2981
  %v2984 = vmul.f32 0.5, %v2983
  %v2985 = vsub.f32 1.5, %v2984
  %v2986 = vmul.f32 %v2981, %v2985
  %vm2987 = vweird.f32 %v1982
  %vm2988 = vweird.f32 %v2981
  %vm2989 = vmor %vm2987, %vm2988
  %v2990 = vsel %vm2989, %v2981, %v2986
  %v2991 = vrsqrt.pop %v1983
  %v2992 = vmul.f32 %v2991, %v1983
  %v2993 = vmul.f32 %v2992, %v2991
  %v2994 = vmul.f32 0.5, %v2993
  %v2995 = vsub.f32 1.5, %v2994
  %v2996 = vmul.f32 %v2991, %v2995
  %vm2997 = vweird.f32 %v1983
  %vm2998 = vweird.f32 %v2991
  %vm2999 = vmor %vm2997, %vm2998
  %v3000 = vsel %vm2999, %v2991, %v2996
  %v3001 = vrsqrt.pop %v1984
  %v3002 = vmul.f32 %v3001, %v1984
  %v3003 = vmul.f32 %v3002, %v3001
  %v3004 = vmul.f32 0.5, %v3003
  %v3005 = vsub.f32 1.5, %v3004
  %v3006 = vmul.f32 %v3001, %v3005
  %vm3007 = vweird.f32 %v1984
  %vm3008 = vweird.f32 %v3001
  %vm3009 = vmor %vm3007, %vm3008
  %v3010 = vsel %vm3009, %v3001, %v3006
  %v3011 = vrsqrt.pop %v1985
  %v3012 = vmul.f32 %v3011, %v1985
  %v3013 = vmul.f32 %v3012, %v3011
  %v3014 = vmul.f32 0.5, %v3013
  %v3015 = vsub.f32 1.5, %v3014
  %v3016 = vmul.f32 %v3011, %v3015
  %vm3017 = vweird.f32 %v1985
  %vm3018 = vweird.f32 %v3011
  %vm3019 = vmor %vm3017, %vm3018
  %v3020 = vsel %vm3019, %v3011, %v3016
  %v3021 = vrsqrt.pop %v1986
  %v3022 = vmul.f32 %v3021, %v1986
  %v3023 = vmul.f32 %v3022, %v3021
  %v3024 = vmul.f32 0.5, %v3023
  %v3025 = vsub.f32 1.5, %v3024
  %v3026 = vmul.f32 %v3021, %v3025
  %vm3027 = vweird.f32 %v1986
  %vm3028 = vweird.f32 %v3021
  %vm3029 = vmor %vm3027, %vm3028
  %v3030 = vsel %vm3029, %v3021, %v3026
  %v3031 = vrsqrt.pop %v1987
  %v3032 = vmul.f32 %v3031, %v1987
  %v3033 = vmul.f32 %v3032, %v3031
  %v3034 = vmul.f32 0.5, %v3033
  %v3035 = vsub.f32 1.5, %v3034
  %v3036 = vmul.f32 %v3031, %v3035
  %vm3037 = vweird.f32 %v1987
  %vm3038 = vweird.f32 %v3031
  %vm3039 = vmor %vm3037, %vm3038
  %v3040 = vsel %vm3039, %v3031, %v3036
  %v3041 = vrsqrt.pop %v1988
  %v3042 = vmul.f32 %v3041, %v1988
  %v3043 = vmul.f32 %v3042, %v3041
  %v3044 = vmul.f32 0.5, %v3043
  %v3045 = vsub.f32 1.5, %v3044
  %v3046 = vmul.f32 %v3041, %v3045
  %vm3047 = vweird.f32 %v1988
  %vm3048 = vweird.f32 %v3041
  %vm3049 = vmor %vm3047, %vm3048
  %v3050 = vsel %vm3049, %v3041, %v3046
  %v3051 = vrsqrt.pop %v1989
  %v3052 = vmul.f32 %v3051, %v1989
  %v3053 = vmul.f32 %v3052, %v3051
  %v3054 = vmul.f32 0.5, %v3053
  %v3055 = vsub.f32 1.5, %v3054
  %v3056 = vmul.f32 %v3051, %v3055
  %vm3057 = vweird.f32 %v1989
  %vm3058 = vweird.f32 %v3051
  %vm3059 = vmor %vm3057, %vm3058
  %v3060 = vsel %vm3059, %v3051, %v3056
  %v3061 = vrsqrt.pop %v1990
  %v3062 = vmul.f32 %v3061, %v1990
  %v3063 = vmul.f32 %v3062, %v3061
  %v3064 = vmul.f32 0.5, %v3063
  %v3065 = vsub.f32 1.5, %v3064
  %v3066 = vmul.f32 %v3061, %v3065
  %vm3067 = vweird.f32 %v1990
  %vm3068 = vweird.f32 %v3061
  %vm3069 = vmor %vm3067, %vm3068
  %v3070 = vsel %vm3069, %v3061, %v3066
  %v3071 = vrsqrt.pop %v1991
  %v3072 = vmul.f32 %v3071, %v1991
  %v3073 = vmul.f32 %v3072, %v3071
  %v3074 = vmul.f32 0.5, %v3073
  %v3075 = vsub.f32 1.5, %v3074
  %v3076 = vmul.f32 %v3071, %v3075
  %vm3077 = vweird.f32 %v1991
  %vm3078 = vweird.f32 %v3071
  %vm3079 = vmor %vm3077, %vm3078
  %v3080 = vsel %vm3079, %v3071, %v3076
  %v3081 = vrsqrt.pop %v1992
  %v3082 = vmul.f32 %v3081, %v1992
  %v3083 = vmul.f32 %v3082, %v3081
  %v3084 = vmul.f32 0.5, %v3083
  %v3085 = vsub.f32 1.5, %v3084
  %v3086 = vmul.f32 %v3081, %v3085
  %vm3087 = vweird.f32 %v1992
  %vm3088 = vweird.f32 %v3081
  %vm3089 = vmor %vm3087, %vm3088
  %v3090 = vsel %vm3089, %v3081, %v3086
  %v3091 = vrsqrt.pop %v1993
  %v3092 = vmul.f32 %v3091, %v1993
  %v3093 = vmul.f32 %v3092, %v3091
  %v3094 = vmul.f32 0.5, %v3093
  %v3095 = vsub.f32 1.5, %v3094
  %v3096 = vmul.f32 %v3091, %v3095
  %vm3097 = vweird.f32 %v1993
  %vm3098 = vweird.f32 %v3091
  %vm3099 = vmor %vm3097, %vm3098
  %v3100 = vsel %vm3099, %v3091, %v3096
  %v3101 = vrsqrt.pop %v1994
  %v3102 = vmul.f32 %v3101, %v1994
  %v3103 = vmul.f32 %v3102, %v3101
  %v3104 = vmul.f32 0.5, %v3103
  %v3105 = vsub.f32 1.5, %v3104
  %v3106 = vmul.f32 %v3101, %v3105
  %vm3107 = vweird.f32 %v1994
  %vm3108 = vweird.f32 %v3101
  %vm3109 = vmor %vm3107, %vm3108
  %v3110 = vsel %vm3109, %v3101, %v3106
  %v3111 = vrsqrt.pop %v1995
  %v3112 = vmul.f32 %v3111, %v1995
  %v3113 = vmul.f32 %v3112, %v3111
  %v3114 = vmul.f32 0.5, %v3113
  %v3115 = vsub.f32 1.5, %v3114
  %v3116 = vmul.f32 %v3111, %v3115
  %vm3117 = vweird.f32 %v1995
  %vm3118 = vweird.f32 %v3111
  %vm3119 = vmor %vm3117, %vm3118
  %v3120 = vsel %vm3119, %v3111, %v3116
  %v3121 = vrsqrt.pop %v1996
  %v3122 = vmul.f32 %v3121, %v1996
  %v3123 = vmul.f32 %v3122, %v3121
  %v3124 = vmul.f32 0.5, %v3123
  %v3125 = vsub.f32 1.5, %v3124
  %v3126 = vmul.f32 %v3121, %v3125
  %vm3127 = vweird.f32 %v1996
  %vm3128 = vweird.f32 %v3121
  %vm3129 = vmor %vm3127, %vm3128
  %v3130 = vsel %vm3129, %v3121, %v3126
  %v3131 = vrsqrt.pop %v1997
  %v3132 = vmul.f32 %v3131, %v1997
  %v3133 = vmul.f32 %v3132, %v3131
  %v3134 = vmul.f32 0.5, %v3133
  %v3135 = vsub.f32 1.5, %v3134
  %v3136 = vmul.f32 %v3131, %v3135
  %vm3137 = vweird.f32 %v1997
  %vm3138 = vweird.f32 %v3131
  %vm3139 = vmor %vm3137, %vm3138
  %v3140 = vsel %vm3139, %v3131, %v3136
  %v3141 = vrsqrt.pop %v1998
  %v3142 = vmul.f32 %v3141, %v1998
  %v3143 = vmul.f32 %v3142, %v3141
  %v3144 = vmul.f32 0.5, %v3143
  %v3145 = vsub.f32 1.5, %v3144
  %v3146 = vmul.f32 %v3141, %v3145
  %vm3147 = vweird.f32 %v1998
  %vm3148 = vweird.f32 %v3141
  %vm3149 = vmor %vm3147, %vm3148
  %v3150 = vsel %vm3149, %v3141, %v3146
  %v3151 = vrsqrt.pop %v1999
  %v3152 = vmul.f32 %v3151, %v1999
  %v3153 = vmul.f32 %v3152, %v3151
  %v3154 = vmul.f32 0.5, %v3153
  %v3155 = vsub.f32 1.5, %v3154
  %v3156 = vmul.f32 %v3151, %v3155
  %vm3157 = vweird.f32 %v1999
  %vm3158 = vweird.f32 %v3151
  %vm3159 = vmor %vm3157, %vm3158
  %v3160 = vsel %vm3159, %v3151, %v3156
  %v3161 = vrsqrt.pop %v2000
  %v3162 = vmul.f32 %v3161, %v2000
  %v3163 = vmul.f32 %v3162, %v3161
  %v3164 = vmul.f32 0.5, %v3163
  %v3165 = vsub.f32 1.5, %v3164
  %v3166 = vmul.f32 %v3161, %v3165
  %vm3167 = vweird.f32 %v2000
  %vm3168 = vweird.f32 %v3161
  %vm3169 = vmor %vm3167, %vm3168
  %v3170 = vsel %vm3169, %v3161, %v3166
  %v3171 = vrsqrt.pop %v2001
  %v3172 = vmul.f32 %v3171, %v2001
  %v3173 = vmul.f32 %v3172, %v3171
  %v3174 = vmul.f32 0.5, %v3173
  %v3175 = vsub.f32 1.5, %v3174
  %v3176 = vmul.f32 %v3171, %v3175
  %vm3177 = vweird.f32 %v2001
  %vm3178 = vweird.f32 %v3171
  %vm3179 = vmor %vm3177, %vm3178
  %v3180 = vsel %vm3179, %v3171, %v3176
  %v3181 = vrsqrt.pop %v2002
  %v3182 = vmul.f32 %v3181, %v2002
  %v3183 = vmul.f32 %v3182, %v3181
  %v3184 = vmul.f32 0.5, %v3183
  %v3185 = vsub.f32 1.5, %v3184
  %v3186 = vmul.f32 %v3181, %v3185
  %vm3187 = vweird.f32 %v2002
  %vm3188 = vweird.f32 %v3181
  %vm3189 = vmor %vm3187, %vm3188
  %v3190 = vsel %vm3189, %v3181, %v3186
  %v3191 = vrsqrt.pop %v2003
  %v3192 = vmul.f32 %v3191, %v2003
  %v3193 = vmul.f32 %v3192, %v3191
  %v3194 = vmul.f32 0.5, %v3193
  %v3195 = vsub.f32 1.5, %v3194
  %v3196 = vmul.f32 %v3191, %v3195
  %vm3197 = vweird.f32 %v2003
  %vm3198 = vweird.f32 %v3191
  %vm3199 = vmor %vm3197, %vm3198
  %v3200 = vsel %vm3199, %v3191, %v3196
  %v3201 = vrsqrt.pop %v2004
  %v3202 = vmul.f32 %v3201, %v2004
  %v3203 = vmul.f32 %v3202, %v3201
  %v3204 = vmul.f32 0.5, %v3203
  %v3205 = vsub.f32 1.5, %v3204
  %v3206 = vmul.f32 %v3201, %v3205
  %vm3207 = vweird.f32 %v2004
  %vm3208 = vweird.f32 %v3201
  %vm3209 = vmor %vm3207, %vm3208
  %v3210 = vsel %vm3209, %v3201, %v3206
  %v3211 = vrsqrt.pop %v2005
  %v3212 = vmul.f32 %v3211, %v2005
  %v3213 = vmul.f32 %v3212, %v3211
  %v3214 = vmul.f32 0.5, %v3213
  %v3215 = vsub.f32 1.5, %v3214
  %v3216 = vmul.f32 %v3211, %v3215
  %vm3217 = vweird.f32 %v2005
  %vm3218 = vweird.f32 %v3211
  %vm3219 = vmor %vm3217, %vm3218
  %v3220 = vsel %vm3219, %v3211, %v3216
  %v3221 = vrsqrt.pop %v2006
  %v3222 = vmul.f32 %v3221, %v2006
  %v3223 = vmul.f32 %v3222, %v3221
  %v3224 = vmul.f32 0.5, %v3223
  %v3225 = vsub.f32 1.5, %v3224
  %v3226 = vmul.f32 %v3221, %v3225
  %vm3227 = vweird.f32 %v2006
  %vm3228 = vweird.f32 %v3221
  %vm3229 = vmor %vm3227, %vm3228
  %v3230 = vsel %vm3229, %v3221, %v3226
  %v3231 = vrsqrt.pop %v2007
  %v3232 = vmul.f32 %v3231, %v2007
  %v3233 = vmul.f32 %v3232, %v3231
  %v3234 = vmul.f32 0.5, %v3233
  %v3235 = vsub.f32 1.5, %v3234
  %v3236 = vmul.f32 %v3231, %v3235
  %vm3237 = vweird.f32 %v2007
  %vm3238 = vweird.f32 %v3231
  %vm3239 = vmor %vm3237, %vm3238
  %v3240 = vsel %vm3239, %v3231, %v3236
  %v3241 = vrsqrt.pop %v2008
  %v3242 = vmul.f32 %v3241, %v2008
  %v3243 = vmul.f32 %v3242, %v3241
  %v3244 = vmul.f32 0.5, %v3243
  %v3245 = vsub.f32 1.5, %v3244
  %v3246 = vmul.f32 %v3241, %v3245
  %vm3247 = vweird.f32 %v2008
  %vm3248 = vweird.f32 %v3241
  %vm3249 = vmor %vm3247, %vm3248
  %v3250 = vsel %vm3249, %v3241, %v3246
  %v3251 = vrsqrt.pop %v2009
  %v3252 = vmul.f32 %v3251, %v2009
  %v3253 = vmul.f32 %v3252, %v3251
  %v3254 = vmul.f32 0.5, %v3253
  %v3255 = vsub.f32 1.5, %v3254
  %v3256 = vmul.f32 %v3251, %v3255
  %vm3257 = vweird.f32 %v2009
  %vm3258 = vweird.f32 %v3251
  %vm3259 = vmor %vm3257, %vm3258
  %v3260 = vsel %vm3259, %v3251, %v3256
  %v3261 = vrsqrt.pop %v2010
  %v3262 = vmul.f32 %v3261, %v2010
  %v3263 = vmul.f32 %v3262, %v3261
  %v3264 = vmul.f32 0.5, %v3263
  %v3265 = vsub.f32 1.5, %v3264
  %v3266 = vmul.f32 %v3261, %v3265
  %vm3267 = vweird.f32 %v2010
  %vm3268 = vweird.f32 %v3261
  %vm3269 = vmor %vm3267, %vm3268
  %v3270 = vsel %vm3269, %v3261, %v3266
  %v3271 = vrsqrt.pop %v2011
  %v3272 = vmul.f32 %v3271, %v2011
  %v3273 = vmul.f32 %v3272, %v3271
  %v3274 = vmul.f32 0.5, %v3273
  %v3275 = vsub.f32 1.5, %v3274
  %v3276 = vmul.f32 %v3271, %v3275
  %vm3277 = vweird.f32 %v2011
  %vm3278 = vweird.f32 %v3271
  %vm3279 = vmor %vm3277, %vm3278
  %v3280 = vsel %vm3279, %v3271, %v3276
  %v3281 = vrsqrt.pop %v2012
  %v3282 = vmul.f32 %v3281, %v2012
  %v3283 = vmul.f32 %v3282, %v3281
  %v3284 = vmul.f32 0.5, %v3283
  %v3285 = vsub.f32 1.5, %v3284
  %v3286 = vmul.f32 %v3281, %v3285
  %vm3287 = vweird.f32 %v2012
  %vm3288 = vweird.f32 %v3281
  %vm3289 = vmor %vm3287, %vm3288
  %v3290 = vsel %vm3289, %v3281, %v3286
  %v3291 = vrsqrt.pop %v2013
  %v3292 = vmul.f32 %v3291, %v2013
  %v3293 = vmul.f32 %v3292, %v3291
  %v3294 = vmul.f32 0.5, %v3293
  %v3295 = vsub.f32 1.5, %v3294
  %v3296 = vmul.f32 %v3291, %v3295
  %vm3297 = vweird.f32 %v2013
  %vm3298 = vweird.f32 %v3291
  %vm3299 = vmor %vm3297, %vm3298
  %v3300 = vsel %vm3299, %v3291, %v3296
  %v3301 = vrsqrt.pop %v2014
  %v3302 = vmul.f32 %v3301, %v2014
  %v3303 = vmul.f32 %v3302, %v3301
  %v3304 = vmul.f32 0.5, %v3303
  %v3305 = vsub.f32 1.5, %v3304
  %v3306 = vmul.f32 %v3301, %v3305
  %vm3307 = vweird.f32 %v2014
  %vm3308 = vweird.f32 %v3301
  %vm3309 = vmor %vm3307, %vm3308
  %v3310 = vsel %vm3309, %v3301, %v3306
  %v3311 = vrsqrt.pop %v2015
  %v3312 = vmul.f32 %v3311, %v2015
  %v3313 = vmul.f32 %v3312, %v3311
  %v3314 = vmul.f32 0.5, %v3313
  %v3315 = vsub.f32 1.5, %v3314
  %v3316 = vmul.f32 %v3311, %v3315
  %vm3317 = vweird.f32 %v2015
  %vm3318 = vweird.f32 %v3311
  %vm3319 = vmor %vm3317, %vm3318
  %v3320 = vsel %vm3319, %v3311, %v3316
  %v3321 = vrsqrt.pop %v2016
  %v3322 = vmul.f32 %v3321, %v2016
  %v3323 = vmul.f32 %v3322, %v3321
  %v3324 = vmul.f32 0.5, %v3323
  %v3325 = vsub.f32 1.5, %v3324
  %v3326 = vmul.f32 %v3321, %v3325
  %vm3327 = vweird.f32 %v2016
  %vm3328 = vweird.f32 %v3321
  %vm3329 = vmor %vm3327, %vm3328
  %v3330 = vsel %vm3329, %v3321, %v3326
  %v3331 = vrsqrt.pop %v2017
  %v3332 = vmul.f32 %v3331, %v2017
  %v3333 = vmul.f32 %v3332, %v3331
  %v3334 = vmul.f32 0.5, %v3333
  %v3335 = vsub.f32 1.5, %v3334
  %v3336 = vmul.f32 %v3331, %v3335
  %vm3337 = vweird.f32 %v2017
  %vm3338 = vweird.f32 %v3331
  %vm3339 = vmor %vm3337, %vm3338
  %v3340 = vsel %vm3339, %v3331, %v3336
  %v3341 = vrsqrt.pop %v2018
  %v3342 = vmul.f32 %v3341, %v2018
  %v3343 = vmul.f32 %v3342, %v3341
  %v3344 = vmul.f32 0.5, %v3343
  %v3345 = vsub.f32 1.5, %v3344
  %v3346 = vmul.f32 %v3341, %v3345
  %vm3347 = vweird.f32 %v2018
  %vm3348 = vweird.f32 %v3341
  %vm3349 = vmor %vm3347, %vm3348
  %v3350 = vsel %vm3349, %v3341, %v3346
  %v3351 = vrsqrt.pop %v2019
  %v3352 = vmul.f32 %v3351, %v2019
  %v3353 = vmul.f32 %v3352, %v3351
  %v3354 = vmul.f32 0.5, %v3353
  %v3355 = vsub.f32 1.5, %v3354
  %v3356 = vmul.f32 %v3351, %v3355
  %vm3357 = vweird.f32 %v2019
  %vm3358 = vweird.f32 %v3351
  %vm3359 = vmor %vm3357, %vm3358
  %v3360 = vsel %vm3359, %v3351, %v3356
  %v3361 = vrsqrt.pop %v2020
  %v3362 = vmul.f32 %v3361, %v2020
  %v3363 = vmul.f32 %v3362, %v3361
  %v3364 = vmul.f32 0.5, %v3363
  %v3365 = vsub.f32 1.5, %v3364
  %v3366 = vmul.f32 %v3361, %v3365
  %vm3367 = vweird.f32 %v2020
  %vm3368 = vweird.f32 %v3361
  %vm3369 = vmor %vm3367, %vm3368
  %v3370 = vsel %vm3369, %v3361, %v3366
  %v3371 = vrsqrt.pop %v2021
  %v3372 = vmul.f32 %v3371, %v2021
  %v3373 = vmul.f32 %v3372, %v3371
  %v3374 = vmul.f32 0.5, %v3373
  %v3375 = vsub.f32 1.5, %v3374
  %v3376 = vmul.f32 %v3371, %v3375
  %vm3377 = vweird.f32 %v2021
  %vm3378 = vweird.f32 %v3371
  %vm3379 = vmor %vm3377, %vm3378
  %v3380 = vsel %vm3379, %v3371, %v3376
  %v3381 = vrsqrt.pop %v2022
  %v3382 = vmul.f32 %v3381, %v2022
  %v3383 = vmul.f32 %v3382, %v3381
  %v3384 = vmul.f32 0.5, %v3383
  %v3385 = vsub.f32 1.5, %v3384
  %v3386 = vmul.f32 %v3381, %v3385
  %vm3387 = vweird.f32 %v2022
  %vm3388 = vweird.f32 %v3381
  %vm3389 = vmor %vm3387, %vm3388
  %v3390 = vsel %vm3389, %v3381, %v3386
  %v3391 = vrsqrt.pop %v2023
  %v3392 = vmul.f32 %v3391, %v2023
  %v3393 = vmul.f32 %v3392, %v3391
  %v3394 = vmul.f32 0.5, %v3393
  %v3395 = vsub.f32 1.5, %v3394
  %v3396 = vmul.f32 %v3391, %v3395
  %vm3397 = vweird.f32 %v2023
  %vm3398 = vweird.f32 %v3391
  %vm3399 = vmor %vm3397, %vm3398
  %v3400 = vsel %vm3399, %v3391, %v3396
  %v3401 = vrsqrt.pop %v2024
  %v3402 = vmul.f32 %v3401, %v2024
  %v3403 = vmul.f32 %v3402, %v3401
  %v3404 = vmul.f32 0.5, %v3403
  %v3405 = vsub.f32 1.5, %v3404
  %v3406 = vmul.f32 %v3401, %v3405
  %vm3407 = vweird.f32 %v2024
  %vm3408 = vweird.f32 %v3401
  %vm3409 = vmor %vm3407, %vm3408
  %v3410 = vsel %vm3409, %v3401, %v3406
  %v3411 = vrsqrt.pop %v2025
  %v3412 = vmul.f32 %v3411, %v2025
  %v3413 = vmul.f32 %v3412, %v3411
  %v3414 = vmul.f32 0.5, %v3413
  %v3415 = vsub.f32 1.5, %v3414
  %v3416 = vmul.f32 %v3411, %v3415
  %vm3417 = vweird.f32 %v2025
  %vm3418 = vweird.f32 %v3411
  %vm3419 = vmor %vm3417, %vm3418
  %v3420 = vsel %vm3419, %v3411, %v3416
  %v3421 = vrsqrt.pop %v2026
  %v3422 = vmul.f32 %v3421, %v2026
  %v3423 = vmul.f32 %v3422, %v3421
  %v3424 = vmul.f32 0.5, %v3423
  %v3425 = vsub.f32 1.5, %v3424
  %v3426 = vmul.f32 %v3421, %v3425
  %vm3427 = vweird.f32 %v2026
  %vm3428 = vweird.f32 %v3421
  %vm3429 = vmor %vm3427, %vm3428
  %v3430 = vsel %vm3429, %v3421, %v3426
  %v3431 = vrsqrt.pop %v2027
  %v3432 = vmul.f32 %v3431, %v2027
  %v3433 = vmul.f32 %v3432, %v3431
  %v3434 = vmul.f32 0.5, %v3433
  %v3435 = vsub.f32 1.5, %v3434
  %v3436 = vmul.f32 %v3431, %v3435
  %vm3437 = vweird.f32 %v2027
  %vm3438 = vweird.f32 %v3431
  %vm3439 = vmor %vm3437, %vm3438
  %v3440 = vsel %vm3439, %v3431, %v3436
  %v3441 = vrsqrt.pop %v2028
  %v3442 = vmul.f32 %v3441, %v2028
  %v3443 = vmul.f32 %v3442, %v3441
  %v3444 = vmul.f32 0.5, %v3443
  %v3445 = vsub.f32 1.5, %v3444
  %v3446 = vmul.f32 %v3441, %v3445
  %vm3447 = vweird.f32 %v2028
  %vm3448 = vweird.f32 %v3441
  %vm3449 = vmor %vm3447, %vm3448
  %v3450 = vsel %vm3449, %v3441, %v3446
  %v3451 = vrsqrt.pop %v2029
  %v3452 = vmul.f32 %v3451, %v2029
  %v3453 = vmul.f32 %v3452, %v3451
  %v3454 = vmul.f32 0.5, %v3453
  %v3455 = vsub.f32 1.5, %v3454
  %v3456 = vmul.f32 %v3451, %v3455
  %vm3457 = vweird.f32 %v2029
  %vm3458 = vweird.f32 %v3451
  %vm3459 = vmor %vm3457, %vm3458
  %v3460 = vsel %vm3459, %v3451, %v3456
  %v3461 = vrsqrt.pop %v2030
  %v3462 = vmul.f32 %v3461, %v2030
  %v3463 = vmul.f32 %v3462, %v3461
  %v3464 = vmul.f32 0.5, %v3463
  %v3465 = vsub.f32 1.5, %v3464
  %v3466 = vmul.f32 %v3461, %v3465
  %vm3467 = vweird.f32 %v2030
  %vm3468 = vweird.f32 %v3461
  %vm3469 = vmor %vm3467, %vm3468
  %v3470 = vsel %vm3469, %v3461, %v3466
  %v3471 = vld [vmem:[%s1] sm:$0xff]
  %v3472 = vld [vmem:[%s1 + $0x8] sm:$0xff]
  %v3473 = vld [vmem:[%s1 + $0x10] sm:$0xff]
  %v3474 = vld [vmem:[%s1 + $0x18] sm:$0xff]
  %v3475 = vld [vmem:[%s1 + $0x20] sm:$0xff]
  %v3476 = vld [vmem:[%s1 + $0x28] sm:$0xff]
  %v3477 = vld [vmem:[%s1 + $0x30] sm:$0xff]
  %v3478 = vld [vmem:[%s1 + $0x38] sm:$0xff]
  %v3479 = vld [vmem:[%s1 + $0x40] sm:$0xff]
  %v3480 = vld [vmem:[%s1 + $0x48] sm:$0xff]
  %v3481 = vld [vmem:[%s1 + $0x50] sm:$0xff]
  %v3482 = vld [vmem:[%s1 + $0x58] sm:$0xff]
  %v3483 = vld [vmem:[%s1 + $0x60] sm:$0xff]
  %v3484 = vld [vmem:[%s1 + $0x68] sm:$0xff]
  %v3485 = vld [vmem:[%s1 + $0x70] sm:$0xff]
  %v3486 = vld [vmem:[%s1 + $0x78] sm:$0xff]
  %v3487 = vld [vmem:[%s1 + $0x80] sm:$0xff]
  %v3488 = vld [vmem:[%s1 + $0x88] sm:$0xff]
  %v3489 = vld [vmem:[%s1 + $0x90] sm:$0xff]
  %v3490 = vld [vmem:[%s1 + $0x98] sm:$0xff]
  %v3491 = vld [vmem:[%s1 + $0xa0] sm:$0xff]
  %v3492 = vld [vmem:[%s1 + $0xa8] sm:$0xff]
  %v3493 = vld [vmem:[%s1 + $0xb0] sm:$0xff]
  %v3494 = vld [vmem:[%s1 + $0xb8] sm:$0xff]
  %v3495 = vld [vmem:[%s1 + $0xc0] sm:$0xff]
  %v3496 = vld [vmem:[%s1 + $0xc8] sm:$0xff]
  %v3497 = vld [vmem:[%s1 + $0xd0] sm:$0xff]
  %v3498 = vld [vmem:[%s1 + $0xd8] sm:$0xff]
  %v3499 = vld [vmem:[%s1 + $0xe0] sm:$0xff]
  %v3500 = vld [vmem:[%s1 + $0xe8] sm:$0xff]
  %v3501 = vld [vmem:[%s1 + $0xf0] sm:$0xff]
  %v3502 = vld [vmem:[%s1 + $0xf8] sm:$0xff]
  %v3503 = vld [vmem:[%s1 + $0x100] sm:$0xff]
  %v3504 = vld [vmem:[%s1 + $0x108] sm:$0xff]
  %v3505 = vld [vmem:[%s1 + $0x110] sm:$0xff]
  %v3506 = vld [vmem:[%s1 + $0x118] sm:$0xff]
  %v3507 = vld [vmem:[%s1 + $0x120] sm:$0xff]
  %v3508 = vld [vmem:[%s1 + $0x128] sm:$0xff]
  %v3509 = vld [vmem:[%s1 + $0x130] sm:$0xff]
  %v3510 = vld [vmem:[%s1 + $0x138] sm:$0xff]
  %v3511 = vld [vmem:[%s1 + $0x140] sm:$0xff]
  %v3512 = vld [vmem:[%s1 + $0x148] sm:$0xff]
  %v3513 = vld [vmem:[%s1 + $0x150] sm:$0xff]
  %v3514 = vld [vmem:[%s1 + $0x158] sm:$0xff]
  %v3515 = vld [vmem:[%s1 + $0x160] sm:$0xff]
  %v3516 = vld [vmem:[%s1 + $0x168] sm:$0xff]
  %v3517 = vld [vmem:[%s1 + $0x170] sm:$0xff]
  %v3518 = vld [vmem:[%s1 + $0x178] sm:$0xff]
  %v3519 = vld [vmem:[%s1 + $0x180] sm:$0xff]
  %v3520 = vld [vmem:[%s1 + $0x188] sm:$0xff]
  %v3521 = vld [vmem:[%s1 + $0x190] sm:$0xff]
  %v3522 = vld [vmem:[%s1 + $0x198] sm:$0xff]
  %v3523 = vld [vmem:[%s1 + $0x1a0] sm:$0xff]
  %v3524 = vld [vmem:[%s1 + $0x1a8] sm:$0xff]
  %v3525 = vld [vmem:[%s1 + $0x1b0] sm:$0xff]
  %v3526 = vld [vmem:[%s1 + $0x1b8] sm:$0xff]
  %v3527 = vld [vmem:[%s1 + $0x1c0] sm:$0xff]
  %v3528 = vld [vmem:[%s1 + $0x1c8] sm:$0xff]
  %v3529 = vld [vmem:[%s1 + $0x1d0] sm:$0xff]
  %v3530 = vld [vmem:[%s1 + $0x1d8] sm:$0xff]
  %v3531 = vld [vmem:[%s1 + $0x1e0] sm:$0xff]
  %v3532 = vld [vmem:[%s1 + $0x1e8] sm:$0xff]
  %v3533 = vld [vmem:[%s1 + $0x1f0] sm:$0xff]
  %v3534 = vld [vmem:[%s1 + $0x1f8] sm:$0xff]
  %v3535 = vld [vmem:[%s1 + $0x200] sm:$0xff]
  %v3536 = vld [vmem:[%s1 + $0x208] sm:$0xff]
  %v3537 = vld [vmem:[%s1 + $0x210] sm:$0xff]
  %v3538 = vld [vmem:[%s1 + $0x218] sm:$0xff]
  %v3539 = vld [vmem:[%s1 + $0x220] sm:$0xff]
  %v3540 = vld [vmem:[%s1 + $0x228] sm:$0xff]
  %v3541 = vld [vmem:[%s1 + $0x230] sm:$0xff]
  %v3542 = vld [vmem:[%s1 + $0x238] sm:$0xff]
  %v3543 = vld [vmem:[%s1 + $0x240] sm:$0xff]
  %v3544 = vld [vmem:[%s1 + $0x248] sm:$0xff]
  %v3545 = vld [vmem:[%s1 + $0x250] sm:$0xff]
  %v3546 = vld [vmem:[%s1 + $0x258] sm:$0xff]
  %v3547 = vld [vmem:[%s1 + $0x260] sm:$0xff]
  %v3548 = vld [vmem:[%s1 + $0x268] sm:$0xff]
  %v3549 = vld [vmem:[%s1 + $0x270] sm:$0xff]
  %v3550 = vld [vmem:[%s1 + $0x278] sm:$0xff]
  %v3551 = vld [vmem:[%s1 + $0x280] sm:$0xff]
  %v3552 = vld [vmem:[%s1 + $0x288] sm:$0xff]
  %v3553 = vld [vmem:[%s1 + $0x290] sm:$0xff]
  %v3554 = vld [vmem:[%s1 + $0x298] sm:$0xff]
  %v3555 = vld [vmem:[%s1 + $0x2a0] sm:$0xff]
  %v3556 = vld [vmem:[%s1 + $0x2a8] sm:$0xff]
  %v3557 = vld [vmem:[%s1 + $0x2b0] sm:$0xff]
  %v3558 = vld [vmem:[%s1 + $0x2b8] sm:$0xff]
  %v3559 = vld [vmem:[%s1 + $0x2c0] sm:$0xff]
  %v3560 = vld [vmem:[%s1 + $0x2c8] sm:$0xff]
  %v3561 = vld [vmem:[%s1 + $0x2d0] sm:$0xff]
  %v3562 = vld [vmem:[%s1 + $0x2d8] sm:$0xff]
  %v3563 = vld [vmem:[%s1 + $0x2e0] sm:$0xff]
  %v3564 = vld [vmem:[%s1 + $0x2e8] sm:$0xff]
  %v3565 = vld [vmem:[%s1 + $0x2f0] sm:$0xff]
  %v3566 = vld [vmem:[%s1 + $0x2f8] sm:$0xff]
  %v3567 = vld [vmem:[%s1 + $0x300] sm:$0xff]
  %v3568 = vld [vmem:[%s1 + $0x308] sm:$0xff]
  %v3569 = vld [vmem:[%s1 + $0x310] sm:$0xff]
  %v3570 = vld [vmem:[%s1 + $0x318] sm:$0xff]
  %v3571 = vld [vmem:[%s1 + $0x320] sm:$0xff]
  %v3572 = vld [vmem:[%s1 + $0x328] sm:$0xff]
  %v3573 = vld [vmem:[%s1 + $0x330] sm:$0xff]
  %v3574 = vld [vmem:[%s1 + $0x338] sm:$0xff]
  %v3575 = vld [vmem:[%s1 + $0x340] sm:$0xff]
  %v3576 = vld [vmem:[%s1 + $0x348] sm:$0xff]
  %v3577 = vld [vmem:[%s1 + $0x350] sm:$0xff]
  %v3578 = vld [vmem:[%s1 + $0x358] sm:$0xff]
  %v3579 = vld [vmem:[%s1 + $0x360] sm:$0xff]
  %v3580 = vld [vmem:[%s1 + $0x368] sm:$0xff]
  %v3581 = vld [vmem:[%s1 + $0x370] sm:$0xff]
  %v3582 = vld [vmem:[%s1 + $0x378] sm:$0xff]
  %v3583 = vld [vmem:[%s1 + $0x380] sm:$0xff]
  %v3584 = vld [vmem:[%s1 + $0x388] sm:$0xff]
  %v3585 = vld [vmem:[%s1 + $0x390] sm:$0xff]
  %v3586 = vld [vmem:[%s1 + $0x398] sm:$0xff]
  %v3587 = vld [vmem:[%s1 + $0x3a0] sm:$0xff]
  %v3588 = vld [vmem:[%s1 + $0x3a8] sm:$0xff]
  %v3589 = vld [vmem:[%s1 + $0x3b0] sm:$0xff]
  %v3590 = vld [vmem:[%s1 + $0x3b8] sm:$0xff]
  %v3591 = vld [vmem:[%s1 + $0x3c0] sm:$0xff]
  %v3592 = vld [vmem:[%s1 + $0x3c8] sm:$0xff]
  %v3593 = vld [vmem:[%s1 + $0x3d0] sm:$0xff]
  %v3594 = vld [vmem:[%s1 + $0x3d8] sm:$0xff]
  %v3595 = vld [vmem:[%s1 + $0x3e0] sm:$0xff]
  %v3596 = vld [vmem:[%s1 + $0x3e8] sm:$0xff]
  %v3597 = vld [vmem:[%s1 + $0x3f0] sm:$0xff]
  %v3598 = vld [vmem:[%s1 + $0x3f8] sm:$0xff]
  %v3599 = vld [vmem:[%s1 + $0x400] sm:$0xff]
  %v3600 = vld [vmem:[%s1 + $0x408] sm:$0xff]
  %v3601 = vld [vmem:[%s1 + $0x410] sm:$0xff]
  %v3602 = vld [vmem:[%s1 + $0x418] sm:$0xff]
  %v3603 = vld [vmem:[%s1 + $0x420] sm:$0xff]
  %v3604 = vld [vmem:[%s1 + $0x428] sm:$0xff]
  %v3605 = vld [vmem:[%s1 + $0x430] sm:$0xff]
  %v3606 = vld [vmem:[%s1 + $0x438] sm:$0xff]
  %v3607 = vld [vmem:[%s1 + $0x440] sm:$0xff]
  %v3608 = vld [vmem:[%s1 + $0x448] sm:$0xff]
  %v3609 = vld [vmem:[%s1 + $0x450] sm:$0xff]
  %v3610 = vld [vmem:[%s1 + $0x458] sm:$0xff]
  %v3611 = vld [vmem:[%s1 + $0x460] sm:$0xff]
  %v3612 = vld [vmem:[%s1 + $0x468] sm:$0xff]
  %v3613 = vld [vmem:[%s1 + $0x470] sm:$0xff]
  %v3614 = vld [vmem:[%s1 + $0x478] sm:$0xff]
  %v3615 = vld [vmem:[%s2] sm:$0xff]
  %v3616 = vld [vmem:[%s2 + $0x8] sm:$0xff]
  %v3617 = vld [vmem:[%s2 + $0x10] sm:$0xff]
  %v3618 = vld [vmem:[%s2 + $0x18] sm:$0xff]
  %v3619 = vld [vmem:[%s2 + $0x20] sm:$0xff]
  %v3620 = vld [vmem:[%s2 + $0x28] sm:$0xff]
  %v3621 = vld [vmem:[%s2 + $0x30] sm:$0xff]
  %v3622 = vld [vmem:[%s2 + $0x38] sm:$0xff]
  %v3623 = vld [vmem:[%s2 + $0x40] sm:$0xff]
  %v3624 = vld [vmem:[%s2 + $0x48] sm:$0xff]
  %v3625 = vld [vmem:[%s2 + $0x50] sm:$0xff]
  %v3626 = vld [vmem:[%s2 + $0x58] sm:$0xff]
  %v3627 = vld [vmem:[%s2 + $0x60] sm:$0xff]
  %v3628 = vld [vmem:[%s2 + $0x68] sm:$0xff]
  %v3629 = vld [vmem:[%s2 + $0x70] sm:$0xff]
  %v3630 = vld [vmem:[%s2 + $0x78] sm:$0xff]
  %v3631 = vld [vmem:[%s2 + $0x80] sm:$0xff]
  %v3632 = vld [vmem:[%s2 + $0x88] sm:$0xff]
  %v3633 = vld [vmem:[%s2 + $0x90] sm:$0xff]
  %v3634 = vld [vmem:[%s2 + $0x98] sm:$0xff]
  %v3635 = vld [vmem:[%s2 + $0xa0] sm:$0xff]
  %v3636 = vld [vmem:[%s2 + $0xa8] sm:$0xff]
  %v3637 = vld [vmem:[%s2 + $0xb0] sm:$0xff]
  %v3638 = vld [vmem:[%s2 + $0xb8] sm:$0xff]
  %v3639 = vld [vmem:[%s2 + $0xc0] sm:$0xff]
  %v3640 = vld [vmem:[%s2 + $0xc8] sm:$0xff]
  %v3641 = vld [vmem:[%s2 + $0xd0] sm:$0xff]
  %v3642 = vld [vmem:[%s2 + $0xd8] sm:$0xff]
  %v3643 = vld [vmem:[%s2 + $0xe0] sm:$0xff]
  %v3644 = vld [vmem:[%s2 + $0xe8] sm:$0xff]
  %v3645 = vld [vmem:[%s2 + $0xf0] sm:$0xff]
  %v3646 = vld [vmem:[%s2 + $0xf8] sm:$0xff]
  %v3647 = vld [vmem:[%s2 + $0x100] sm:$0xff]
  %v3648 = vld [vmem:[%s2 + $0x108] sm:$0xff]
  %v3649 = vld [vmem:[%s2 + $0x110] sm:$0xff]
  %v3650 = vld [vmem:[%s2 + $0x118] sm:$0xff]
  %v3651 = vld [vmem:[%s2 + $0x120] sm:$0xff]
  %v3652 = vld [vmem:[%s2 + $0x128] sm:$0xff]
  %v3653 = vld [vmem:[%s2 + $0x130] sm:$0xff]
  %v3654 = vld [vmem:[%s2 + $0x138] sm:$0xff]
  %v3655 = vld [vmem:[%s2 + $0x140] sm:$0xff]
  %v3656 = vld [vmem:[%s2 + $0x148] sm:$0xff]
  %v3657 = vld [vmem:[%s2 + $0x150] sm:$0xff]
  %v3658 = vld [vmem:[%s2 + $0x158] sm:$0xff]
  %v3659 = vld [vmem:[%s2 + $0x160] sm:$0xff]
  %v3660 = vld [vmem:[%s2 + $0x168] sm:$0xff]
  %v3661 = vld [vmem:[%s2 + $0x170] sm:$0xff]
  %v3662 = vld [vmem:[%s2 + $0x178] sm:$0xff]
  %v3663 = vld [vmem:[%s2 + $0x180] sm:$0xff]
  %v3664 = vld [vmem:[%s2 + $0x188] sm:$0xff]
  %v3665 = vld [vmem:[%s2 + $0x190] sm:$0xff]
  %v3666 = vld [vmem:[%s2 + $0x198] sm:$0xff]
  %v3667 = vld [vmem:[%s2 + $0x1a0] sm:$0xff]
  %v3668 = vld [vmem:[%s2 + $0x1a8] sm:$0xff]
  %v3669 = vld [vmem:[%s2 + $0x1b0] sm:$0xff]
  %v3670 = vld [vmem:[%s2 + $0x1b8] sm:$0xff]
  %v3671 = vld [vmem:[%s2 + $0x1c0] sm:$0xff]
  %v3672 = vld [vmem:[%s2 + $0x1c8] sm:$0xff]
  %v3673 = vld [vmem:[%s2 + $0x1d0] sm:$0xff]
  %v3674 = vld [vmem:[%s2 + $0x1d8] sm:$0xff]
  %v3675 = vld [vmem:[%s2 + $0x1e0] sm:$0xff]
  %v3676 = vld [vmem:[%s2 + $0x1e8] sm:$0xff]
  %v3677 = vld [vmem:[%s2 + $0x1f0] sm:$0xff]
  %v3678 = vld [vmem:[%s2 + $0x1f8] sm:$0xff]
  %v3679 = vld [vmem:[%s2 + $0x200] sm:$0xff]
  %v3680 = vld [vmem:[%s2 + $0x208] sm:$0xff]
  %v3681 = vld [vmem:[%s2 + $0x210] sm:$0xff]
  %v3682 = vld [vmem:[%s2 + $0x218] sm:$0xff]
  %v3683 = vld [vmem:[%s2 + $0x220] sm:$0xff]
  %v3684 = vld [vmem:[%s2 + $0x228] sm:$0xff]
  %v3685 = vld [vmem:[%s2 + $0x230] sm:$0xff]
  %v3686 = vld [vmem:[%s2 + $0x238] sm:$0xff]
  %v3687 = vld [vmem:[%s2 + $0x240] sm:$0xff]
  %v3688 = vld [vmem:[%s2 + $0x248] sm:$0xff]
  %v3689 = vld [vmem:[%s2 + $0x250] sm:$0xff]
  %v3690 = vld [vmem:[%s2 + $0x258] sm:$0xff]
  %v3691 = vld [vmem:[%s2 + $0x260] sm:$0xff]
  %v3692 = vld [vmem:[%s2 + $0x268] sm:$0xff]
  %v3693 = vld [vmem:[%s2 + $0x270] sm:$0xff]
  %v3694 = vld [vmem:[%s2 + $0x278] sm:$0xff]
  %v3695 = vld [vmem:[%s2 + $0x280] sm:$0xff]
  %v3696 = vld [vmem:[%s2 + $0x288] sm:$0xff]
  %v3697 = vld [vmem:[%s2 + $0x290] sm:$0xff]
  %v3698 = vld [vmem:[%s2 + $0x298] sm:$0xff]
  %v3699 = vld [vmem:[%s2 + $0x2a0] sm:$0xff]
  %v3700 = vld [vmem:[%s2 + $0x2a8] sm:$0xff]
  %v3701 = vld [vmem:[%s2 + $0x2b0] sm:$0xff]
  %v3702 = vld [vmem:[%s2 + $0x2b8] sm:$0xff]
  %v3703 = vld [vmem:[%s2 + $0x2c0] sm:$0xff]
  %v3704 = vld [vmem:[%s2 + $0x2c8] sm:$0xff]
  %v3705 = vld [vmem:[%s2 + $0x2d0] sm:$0xff]
  %v3706 = vld [vmem:[%s2 + $0x2d8] sm:$0xff]
  %v3707 = vld [vmem:[%s2 + $0x2e0] sm:$0xff]
  %v3708 = vld [vmem:[%s2 + $0x2e8] sm:$0xff]
  %v3709 = vld [vmem:[%s2 + $0x2f0] sm:$0xff]
  %v3710 = vld [vmem:[%s2 + $0x2f8] sm:$0xff]
  %v3711 = vld [vmem:[%s2 + $0x300] sm:$0xff]
  %v3712 = vld [vmem:[%s2 + $0x308] sm:$0xff]
  %v3713 = vld [vmem:[%s2 + $0x310] sm:$0xff]
  %v3714 = vld [vmem:[%s2 + $0x318] sm:$0xff]
  %v3715 = vld [vmem:[%s2 + $0x320] sm:$0xff]
  %v3716 = vld [vmem:[%s2 + $0x328] sm:$0xff]
  %v3717 = vld [vmem:[%s2 + $0x330] sm:$0xff]
  %v3718 = vld [vmem:[%s2 + $0x338] sm:$0xff]
  %v3719 = vld [vmem:[%s2 + $0x340] sm:$0xff]
  %v3720 = vld [vmem:[%s2 + $0x348] sm:$0xff]
  %v3721 = vld [vmem:[%s2 + $0x350] sm:$0xff]
  %v3722 = vld [vmem:[%s2 + $0x358] sm:$0xff]
  %v3723 = vld [vmem:[%s2 + $0x360] sm:$0xff]
  %v3724 = vld [vmem:[%s2 + $0x368] sm:$0xff]
  %v3725 = vld [vmem:[%s2 + $0x370] sm:$0xff]
  %v3726 = vld [vmem:[%s2 + $0x378] sm:$0xff]
  %v3727 = vld [vmem:[%s2 + $0x380] sm:$0xff]
  %v3728 = vld [vmem:[%s2 + $0x388] sm:$0xff]
  %v3729 = vld [vmem:[%s2 + $0x390] sm:$0xff]
  %v3730 = vld [vmem:[%s2 + $0x398] sm:$0xff]
  %v3731 = vld [vmem:[%s2 + $0x3a0] sm:$0xff]
  %v3732 = vld [vmem:[%s2 + $0x3a8] sm:$0xff]
  %v3733 = vld [vmem:[%s2 + $0x3b0] sm:$0xff]
  %v3734 = vld [vmem:[%s2 + $0x3b8] sm:$0xff]
  %v3735 = vld [vmem:[%s2 + $0x3c0] sm:$0xff]
  %v3736 = vld [vmem:[%s2 + $0x3c8] sm:$0xff]
  %v3737 = vld [vmem:[%s2 + $0x3d0] sm:$0xff]
  %v3738 = vld [vmem:[%s2 + $0x3d8] sm:$0xff]
  %v3739 = vld [vmem:[%s2 + $0x3e0] sm:$0xff]
  %v3740 = vld [vmem:[%s2 + $0x3e8] sm:$0xff]
  %v3741 = vld [vmem:[%s2 + $0x3f0] sm:$0xff]
  %v3742 = vld [vmem:[%s2 + $0x3f8] sm:$0xff]
  %v3743 = vld [vmem:[%s2 + $0x400] sm:$0xff]
  %v3744 = vld [vmem:[%s2 + $0x408] sm:$0xff]
  %v3745 = vld [vmem:[%s2 + $0x410] sm:$0xff]
  %v3746 = vld [vmem:[%s2 + $0x418] sm:$0xff]
  %v3747 = vld [vmem:[%s2 + $0x420] sm:$0xff]
  %v3748 = vld [vmem:[%s2 + $0x428] sm:$0xff]
  %v3749 = vld [vmem:[%s2 + $0x430] sm:$0xff]
  %v3750 = vld [vmem:[%s2 + $0x438] sm:$0xff]
  %v3751 = vld [vmem:[%s2 + $0x440] sm:$0xff]
  %v3752 = vld [vmem:[%s2 + $0x448] sm:$0xff]
  %v3753 = vld [vmem:[%s2 + $0x450] sm:$0xff]
  %v3754 = vld [vmem:[%s2 + $0x458] sm:$0xff]
  %v3755 = vld [vmem:[%s2 + $0x460] sm:$0xff]
  %v3756 = vld [vmem:[%s2 + $0x468] sm:$0xff]
  %v3757 = vld [vmem:[%s2 + $0x470] sm:$0xff]
  %v3758 = vld [vmem:[%s2 + $0x478] sm:$0xff]
  %v3759 = vmul.f32 %v3471, %v2040
  %v3760 = vmul.f32 %v3472, %v2050
  %v3761 = vmul.f32 %v3473, %v2060
  %v3762 = vmul.f32 %v3474, %v2070
  %v3763 = vmul.f32 %v3475, %v2080
  %v3764 = vmul.f32 %v3476, %v2090
  %v3765 = vmul.f32 %v3477, %v2100
  %v3766 = vmul.f32 %v3478, %v2110
  %v3767 = vmul.f32 %v3479, %v2120
  %v3768 = vmul.f32 %v3480, %v2130
  %v3769 = vmul.f32 %v3481, %v2140
  %v3770 = vmul.f32 %v3482, %v2150
  %v3771 = vmul.f32 %v3483, %v2160
  %v3772 = vmul.f32 %v3484, %v2170
  %v3773 = vmul.f32 %v3485, %v2180
  %v3774 = vmul.f32 %v3486, %v2190
  %v3775 = vmul.f32 %v3487, %v2200
  %v3776 = vmul.f32 %v3488, %v2210
  %v3777 = vmul.f32 %v3489, %v2220
  %v3778 = vmul.f32 %v3490, %v2230
  %v3779 = vmul.f32 %v3491, %v2240
  %v3780 = vmul.f32 %v3492, %v2250
  %v3781 = vmul.f32 %v3493, %v2260
  %v3782 = vmul.f32 %v3494, %v2270
  %v3783 = vmul.f32 %v3495, %v2280
  %v3784 = vmul.f32 %v3496, %v2290
  %v3785 = vmul.f32 %v3497, %v2300
  %v3786 = vmul.f32 %v3498, %v2310
  %v3787 = vmul.f32 %v3499, %v2320
  %v3788 = vmul.f32 %v3500, %v2330
  %v3789 = vmul.f32 %v3501, %v2340
  %v3790 = vmul.f32 %v3502, %v2350
  %v3791 = vmul.f32 %v3503, %v2360
  %v3792 = vmul.f32 %v3504, %v2370
  %v3793 = vmul.f32 %v3505, %v2380
  %v3794 = vmul.f32 %v3506, %v2390
  %v3795 = vmul.f32 %v3507, %v2400
  %v3796 = vmul.f32 %v3508, %v2410
  %v3797 = vmul.f32 %v3509, %v2420
  %v3798 = vmul.f32 %v3510, %v2430
  %v3799 = vmul.f32 %v3511, %v2440
  %v3800 = vmul.f32 %v3512, %v2450
  %v3801 = vmul.f32 %v3513, %v2460
  %v3802 = vmul.f32 %v3514, %v2470
  %v3803 = vmul.f32 %v3515, %v2480
  %v3804 = vmul.f32 %v3516, %v2490
  %v3805 = vmul.f32 %v3517, %v2500
  %v3806 = vmul.f32 %v3518, %v2510
  %v3807 = vmul.f32 %v3519, %v2520
  %v3808 = vmul.f32 %v3520, %v2530
  %v3809 = vmul.f32 %v3521, %v2540
  %v3810 = vmul.f32 %v3522, %v2550
  %v3811 = vmul.f32 %v3523, %v2560
  %v3812 = vmul.f32 %v3524, %v2570
  %v3813 = vmul.f32 %v3525, %v2580
  %v3814 = vmul.f32 %v3526, %v2590
  %v3815 = vmul.f32 %v3527, %v2600
  %v3816 = vmul.f32 %v3528, %v2610
  %v3817 = vmul.f32 %v3529, %v2620
  %v3818 = vmul.f32 %v3530, %v2630
  %v3819 = vmul.f32 %v3531, %v2640
  %v3820 = vmul.f32 %v3532, %v2650
  %v3821 = vmul.f32 %v3533, %v2660
  %v3822 = vmul.f32 %v3534, %v2670
  %v3823 = vmul.f32 %v3535, %v2680
  %v3824 = vmul.f32 %v3536, %v2690
  %v3825 = vmul.f32 %v3537, %v2700
  %v3826 = vmul.f32 %v3538, %v2710
  %v3827 = vmul.f32 %v3539, %v2720
  %v3828 = vmul.f32 %v3540, %v2730
  %v3829 = vmul.f32 %v3541, %v2740
  %v3830 = vmul.f32 %v3542, %v2750
  %v3831 = vmul.f32 %v3543, %v2760
  %v3832 = vmul.f32 %v3544, %v2770
  %v3833 = vmul.f32 %v3545, %v2780
  %v3834 = vmul.f32 %v3546, %v2790
  %v3835 = vmul.f32 %v3547, %v2800
  %v3836 = vmul.f32 %v3548, %v2810
  %v3837 = vmul.f32 %v3549, %v2820
  %v3838 = vmul.f32 %v3550, %v2830
  %v3839 = vmul.f32 %v3551, %v2840
  %v3840 = vmul.f32 %v3552, %v2850
  %v3841 = vmul.f32 %v3553, %v2860
  %v3842 = vmul.f32 %v3554, %v2870
  %v3843 = vmul.f32 %v3555, %v2880
  %v3844 = vmul.f32 %v3556, %v2890
  %v3845 = vmul.f32 %v3557, %v2900
  %v3846 = vmul.f32 %v3558, %v2910
  %v3847 = vmul.f32 %v3559, %v2920
  %v3848 = vmul.f32 %v3560, %v2930
  %v3849 = vmul.f32 %v3561, %v2940
  %v3850 = vmul.f32 %v3562, %v2950
  %v3851 = vmul.f32 %v3563, %v2960
  %v3852 = vmul.f32 %v3564, %v2970
  %v3853 = vmul.f32 %v3565, %v2980
  %v3854 = vmul.f32 %v3566, %v2990
  %v3855 = vmul.f32 %v3567, %v3000
  %v3856 = vmul.f32 %v3568, %v3010
  %v3857 = vmul.f32 %v3569, %v3020
  %v3858 = vmul.f32 %v3570, %v3030
  %v3859 = vmul.f32 %v3571, %v3040
  %v3860 = vmul.f32 %v3572, %v3050
  %v3861 = vmul.f32 %v3573, %v3060
  %v3862 = vmul.f32 %v3574, %v3070
  %v3863 = vmul.f32 %v3575, %v3080
  %v3864 = vmul.f32 %v3576, %v3090
  %v3865 = vmul.f32 %v3577, %v3100
  %v3866 = vmul.f32 %v3578, %v3110
  %v3867 = vmul.f32 %v3579, %v3120
  %v3868 = vmul.f32 %v3580, %v3130
  %v3869 = vmul.f32 %v3581, %v3140
  %v3870 = vmul.f32 %v3582, %v3150
  %v3871 = vmul.f32 %v3583, %v3160
  %v3872 = vmul.f32 %v3584, %v3170
  %v3873 = vmul.f32 %v3585, %v3180
  %v3874 = vmul.f32 %v3586, %v3190
  %v3875 = vmul.f32 %v3587, %v3200
  %v3876 = vmul.f32 %v3588, %v3210
  %v3877 = vmul.f32 %v3589, %v3220
  %v3878 = vmul.f32 %v3590, %v3230
  %v3879 = vmul.f32 %v3591, %v3240
  %v3880 = vmul.f32 %v3592, %v3250
  %v3881 = vmul.f32 %v3593, %v3260
  %v3882 = vmul.f32 %v3594, %v3270
  %v3883 = vmul.f32 %v3595, %v3280
  %v3884 = vmul.f32 %v3596, %v3290
  %v3885 = vmul.f32 %v3597, %v3300
  %v3886 = vmul.f32 %v3598, %v3310
  %v3887 = vmul.f32 %v3599, %v3320
  %v3888 = vmul.f32 %v3600, %v3330
  %v3889 = vmul.f32 %v3601, %v3340
  %v3890 = vmul.f32 %v3602, %v3350
  %v3891 = vmul.f32 %v3603, %v3360
  %v3892 = vmul.f32 %v3604, %v3370
  %v3893 = vmul.f32 %v3605, %v3380
  %v3894 = vmul.f32 %v3606, %v3390
  %v3895 = vmul.f32 %v3607, %v3400
  %v3896 = vmul.f32 %v3608, %v3410
  %v3897 = vmul.f32 %v3609, %v3420
  %v3898 = vmul.f32 %v3610, %v3430
  %v3899 = vmul.f32 %v3611, %v3440
  %v3900 = vmul.f32 %v3612, %v3450
  %v3901 = vmul.f32 %v3613, %v3460
  %v3902 = vmul.f32 %v3614, %v3470
  %v3903 = vmul.f32 %v1167, %v3759
  %v3904 = vmul.f32 %v1168, %v3760
  %v3905 = vmul.f32 %v1169, %v3761
  %v3906 = vmul.f32 %v1170, %v3762
  %v3907 = vmul.f32 %v1171, %v3763
  %v3908 = vmul.f32 %v1172, %v3764
  %v3909 = vmul.f32 %v1173, %v3765
  %v3910 = vmul.f32 %v1174, %v3766
  %v3911 = vmul.f32 %v1175, %v3767
  %v3912 = vmul.f32 %v1176, %v3768
  %v3913 = vmul.f32 %v1177, %v3769
  %v3914 = vmul.f32 %v1178, %v3770
  %v3915 = vmul.f32 %v1179, %v3771
  %v3916 = vmul.f32 %v1180, %v3772
  %v3917 = vmul.f32 %v1181, %v3773
  %v3918 = vmul.f32 %v1182, %v3774
  %v3919 = vmul.f32 %v1183, %v3775
  %v3920 = vmul.f32 %v1184, %v3776
  %v3921 = vmul.f32 %v1185, %v3777
  %v3922 = vmul.f32 %v1186, %v3778
  %v3923 = vmul.f32 %v1187, %v3779
  %v3924 = vmul.f32 %v1188, %v3780
  %v3925 = vmul.f32 %v1189, %v3781
  %v3926 = vmul.f32 %v1190, %v3782
  %v3927 = vmul.f32 %v1191, %v3783
  %v3928 = vmul.f32 %v1192, %v3784
  %v3929 = vmul.f32 %v1193, %v3785
  %v3930 = vmul.f32 %v1194, %v3786
  %v3931 = vmul.f32 %v1195, %v3787
  %v3932 = vmul.f32 %v1196, %v3788
  %v3933 = vmul.f32 %v1197, %v3789
  %v3934 = vmul.f32 %v1198, %v3790
  %v3935 = vmul.f32 %v1199, %v3791
  %v3936 = vmul.f32 %v1200, %v3792
  %v3937 = vmul.f32 %v1201, %v3793
  %v3938 = vmul.f32 %v1202, %v3794
  %v3939 = vmul.f32 %v1203, %v3795
  %v3940 = vmul.f32 %v1204, %v3796
  %v3941 = vmul.f32 %v1205, %v3797
  %v3942 = vmul.f32 %v1206, %v3798
  %v3943 = vmul.f32 %v1207, %v3799
  %v3944 = vmul.f32 %v1208, %v3800
  %v3945 = vmul.f32 %v1209, %v3801
  %v3946 = vmul.f32 %v1210, %v3802
  %v3947 = vmul.f32 %v1211, %v3803
  %v3948 = vmul.f32 %v1212, %v3804
  %v3949 = vmul.f32 %v1213, %v3805
  %v3950 = vmul.f32 %v1214, %v3806
  %v3951 = vmul.f32 %v1215, %v3807
  %v3952 = vmul.f32 %v1216, %v3808
  %v3953 = vmul.f32 %v1217, %v3809
  %v3954 = vmul.f32 %v1218, %v3810
  %v3955 = vmul.f32 %v1219, %v3811
  %v3956 = vmul.f32 %v1220, %v3812
  %v3957 = vmul.f32 %v1221, %v3813
  %v3958 = vmul.f32 %v1222, %v3814
  %v3959 = vmul.f32 %v1223, %v3815
  %v3960 = vmul.f32 %v1224, %v3816
  %v3961 = vmul.f32 %v1225, %v3817
  %v3962 = vmul.f32 %v1226, %v3818
  %v3963 = vmul.f32 %v1227, %v3819
  %v3964 = vmul.f32 %v1228, %v3820
  %v3965 = vmul.f32 %v1229, %v3821
  %v3966 = vmul.f32 %v1230, %v3822
  %v3967 = vmul.f32 %v1231, %v3823
  %v3968 = vmul.f32 %v1232, %v3824
  %v3969 = vmul.f32 %v1233, %v3825
  %v3970 = vmul.f32 %v1234, %v3826
  %v3971 = vmul.f32 %v1235, %v3827
  %v3972 = vmul.f32 %v1236, %v3828
  %v3973 = vmul.f32 %v1237, %v3829
  %v3974 = vmul.f32 %v1238, %v3830
  %v3975 = vmul.f32 %v1239, %v3831
  %v3976 = vmul.f32 %v1240, %v3832
  %v3977 = vmul.f32 %v1241, %v3833
  %v3978 = vmul.f32 %v1242, %v3834
  %v3979 = vmul.f32 %v1243, %v3835
  %v3980 = vmul.f32 %v1244, %v3836
  %v3981 = vmul.f32 %v1245, %v3837
  %v3982 = vmul.f32 %v1246, %v3838
  %v3983 = vmul.f32 %v1247, %v3839
  %v3984 = vmul.f32 %v1248, %v3840
  %v3985 = vmul.f32 %v1249, %v3841
  %v3986 = vmul.f32 %v1250, %v3842
  %v3987 = vmul.f32 %v1251, %v3843
  %v3988 = vmul.f32 %v1252, %v3844
  %v3989 = vmul.f32 %v1253, %v3845
  %v3990 = vmul.f32 %v1254, %v3846
  %v3991 = vmul.f32 %v1255, %v3847
  %v3992 = vmul.f32 %v1256, %v3848
  %v3993 = vmul.f32 %v1257, %v3849
  %v3994 = vmul.f32 %v1258, %v3850
  %v3995 = vmul.f32 %v1259, %v3851
  %v3996 = vmul.f32 %v1260, %v3852
  %v3997 = vmul.f32 %v1261, %v3853
  %v3998 = vmul.f32 %v1262, %v3854
  %v3999 = vmul.f32 %v1263, %v3855
  %v4000 = vmul.f32 %v1264, %v3856
  %v4001 = vmul.f32 %v1265, %v3857
  %v4002 = vmul.f32 %v1266, %v3858
  %v4003 = vmul.f32 %v1267, %v3859
  %v4004 = vmul.f32 %v1268, %v3860
  %v4005 = vmul.f32 %v1269, %v3861
  %v4006 = vmul.f32 %v1270, %v3862
  %v4007 = vmul.f32 %v1271, %v3863
  %v4008 = vmul.f32 %v1272, %v3864
  %v4009 = vmul.f32 %v1273, %v3865
  %v4010 = vmul.f32 %v1274, %v3866
  %v4011 = vmul.f32 %v1275, %v3867
  %v4012 = vmul.f32 %v1276, %v3868
  %v4013 = vmul.f32 %v1277, %v3869
  %v4014 = vmul.f32 %v1278, %v3870
  %v4015 = vmul.f32 %v1279, %v3871
  %v4016 = vmul.f32 %v1280, %v3872
  %v4017 = vmul.f32 %v1281, %v3873
  %v4018 = vmul.f32 %v1282, %v3874
  %v4019 = vmul.f32 %v1283, %v3875
  %v4020 = vmul.f32 %v1284, %v3876
  %v4021 = vmul.f32 %v1285, %v3877
  %v4022 = vmul.f32 %v1286, %v3878
  %v4023 = vmul.f32 %v1287, %v3879
  %v4024 = vmul.f32 %v1288, %v3880
  %v4025 = vmul.f32 %v1289, %v3881
  %v4026 = vmul.f32 %v1290, %v3882
  %v4027 = vmul.f32 %v1291, %v3883
  %v4028 = vmul.f32 %v1292, %v3884
  %v4029 = vmul.f32 %v1293, %v3885
  %v4030 = vmul.f32 %v1294, %v3886
  %v4031 = vmul.f32 %v1295, %v3887
  %v4032 = vmul.f32 %v1296, %v3888
  %v4033 = vmul.f32 %v1297, %v3889
  %v4034 = vmul.f32 %v1298, %v3890
  %v4035 = vmul.f32 %v1299, %v3891
  %v4036 = vmul.f32 %v1300, %v3892
  %v4037 = vmul.f32 %v1301, %v3893
  %v4038 = vmul.f32 %v1302, %v3894
  %v4039 = vmul.f32 %v1303, %v3895
  %v4040 = vmul.f32 %v1304, %v3896
  %v4041 = vmul.f32 %v1305, %v3897
  %v4042 = vmul.f32 %v1306, %v3898
  %v4043 = vmul.f32 %v1307, %v3899
  %v4044 = vmul.f32 %v1308, %v3900
  %v4045 = vmul.f32 %v1309, %v3901
  %v4046 = vmul.f32 %v1310, %v3902
  %v4047 = vsub.f32 %v3615, %v3903
  %v4048 = vsub.f32 %v3616, %v3904
  %v4049 = vsub.f32 %v3617, %v3905
  %v4050 = vsub.f32 %v3618, %v3906
  %v4051 = vsub.f32 %v3619, %v3907
  %v4052 = vsub.f32 %v3620, %v3908
  %v4053 = vsub.f32 %v3621, %v3909
  %v4054 = vsub.f32 %v3622, %v3910
  %v4055 = vsub.f32 %v3623, %v3911
  %v4056 = vsub.f32 %v3624, %v3912
  %v4057 = vsub.f32 %v3625, %v3913
  %v4058 = vsub.f32 %v3626, %v3914
  %v4059 = vsub.f32 %v3627, %v3915
  %v4060 = vsub.f32 %v3628, %v3916
  %v4061 = vsub.f32 %v3629, %v3917
  %v4062 = vsub.f32 %v3630, %v3918
  %v4063 = vsub.f32 %v3631, %v3919
  %v4064 = vsub.f32 %v3632, %v3920
  %v4065 = vsub.f32 %v3633, %v3921
  %v4066 = vsub.f32 %v3634, %v3922
  %v4067 = vsub.f32 %v3635, %v3923
  %v4068 = vsub.f32 %v3636, %v3924
  %v4069 = vsub.f32 %v3637, %v3925
  %v4070 = vsub.f32 %v3638, %v3926
  %v4071 = vsub.f32 %v3639, %v3927
  %v4072 = vsub.f32 %v3640, %v3928
  %v4073 = vsub.f32 %v3641, %v3929
  %v4074 = vsub.f32 %v3642, %v3930
  %v4075 = vsub.f32 %v3643, %v3931
  %v4076 = vsub.f32 %v3644, %v3932
  %v4077 = vsub.f32 %v3645, %v3933
  %v4078 = vsub.f32 %v3646, %v3934
  %v4079 = vsub.f32 %v3647, %v3935
  %v4080 = vsub.f32 %v3648, %v3936
  %v4081 = vsub.f32 %v3649, %v3937
  %v4082 = vsub.f32 %v3650, %v3938
  %v4083 = vsub.f32 %v3651, %v3939
  %v4084 = vsub.f32 %v3652, %v3940
  %v4085 = vsub.f32 %v3653, %v3941
  %v4086 = vsub.f32 %v3654, %v3942
  %v4087 = vsub.f32 %v3655, %v3943
  %v4088 = vsub.f32 %v3656, %v3944
  %v4089 = vsub.f32 %v3657, %v3945
  %v4090 = vsub.f32 %v3658, %v3946
  %v4091 = vsub.f32 %v3659, %v3947
  %v4092 = vsub.f32 %v3660, %v3948
  %v4093 = vsub.f32 %v3661, %v3949
  %v4094 = vsub.f32 %v3662, %v3950
  %v4095 = vsub.f32 %v3663, %v3951
  %v4096 = vsub.f32 %v3664, %v3952
  %v4097 = vsub.f32 %v3665, %v3953
  %v4098 = vsub.f32 %v3666, %v3954
  %v4099 = vsub.f32 %v3667, %v3955
  %v4100 = vsub.f32 %v3668, %v3956
  %v4101 = vsub.f32 %v3669, %v3957
  %v4102 = vsub.f32 %v3670, %v3958
  %v4103 = vsub.f32 %v3671, %v3959
  %v4104 = vsub.f32 %v3672, %v3960
  %v4105 = vsub.f32 %v3673, %v3961
  %v4106 = vsub.f32 %v3674, %v3962
  %v4107 = vsub.f32 %v3675, %v3963
  %v4108 = vsub.f32 %v3676, %v3964
  %v4109 = vsub.f32 %v3677, %v3965
  %v4110 = vsub.f32 %v3678, %v3966
  %v4111 = vsub.f32 %v3679, %v3967
  %v4112 = vsub.f32 %v3680, %v3968
  %v4113 = vsub.f32 %v3681, %v3969
  %v4114 = vsub.f32 %v3682, %v3970
  %v4115 = vsub.f32 %v3683, %v3971
  %v4116 = vsub.f32 %v3684, %v3972
  %v4117 = vsub.f32 %v3685, %v3973
  %v4118 = vsub.f32 %v3686, %v3974
  %v4119 = vsub.f32 %v3687, %v3975
  %v4120 = vsub.f32 %v3688, %v3976
  %v4121 = vsub.f32 %v3689, %v3977
  %v4122 = vsub.f32 %v3690, %v3978
  %v4123 = vsub.f32 %v3691, %v3979
  %v4124 = vsub.f32 %v3692, %v3980
  %v4125 = vsub.f32 %v3693, %v3981
  %v4126 = vsub.f32 %v3694, %v3982
  %v4127 = vsub.f32 %v3695, %v3983
  %v4128 = vsub.f32 %v3696, %v3984
  %v4129 = vsub.f32 %v3697, %v3985
  %v4130 = vsub.f32 %v3698, %v3986
  %v4131 = vsub.f32 %v3699, %v3987
  %v4132 = vsub.f32 %v3700, %v3988
  %v4133 = vsub.f32 %v3701, %v3989
  %v4134 = vsub.f32 %v3702, %v3990
  %v4135 = vsub.f32 %v3703, %v3991
  %v4136 = vsub.f32 %v3704, %v3992
  %v4137 = vsub.f32 %v3705, %v3993
  %v4138 = vsub.f32 %v3706, %v3994
  %v4139 = vsub.f32 %v3707, %v3995
  %v4140 = vsub.f32 %v3708, %v3996
  %v4141 = vsub.f32 %v3709, %v3997
  %v4142 = vsub.f32 %v3710, %v3998
  %v4143 = vsub.f32 %v3711, %v3999
  %v4144 = vsub.f32 %v3712, %v4000
  %v4145 = vsub.f32 %v3713, %v4001
  %v4146 = vsub.f32 %v3714, %v4002
  %v4147 = vsub.f32 %v3715, %v4003
  %v4148 = vsub.f32 %v3716, %v4004
  %v4149 = vsub.f32 %v3717, %v4005
  %v4150 = vsub.f32 %v3718, %v4006
  %v4151 = vsub.f32 %v3719, %v4007
  %v4152 = vsub.f32 %v3720, %v4008
  %v4153 = vsub.f32 %v3721, %v4009
  %v4154 = vsub.f32 %v3722, %v4010
  %v4155 = vsub.f32 %v3723, %v4011
  %v4156 = vsub.f32 %v3724, %v4012
  %v4157 = vsub.f32 %v3725, %v4013
  %v4158 = vsub.f32 %v3726, %v4014
  %v4159 = vsub.f32 %v3727, %v4015
  %v4160 = vsub.f32 %v3728, %v4016
  %v4161 = vsub.f32 %v3729, %v4017
  %v4162 = vsub.f32 %v3730, %v4018
  %v4163 = vsub.f32 %v3731, %v4019
  %v4164 = vsub.f32 %v3732, %v4020
  %v4165 = vsub.f32 %v3733, %v4021
  %v4166 = vsub.f32 %v3734, %v4022
  %v4167 = vsub.f32 %v3735, %v4023
  %v4168 = vsub.f32 %v3736, %v4024
  %v4169 = vsub.f32 %v3737, %v4025
  %v4170 = vsub.f32 %v3738, %v4026
  %v4171 = vsub.f32 %v3739, %v4027
  %v4172 = vsub.f32 %v3740, %v4028
  %v4173 = vsub.f32 %v3741, %v4029
  %v4174 = vsub.f32 %v3742, %v4030
  %v4175 = vsub.f32 %v3743, %v4031
  %v4176 = vsub.f32 %v3744, %v4032
  %v4177 = vsub.f32 %v3745, %v4033
  %v4178 = vsub.f32 %v3746, %v4034
  %v4179 = vsub.f32 %v3747, %v4035
  %v4180 = vsub.f32 %v3748, %v4036
  %v4181 = vsub.f32 %v3749, %v4037
  %v4182 = vsub.f32 %v3750, %v4038
  %v4183 = vsub.f32 %v3751, %v4039
  %v4184 = vsub.f32 %v3752, %v4040
  %v4185 = vsub.f32 %v3753, %v4041
  %v4186 = vsub.f32 %v3754, %v4042
  %v4187 = vsub.f32 %v3755, %v4043
  %v4188 = vsub.f32 %v3756, %v4044
  %v4189 = vsub.f32 %v3757, %v4045
  %v4190 = vsub.f32 %v3758, %v4046
  %4192 = vset.pattern.permute.xlu0 0
  %4193 = vperm.xlu0 %4192, %v3759
  %v4194 = vpop.permute.xlu0 %4193
  %4197 = vset.pattern.permute.xlu0 0
  %4198 = vperm.xlu0 %4197, %v3760
  %v4199 = vpop.permute.xlu0 %4198
  %4202 = vset.pattern.permute.xlu0 0
  %4203 = vperm.xlu0 %4202, %v3761
  %v4204 = vpop.permute.xlu0 %4203
  %4207 = vset.pattern.permute.xlu0 0
  %4208 = vperm.xlu0 %4207, %v3762
  %v4209 = vpop.permute.xlu0 %4208
  %4212 = vset.pattern.permute.xlu0 0
  %4213 = vperm.xlu0 %4212, %v3763
  %v4214 = vpop.permute.xlu0 %4213
  %4217 = vset.pattern.permute.xlu0 0
  %4218 = vperm.xlu0 %4217, %v3764
  %v4219 = vpop.permute.xlu0 %4218
  %4222 = vset.pattern.permute.xlu0 0
  %4223 = vperm.xlu0 %4222, %v3765
  %v4224 = vpop.permute.xlu0 %4223
  %4227 = vset.pattern.permute.xlu0 0
  %4228 = vperm.xlu0 %4227, %v3766
  %v4229 = vpop.permute.xlu0 %4228
  %4232 = vset.pattern.permute.xlu0 0
  %4233 = vperm.xlu0 %4232, %v3767
  %v4234 = vpop.permute.xlu0 %4233
  %4237 = vset.pattern.permute.xlu0 0
  %4238 = vperm.xlu0 %4237, %v3768
  %v4239 = vpop.permute.xlu0 %4238
  %4242 = vset.pattern.permute.xlu0 0
  %4243 = vperm.xlu0 %4242, %v3769
  %v4244 = vpop.permute.xlu0 %4243
  %4247 = vset.pattern.permute.xlu0 0
  %4248 = vperm.xlu0 %4247, %v3770
  %v4249 = vpop.permute.xlu0 %4248
  %4252 = vset.pattern.permute.xlu0 0
  %4253 = vperm.xlu0 %4252, %v3771
  %v4254 = vpop.permute.xlu0 %4253
  %4257 = vset.pattern.permute.xlu0 0
  %4258 = vperm.xlu0 %4257, %v3772
  %v4259 = vpop.permute.xlu0 %4258
  %4262 = vset.pattern.permute.xlu0 0
  %4263 = vperm.xlu0 %4262, %v3773
  %v4264 = vpop.permute.xlu0 %4263
  %4267 = vset.pattern.permute.xlu0 0
  %4268 = vperm.xlu0 %4267, %v3774
  %v4269 = vpop.permute.xlu0 %4268
  %4272 = vset.pattern.permute.xlu0 0
  %4273 = vperm.xlu0 %4272, %v3775
  %v4274 = vpop.permute.xlu0 %4273
  %4277 = vset.pattern.permute.xlu0 0
  %4278 = vperm.xlu0 %4277, %v3776
  %v4279 = vpop.permute.xlu0 %4278
  %4282 = vset.pattern.permute.xlu0 0
  %4283 = vperm.xlu0 %4282, %v3777
  %v4284 = vpop.permute.xlu0 %4283
  %4287 = vset.pattern.permute.xlu0 0
  %4288 = vperm.xlu0 %4287, %v3778
  %v4289 = vpop.permute.xlu0 %4288
  %4292 = vset.pattern.permute.xlu0 0
  %4293 = vperm.xlu0 %4292, %v3779
  %v4294 = vpop.permute.xlu0 %4293
  %4297 = vset.pattern.permute.xlu0 0
  %4298 = vperm.xlu0 %4297, %v3780
  %v4299 = vpop.permute.xlu0 %4298
  %4302 = vset.pattern.permute.xlu0 0
  %4303 = vperm.xlu0 %4302, %v3781
  %v4304 = vpop.permute.xlu0 %4303
  %4307 = vset.pattern.permute.xlu0 0
  %4308 = vperm.xlu0 %4307, %v3782
  %v4309 = vpop.permute.xlu0 %4308
  %4312 = vset.pattern.permute.xlu0 0
  %4313 = vperm.xlu0 %4312, %v3783
  %v4314 = vpop.permute.xlu0 %4313
  %4317 = vset.pattern.permute.xlu0 0
  %4318 = vperm.xlu0 %4317, %v3784
  %v4319 = vpop.permute.xlu0 %4318
  %4322 = vset.pattern.permute.xlu0 0
  %4323 = vperm.xlu0 %4322, %v3785
  %v4324 = vpop.permute.xlu0 %4323
  %4327 = vset.pattern.permute.xlu0 0
  %4328 = vperm.xlu0 %4327, %v3786
  %v4329 = vpop.permute.xlu0 %4328
  %4332 = vset.pattern.permute.xlu0 0
  %4333 = vperm.xlu0 %4332, %v3787
  %v4334 = vpop.permute.xlu0 %4333
  %4337 = vset.pattern.permute.xlu0 0
  %4338 = vperm.xlu0 %4337, %v3788
  %v4339 = vpop.permute.xlu0 %4338
  %4342 = vset.pattern.permute.xlu0 0
  %4343 = vperm.xlu0 %4342, %v3789
  %v4344 = vpop.permute.xlu0 %4343
  %4347 = vset.pattern.permute.xlu0 0
  %4348 = vperm.xlu0 %4347, %v3790
  %v4349 = vpop.permute.xlu0 %4348
  %4352 = vset.pattern.permute.xlu0 0
  %4353 = vperm.xlu0 %4352, %v3791
  %v4354 = vpop.permute.xlu0 %4353
  %4357 = vset.pattern.permute.xlu0 0
  %4358 = vperm.xlu0 %4357, %v3792
  %v4359 = vpop.permute.xlu0 %4358
  %4362 = vset.pattern.permute.xlu0 0
  %4363 = vperm.xlu0 %4362, %v3793
  %v4364 = vpop.permute.xlu0 %4363
  %4367 = vset.pattern.permute.xlu0 0
  %4368 = vperm.xlu0 %4367, %v3794
  %v4369 = vpop.permute.xlu0 %4368
  %4372 = vset.pattern.permute.xlu0 0
  %4373 = vperm.xlu0 %4372, %v3795
  %v4374 = vpop.permute.xlu0 %4373
  %4377 = vset.pattern.permute.xlu0 0
  %4378 = vperm.xlu0 %4377, %v3796
  %v4379 = vpop.permute.xlu0 %4378
  %4382 = vset.pattern.permute.xlu0 0
  %4383 = vperm.xlu0 %4382, %v3797
  %v4384 = vpop.permute.xlu0 %4383
  %4387 = vset.pattern.permute.xlu0 0
  %4388 = vperm.xlu0 %4387, %v3798
  %v4389 = vpop.permute.xlu0 %4388
  %4392 = vset.pattern.permute.xlu0 0
  %4393 = vperm.xlu0 %4392, %v3799
  %v4394 = vpop.permute.xlu0 %4393
  %4397 = vset.pattern.permute.xlu0 0
  %4398 = vperm.xlu0 %4397, %v3800
  %v4399 = vpop.permute.xlu0 %4398
  %4402 = vset.pattern.permute.xlu0 0
  %4403 = vperm.xlu0 %4402, %v3801
  %v4404 = vpop.permute.xlu0 %4403
  %4407 = vset.pattern.permute.xlu0 0
  %4408 = vperm.xlu0 %4407, %v3802
  %v4409 = vpop.permute.xlu0 %4408
  %4412 = vset.pattern.permute.xlu0 0
  %4413 = vperm.xlu0 %4412, %v3803
  %v4414 = vpop.permute.xlu0 %4413
  %4417 = vset.pattern.permute.xlu0 0
  %4418 = vperm.xlu0 %4417, %v3804
  %v4419 = vpop.permute.xlu0 %4418
  %4422 = vset.pattern.permute.xlu0 0
  %4423 = vperm.xlu0 %4422, %v3805
  %v4424 = vpop.permute.xlu0 %4423
  %4427 = vset.pattern.permute.xlu0 0
  %4428 = vperm.xlu0 %4427, %v3806
  %v4429 = vpop.permute.xlu0 %4428
  %4432 = vset.pattern.permute.xlu0 0
  %4433 = vperm.xlu0 %4432, %v3807
  %v4434 = vpop.permute.xlu0 %4433
  %4437 = vset.pattern.permute.xlu0 0
  %4438 = vperm.xlu0 %4437, %v3808
  %v4439 = vpop.permute.xlu0 %4438
  %4442 = vset.pattern.permute.xlu0 0
  %4443 = vperm.xlu0 %4442, %v3809
  %v4444 = vpop.permute.xlu0 %4443
  %4447 = vset.pattern.permute.xlu0 0
  %4448 = vperm.xlu0 %4447, %v3810
  %v4449 = vpop.permute.xlu0 %4448
  %4452 = vset.pattern.permute.xlu0 0
  %4453 = vperm.xlu0 %4452, %v3811
  %v4454 = vpop.permute.xlu0 %4453
  %4457 = vset.pattern.permute.xlu0 0
  %4458 = vperm.xlu0 %4457, %v3812
  %v4459 = vpop.permute.xlu0 %4458
  %4462 = vset.pattern.permute.xlu0 0
  %4463 = vperm.xlu0 %4462, %v3813
  %v4464 = vpop.permute.xlu0 %4463
  %4467 = vset.pattern.permute.xlu0 0
  %4468 = vperm.xlu0 %4467, %v3814
  %v4469 = vpop.permute.xlu0 %4468
  %4472 = vset.pattern.permute.xlu0 0
  %4473 = vperm.xlu0 %4472, %v3815
  %v4474 = vpop.permute.xlu0 %4473
  %4477 = vset.pattern.permute.xlu0 0
  %4478 = vperm.xlu0 %4477, %v3816
  %v4479 = vpop.permute.xlu0 %4478
  %4482 = vset.pattern.permute.xlu0 0
  %4483 = vperm.xlu0 %4482, %v3817
  %v4484 = vpop.permute.xlu0 %4483
  %4487 = vset.pattern.permute.xlu0 0
  %4488 = vperm.xlu0 %4487, %v3818
  %v4489 = vpop.permute.xlu0 %4488
  %4492 = vset.pattern.permute.xlu0 0
  %4493 = vperm.xlu0 %4492, %v3819
  %v4494 = vpop.permute.xlu0 %4493
  %4497 = vset.pattern.permute.xlu0 0
  %4498 = vperm.xlu0 %4497, %v3820
  %v4499 = vpop.permute.xlu0 %4498
  %4502 = vset.pattern.permute.xlu0 0
  %4503 = vperm.xlu0 %4502, %v3821
  %v4504 = vpop.permute.xlu0 %4503
  %4507 = vset.pattern.permute.xlu0 0
  %4508 = vperm.xlu0 %4507, %v3822
  %v4509 = vpop.permute.xlu0 %4508
  %4512 = vset.pattern.permute.xlu0 0
  %4513 = vperm.xlu0 %4512, %v3823
  %v4514 = vpop.permute.xlu0 %4513
  %4517 = vset.pattern.permute.xlu0 0
  %4518 = vperm.xlu0 %4517, %v3824
  %v4519 = vpop.permute.xlu0 %4518
  %4522 = vset.pattern.permute.xlu0 0
  %4523 = vperm.xlu0 %4522, %v3825
  %v4524 = vpop.permute.xlu0 %4523
  %4527 = vset.pattern.permute.xlu0 0
  %4528 = vperm.xlu0 %4527, %v3826
  %v4529 = vpop.permute.xlu0 %4528
  %4532 = vset.pattern.permute.xlu0 0
  %4533 = vperm.xlu0 %4532, %v3827
  %v4534 = vpop.permute.xlu0 %4533
  %4537 = vset.pattern.permute.xlu0 0
  %4538 = vperm.xlu0 %4537, %v3828
  %v4539 = vpop.permute.xlu0 %4538
  %4542 = vset.pattern.permute.xlu0 0
  %4543 = vperm.xlu0 %4542, %v3829
  %v4544 = vpop.permute.xlu0 %4543
  %4547 = vset.pattern.permute.xlu0 0
  %4548 = vperm.xlu0 %4547, %v3830
  %v4549 = vpop.permute.xlu0 %4548
  %4552 = vset.pattern.permute.xlu0 0
  %4553 = vperm.xlu0 %4552, %v3831
  %v4554 = vpop.permute.xlu0 %4553
  %4557 = vset.pattern.permute.xlu0 0
  %4558 = vperm.xlu0 %4557, %v3832
  %v4559 = vpop.permute.xlu0 %4558
  %4562 = vset.pattern.permute.xlu0 0
  %4563 = vperm.xlu0 %4562, %v3833
  %v4564 = vpop.permute.xlu0 %4563
  %4567 = vset.pattern.permute.xlu0 0
  %4568 = vperm.xlu0 %4567, %v3834
  %v4569 = vpop.permute.xlu0 %4568
  %4572 = vset.pattern.permute.xlu0 0
  %4573 = vperm.xlu0 %4572, %v3835
  %v4574 = vpop.permute.xlu0 %4573
  %4577 = vset.pattern.permute.xlu0 0
  %4578 = vperm.xlu0 %4577, %v3836
  %v4579 = vpop.permute.xlu0 %4578
  %4582 = vset.pattern.permute.xlu0 0
  %4583 = vperm.xlu0 %4582, %v3837
  %v4584 = vpop.permute.xlu0 %4583
  %4587 = vset.pattern.permute.xlu0 0
  %4588 = vperm.xlu0 %4587, %v3838
  %v4589 = vpop.permute.xlu0 %4588
  %4592 = vset.pattern.permute.xlu0 0
  %4593 = vperm.xlu0 %4592, %v3839
  %v4594 = vpop.permute.xlu0 %4593
  %4597 = vset.pattern.permute.xlu0 0
  %4598 = vperm.xlu0 %4597, %v3840
  %v4599 = vpop.permute.xlu0 %4598
  %4602 = vset.pattern.permute.xlu0 0
  %4603 = vperm.xlu0 %4602, %v3841
  %v4604 = vpop.permute.xlu0 %4603
  %4607 = vset.pattern.permute.xlu0 0
  %4608 = vperm.xlu0 %4607, %v3842
  %v4609 = vpop.permute.xlu0 %4608
  %4612 = vset.pattern.permute.xlu0 0
  %4613 = vperm.xlu0 %4612, %v3843
  %v4614 = vpop.permute.xlu0 %4613
  %4617 = vset.pattern.permute.xlu0 0
  %4618 = vperm.xlu0 %4617, %v3844
  %v4619 = vpop.permute.xlu0 %4618
  %4622 = vset.pattern.permute.xlu0 0
  %4623 = vperm.xlu0 %4622, %v3845
  %v4624 = vpop.permute.xlu0 %4623
  %4627 = vset.pattern.permute.xlu0 0
  %4628 = vperm.xlu0 %4627, %v3846
  %v4629 = vpop.permute.xlu0 %4628
  %4632 = vset.pattern.permute.xlu0 0
  %4633 = vperm.xlu0 %4632, %v3847
  %v4634 = vpop.permute.xlu0 %4633
  %4637 = vset.pattern.permute.xlu0 0
  %4638 = vperm.xlu0 %4637, %v3848
  %v4639 = vpop.permute.xlu0 %4638
  %4642 = vset.pattern.permute.xlu0 0
  %4643 = vperm.xlu0 %4642, %v3849
  %v4644 = vpop.permute.xlu0 %4643
  %4647 = vset.pattern.permute.xlu0 0
  %4648 = vperm.xlu0 %4647, %v3850
  %v4649 = vpop.permute.xlu0 %4648
  %4652 = vset.pattern.permute.xlu0 0
  %4653 = vperm.xlu0 %4652, %v3851
  %v4654 = vpop.permute.xlu0 %4653
  %4657 = vset.pattern.permute.xlu0 0
  %4658 = vperm.xlu0 %4657, %v3852
  %v4659 = vpop.permute.xlu0 %4658
  %4662 = vset.pattern.permute.xlu0 0
  %4663 = vperm.xlu0 %4662, %v3853
  %v4664 = vpop.permute.xlu0 %4663
  %4667 = vset.pattern.permute.xlu0 0
  %4668 = vperm.xlu0 %4667, %v3854
  %v4669 = vpop.permute.xlu0 %4668
  %4672 = vset.pattern.permute.xlu0 0
  %4673 = vperm.xlu0 %4672, %v3855
  %v4674 = vpop.permute.xlu0 %4673
  %4677 = vset.pattern.permute.xlu0 0
  %4678 = vperm.xlu0 %4677, %v3856
  %v4679 = vpop.permute.xlu0 %4678
  %4682 = vset.pattern.permute.xlu0 0
  %4683 = vperm.xlu0 %4682, %v3857
  %v4684 = vpop.permute.xlu0 %4683
  %4687 = vset.pattern.permute.xlu0 0
  %4688 = vperm.xlu0 %4687, %v3858
  %v4689 = vpop.permute.xlu0 %4688
  %4692 = vset.pattern.permute.xlu0 0
  %4693 = vperm.xlu0 %4692, %v3859
  %v4694 = vpop.permute.xlu0 %4693
  %4697 = vset.pattern.permute.xlu0 0
  %4698 = vperm.xlu0 %4697, %v3860
  %v4699 = vpop.permute.xlu0 %4698
  %4702 = vset.pattern.permute.xlu0 0
  %4703 = vperm.xlu0 %4702, %v3861
  %v4704 = vpop.permute.xlu0 %4703
  %4707 = vset.pattern.permute.xlu0 0
  %4708 = vperm.xlu0 %4707, %v3862
  %v4709 = vpop.permute.xlu0 %4708
  %4712 = vset.pattern.permute.xlu0 0
  %4713 = vperm.xlu0 %4712, %v3863
  %v4714 = vpop.permute.xlu0 %4713
  %4717 = vset.pattern.permute.xlu0 0
  %4718 = vperm.xlu0 %4717, %v3864
  %v4719 = vpop.permute.xlu0 %4718
  %4722 = vset.pattern.permute.xlu0 0
  %4723 = vperm.xlu0 %4722, %v3865
  %v4724 = vpop.permute.xlu0 %4723
  %4727 = vset.pattern.permute.xlu0 0
  %4728 = vperm.xlu0 %4727, %v3866
  %v4729 = vpop.permute.xlu0 %4728
  %4732 = vset.pattern.permute.xlu0 0
  %4733 = vperm.xlu0 %4732, %v3867
  %v4734 = vpop.permute.xlu0 %4733
  %4737 = vset.pattern.permute.xlu0 0
  %4738 = vperm.xlu0 %4737, %v3868
  %v4739 = vpop.permute.xlu0 %4738
  %4742 = vset.pattern.permute.xlu0 0
  %4743 = vperm.xlu0 %4742, %v3869
  %v4744 = vpop.permute.xlu0 %4743
  %4747 = vset.pattern.permute.xlu0 0
  %4748 = vperm.xlu0 %4747, %v3870
  %v4749 = vpop.permute.xlu0 %4748
  %4752 = vset.pattern.permute.xlu0 0
  %4753 = vperm.xlu0 %4752, %v3871
  %v4754 = vpop.permute.xlu0 %4753
  %4757 = vset.pattern.permute.xlu0 0
  %4758 = vperm.xlu0 %4757, %v3872
  %v4759 = vpop.permute.xlu0 %4758
  %4762 = vset.pattern.permute.xlu0 0
  %4763 = vperm.xlu0 %4762, %v3873
  %v4764 = vpop.permute.xlu0 %4763
  %4767 = vset.pattern.permute.xlu0 0
  %4768 = vperm.xlu0 %4767, %v3874
  %v4769 = vpop.permute.xlu0 %4768
  %4772 = vset.pattern.permute.xlu0 0
  %4773 = vperm.xlu0 %4772, %v3875
  %v4774 = vpop.permute.xlu0 %4773
  %4777 = vset.pattern.permute.xlu0 0
  %4778 = vperm.xlu0 %4777, %v3876
  %v4779 = vpop.permute.xlu0 %4778
  %4782 = vset.pattern.permute.xlu0 0
  %4783 = vperm.xlu0 %4782, %v3877
  %v4784 = vpop.permute.xlu0 %4783
  %4787 = vset.pattern.permute.xlu0 0
  %4788 = vperm.xlu0 %4787, %v3878
  %v4789 = vpop.permute.xlu0 %4788
  %4792 = vset.pattern.permute.xlu0 0
  %4793 = vperm.xlu0 %4792, %v3879
  %v4794 = vpop.permute.xlu0 %4793
  %4797 = vset.pattern.permute.xlu0 0
  %4798 = vperm.xlu0 %4797, %v3880
  %v4799 = vpop.permute.xlu0 %4798
  %4802 = vset.pattern.permute.xlu0 0
  %4803 = vperm.xlu0 %4802, %v3881
  %v4804 = vpop.permute.xlu0 %4803
  %4807 = vset.pattern.permute.xlu0 0
  %4808 = vperm.xlu0 %4807, %v3882
  %v4809 = vpop.permute.xlu0 %4808
  %4812 = vset.pattern.permute.xlu0 0
  %4813 = vperm.xlu0 %4812, %v3883
  %v4814 = vpop.permute.xlu0 %4813
  %4817 = vset.pattern.permute.xlu0 0
  %4818 = vperm.xlu0 %4817, %v3884
  %v4819 = vpop.permute.xlu0 %4818
  %4822 = vset.pattern.permute.xlu0 0
  %4823 = vperm.xlu0 %4822, %v3885
  %v4824 = vpop.permute.xlu0 %4823
  %4827 = vset.pattern.permute.xlu0 0
  %4828 = vperm.xlu0 %4827, %v3886
  %v4829 = vpop.permute.xlu0 %4828
  %4832 = vset.pattern.permute.xlu0 0
  %4833 = vperm.xlu0 %4832, %v3887
  %v4834 = vpop.permute.xlu0 %4833
  %4837 = vset.pattern.permute.xlu0 0
  %4838 = vperm.xlu0 %4837, %v3888
  %v4839 = vpop.permute.xlu0 %4838
  %4842 = vset.pattern.permute.xlu0 0
  %4843 = vperm.xlu0 %4842, %v3889
  %v4844 = vpop.permute.xlu0 %4843
  %4847 = vset.pattern.permute.xlu0 0
  %4848 = vperm.xlu0 %4847, %v3890
  %v4849 = vpop.permute.xlu0 %4848
  %4852 = vset.pattern.permute.xlu0 0
  %4853 = vperm.xlu0 %4852, %v3891
  %v4854 = vpop.permute.xlu0 %4853
  %4857 = vset.pattern.permute.xlu0 0
  %4858 = vperm.xlu0 %4857, %v3892
  %v4859 = vpop.permute.xlu0 %4858
  %4862 = vset.pattern.permute.xlu0 0
  %4863 = vperm.xlu0 %4862, %v3893
  %v4864 = vpop.permute.xlu0 %4863
  %4867 = vset.pattern.permute.xlu0 0
  %4868 = vperm.xlu0 %4867, %v3894
  %v4869 = vpop.permute.xlu0 %4868
  %4872 = vset.pattern.permute.xlu0 0
  %4873 = vperm.xlu0 %4872, %v3895
  %v4874 = vpop.permute.xlu0 %4873
  %4877 = vset.pattern.permute.xlu0 0
  %4878 = vperm.xlu0 %4877, %v3896
  %v4879 = vpop.permute.xlu0 %4878
  %4882 = vset.pattern.permute.xlu0 0
  %4883 = vperm.xlu0 %4882, %v3897
  %v4884 = vpop.permute.xlu0 %4883
  %4887 = vset.pattern.permute.xlu0 0
  %4888 = vperm.xlu0 %4887, %v3898
  %v4889 = vpop.permute.xlu0 %4888
  %4892 = vset.pattern.permute.xlu0 0
  %4893 = vperm.xlu0 %4892, %v3899
  %v4894 = vpop.permute.xlu0 %4893
  %4897 = vset.pattern.permute.xlu0 0
  %4898 = vperm.xlu0 %4897, %v3900
  %v4899 = vpop.permute.xlu0 %4898
  %4902 = vset.pattern.permute.xlu0 0
  %4903 = vperm.xlu0 %4902, %v3901
  %v4904 = vpop.permute.xlu0 %4903
  %4907 = vset.pattern.permute.xlu0 0
  %4908 = vperm.xlu0 %4907, %v3902
  %v4909 = vpop.permute.xlu0 %4908
  %v4911 = vmul.f32 %v14, %v4194
  %v4912 = vmul.f32 %v15, %v4199
  %v4913 = vmul.f32 %v16, %v4204
  %v4914 = vmul.f32 %v17, %v4209
  %v4915 = vmul.f32 %v18, %v4214
  %v4916 = vmul.f32 %v19, %v4219
  %v4917 = vmul.f32 %v20, %v4224
  %v4918 = vmul.f32 %v21, %v4229
  %v4919 = vmul.f32 %v22, %v4234
  %v4920 = vmul.f32 %v23, %v4239
  %v4921 = vmul.f32 %v24, %v4244
  %v4922 = vmul.f32 %v25, %v4249
  %v4923 = vmul.f32 %v26, %v4254
  %v4924 = vmul.f32 %v27, %v4259
  %v4925 = vmul.f32 %v28, %v4264
  %v4926 = vmul.f32 %v29, %v4269
  %v4927 = vmul.f32 %v30, %v4274
  %v4928 = vmul.f32 %v31, %v4279
  %v4929 = vmul.f32 %v32, %v4284
  %v4930 = vmul.f32 %v33, %v4289
  %v4931 = vmul.f32 %v34, %v4294
  %v4932 = vmul.f32 %v35, %v4299
  %v4933 = vmul.f32 %v36, %v4304
  %v4934 = vmul.f32 %v37, %v4309
  %v4935 = vmul.f32 %v38, %v4314
  %v4936 = vmul.f32 %v39, %v4319
  %v4937 = vmul.f32 %v40, %v4324
  %v4938 = vmul.f32 %v41, %v4329
  %v4939 = vmul.f32 %v42, %v4334
  %v4940 = vmul.f32 %v43, %v4339
  %v4941 = vmul.f32 %v44, %v4344
  %v4942 = vmul.f32 %v45, %v4349
  %v4943 = vmul.f32 %v46, %v4354
  %v4944 = vmul.f32 %v47, %v4359
  %v4945 = vmul.f32 %v48, %v4364
  %v4946 = vmul.f32 %v49, %v4369
  %v4947 = vmul.f32 %v50, %v4374
  %v4948 = vmul.f32 %v51, %v4379
  %v4949 = vmul.f32 %v52, %v4384
  %v4950 = vmul.f32 %v53, %v4389
  %v4951 = vmul.f32 %v54, %v4394
  %v4952 = vmul.f32 %v55, %v4399
  %v4953 = vmul.f32 %v56, %v4404
  %v4954 = vmul.f32 %v57, %v4409
  %v4955 = vmul.f32 %v58, %v4414
  %v4956 = vmul.f32 %v59, %v4419
  %v4957 = vmul.f32 %v60, %v4424
  %v4958 = vmul.f32 %v61, %v4429
  %v4959 = vmul.f32 %v62, %v4434
  %v4960 = vmul.f32 %v63, %v4439
  %v4961 = vmul.f32 %v64, %v4444
  %v4962 = vmul.f32 %v65, %v4449
  %v4963 = vmul.f32 %v66, %v4454
  %v4964 = vmul.f32 %v67, %v4459
  %v4965 = vmul.f32 %v68, %v4464
  %v4966 = vmul.f32 %v69, %v4469
  %v4967 = vmul.f32 %v70, %v4474
  %v4968 = vmul.f32 %v71, %v4479
  %v4969 = vmul.f32 %v72, %v4484
  %v4970 = vmul.f32 %v73, %v4489
  %v4971 = vmul.f32 %v74, %v4494
  %v4972 = vmul.f32 %v75, %v4499
  %v4973 = vmul.f32 %v76, %v4504
  %v4974 = vmul.f32 %v77, %v4509
  %v4975 = vmul.f32 %v78, %v4514
  %v4976 = vmul.f32 %v79, %v4519
  %v4977 = vmul.f32 %v80, %v4524
  %v4978 = vmul.f32 %v81, %v4529
  %v4979 = vmul.f32 %v82, %v4534
  %v4980 = vmul.f32 %v83, %v4539
  %v4981 = vmul.f32 %v84, %v4544
  %v4982 = vmul.f32 %v85, %v4549
  %v4983 = vmul.f32 %v86, %v4554
  %v4984 = vmul.f32 %v87, %v4559
  %v4985 = vmul.f32 %v88, %v4564
  %v4986 = vmul.f32 %v89, %v4569
  %v4987 = vmul.f32 %v90, %v4574
  %v4988 = vmul.f32 %v91, %v4579
  %v4989 = vmul.f32 %v92, %v4584
  %v4990 = vmul.f32 %v93, %v4589
  %v4991 = vmul.f32 %v94, %v4594
  %v4992 = vmul.f32 %v95, %v4599
  %v4993 = vmul.f32 %v96, %v4604
  %v4994 = vmul.f32 %v97, %v4609
  %v4995 = vmul.f32 %v98, %v4614
  %v4996 = vmul.f32 %v99, %v4619
  %v4997 = vmul.f32 %v100, %v4624
  %v4998 = vmul.f32 %v101, %v4629
  %v4999 = vmul.f32 %v102, %v4634
  %v5000 = vmul.f32 %v103, %v4639
  %v5001 = vmul.f32 %v104, %v4644
  %v5002 = vmul.f32 %v105, %v4649
  %v5003 = vmul.f32 %v106, %v4654
  %v5004 = vmul.f32 %v107, %v4659
  %v5005 = vmul.f32 %v108, %v4664
  %v5006 = vmul.f32 %v109, %v4669
  %v5007 = vmul.f32 %v110, %v4674
  %v5008 = vmul.f32 %v111, %v4679
  %v5009 = vmul.f32 %v112, %v4684
  %v5010 = vmul.f32 %v113, %v4689
  %v5011 = vmul.f32 %v114, %v4694
  %v5012 = vmul.f32 %v115, %v4699
  %v5013 = vmul.f32 %v116, %v4704
  %v5014 = vmul.f32 %v117, %v4709
  %v5015 = vmul.f32 %v118, %v4714
  %v5016 = vmul.f32 %v119, %v4719
  %v5017 = vmul.f32 %v120, %v4724
  %v5018 = vmul.f32 %v121, %v4729
  %v5019 = vmul.f32 %v122, %v4734
  %v5020 = vmul.f32 %v123, %v4739
  %v5021 = vmul.f32 %v124, %v4744
  %v5022 = vmul.f32 %v125, %v4749
  %v5023 = vmul.f32 %v126, %v4754
  %v5024 = vmul.f32 %v127, %v4759
  %v5025 = vmul.f32 %v128, %v4764
  %v5026 = vmul.f32 %v129, %v4769
  %v5027 = vmul.f32 %v130, %v4774
  %v5028 = vmul.f32 %v131, %v4779
  %v5029 = vmul.f32 %v132, %v4784
  %v5030 = vmul.f32 %v133, %v4789
  %v5031 = vmul.f32 %v134, %v4794
  %v5032 = vmul.f32 %v135, %v4799
  %v5033 = vmul.f32 %v136, %v4804
  %v5034 = vmul.f32 %v137, %v4809
  %v5035 = vmul.f32 %v138, %v4814
  %v5036 = vmul.f32 %v139, %v4819
  %v5037 = vmul.f32 %v140, %v4824
  %v5038 = vmul.f32 %v141, %v4829
  %v5039 = vmul.f32 %v142, %v4834
  %v5040 = vmul.f32 %v143, %v4839
  %v5041 = vmul.f32 %v144, %v4844
  %v5042 = vmul.f32 %v145, %v4849
  %v5043 = vmul.f32 %v146, %v4854
  %v5044 = vmul.f32 %v147, %v4859
  %v5045 = vmul.f32 %v148, %v4864
  %v5046 = vmul.f32 %v149, %v4869
  %v5047 = vmul.f32 %v150, %v4874
  %v5048 = vmul.f32 %v151, %v4879
  %v5049 = vmul.f32 %v152, %v4884
  %v5050 = vmul.f32 %v153, %v4889
  %v5051 = vmul.f32 %v154, %v4894
  %v5052 = vmul.f32 %v155, %v4899
  %v5053 = vmul.f32 %v156, %v4904
  %v5054 = vmul.f32 %v157, %v4909
  %5056 = vset.pattern.permute.xlu0 0
  %5057 = vperm.xlu0 %5056, %v4047
  %v5058 = vpop.permute.xlu0 %5057
  %5061 = vset.pattern.permute.xlu0 0
  %5062 = vperm.xlu0 %5061, %v4048
  %v5063 = vpop.permute.xlu0 %5062
  %5066 = vset.pattern.permute.xlu0 0
  %5067 = vperm.xlu0 %5066, %v4049
  %v5068 = vpop.permute.xlu0 %5067
  %5071 = vset.pattern.permute.xlu0 0
  %5072 = vperm.xlu0 %5071, %v4050
  %v5073 = vpop.permute.xlu0 %5072
  %5076 = vset.pattern.permute.xlu0 0
  %5077 = vperm.xlu0 %5076, %v4051
  %v5078 = vpop.permute.xlu0 %5077
  %5081 = vset.pattern.permute.xlu0 0
  %5082 = vperm.xlu0 %5081, %v4052
  %v5083 = vpop.permute.xlu0 %5082
  %5086 = vset.pattern.permute.xlu0 0
  %5087 = vperm.xlu0 %5086, %v4053
  %v5088 = vpop.permute.xlu0 %5087
  %5091 = vset.pattern.permute.xlu0 0
  %5092 = vperm.xlu0 %5091, %v4054
  %v5093 = vpop.permute.xlu0 %5092
  %5096 = vset.pattern.permute.xlu0 0
  %5097 = vperm.xlu0 %5096, %v4055
  %v5098 = vpop.permute.xlu0 %5097
  %5101 = vset.pattern.permute.xlu0 0
  %5102 = vperm.xlu0 %5101, %v4056
  %v5103 = vpop.permute.xlu0 %5102
  %5106 = vset.pattern.permute.xlu0 0
  %5107 = vperm.xlu0 %5106, %v4057
  %v5108 = vpop.permute.xlu0 %5107
  %5111 = vset.pattern.permute.xlu0 0
  %5112 = vperm.xlu0 %5111, %v4058
  %v5113 = vpop.permute.xlu0 %5112
  %5116 = vset.pattern.permute.xlu0 0
  %5117 = vperm.xlu0 %5116, %v4059
  %v5118 = vpop.permute.xlu0 %5117
  %5121 = vset.pattern.permute.xlu0 0
  %5122 = vperm.xlu0 %5121, %v4060
  %v5123 = vpop.permute.xlu0 %5122
  %5126 = vset.pattern.permute.xlu0 0
  %5127 = vperm.xlu0 %5126, %v4061
  %v5128 = vpop.permute.xlu0 %5127
  %5131 = vset.pattern.permute.xlu0 0
  %5132 = vperm.xlu0 %5131, %v4062
  %v5133 = vpop.permute.xlu0 %5132
  %5136 = vset.pattern.permute.xlu0 0
  %5137 = vperm.xlu0 %5136, %v4063
  %v5138 = vpop.permute.xlu0 %5137
  %5141 = vset.pattern.permute.xlu0 0
  %5142 = vperm.xlu0 %5141, %v4064
  %v5143 = vpop.permute.xlu0 %5142
  %5146 = vset.pattern.permute.xlu0 0
  %5147 = vperm.xlu0 %5146, %v4065
  %v5148 = vpop.permute.xlu0 %5147
  %5151 = vset.pattern.permute.xlu0 0
  %5152 = vperm.xlu0 %5151, %v4066
  %v5153 = vpop.permute.xlu0 %5152
  %5156 = vset.pattern.permute.xlu0 0
  %5157 = vperm.xlu0 %5156, %v4067
  %v5158 = vpop.permute.xlu0 %5157
  %5161 = vset.pattern.permute.xlu0 0
  %5162 = vperm.xlu0 %5161, %v4068
  %v5163 = vpop.permute.xlu0 %5162
  %5166 = vset.pattern.permute.xlu0 0
  %5167 = vperm.xlu0 %5166, %v4069
  %v5168 = vpop.permute.xlu0 %5167
  %5171 = vset.pattern.permute.xlu0 0
  %5172 = vperm.xlu0 %5171, %v4070
  %v5173 = vpop.permute.xlu0 %5172
  %5176 = vset.pattern.permute.xlu0 0
  %5177 = vperm.xlu0 %5176, %v4071
  %v5178 = vpop.permute.xlu0 %5177
  %5181 = vset.pattern.permute.xlu0 0
  %5182 = vperm.xlu0 %5181, %v4072
  %v5183 = vpop.permute.xlu0 %5182
  %5186 = vset.pattern.permute.xlu0 0
  %5187 = vperm.xlu0 %5186, %v4073
  %v5188 = vpop.permute.xlu0 %5187
  %5191 = vset.pattern.permute.xlu0 0
  %5192 = vperm.xlu0 %5191, %v4074
  %v5193 = vpop.permute.xlu0 %5192
  %5196 = vset.pattern.permute.xlu0 0
  %5197 = vperm.xlu0 %5196, %v4075
  %v5198 = vpop.permute.xlu0 %5197
  %5201 = vset.pattern.permute.xlu0 0
  %5202 = vperm.xlu0 %5201, %v4076
  %v5203 = vpop.permute.xlu0 %5202
  %5206 = vset.pattern.permute.xlu0 0
  %5207 = vperm.xlu0 %5206, %v4077
  %v5208 = vpop.permute.xlu0 %5207
  %5211 = vset.pattern.permute.xlu0 0
  %5212 = vperm.xlu0 %5211, %v4078
  %v5213 = vpop.permute.xlu0 %5212
  %5216 = vset.pattern.permute.xlu0 0
  %5217 = vperm.xlu0 %5216, %v4079
  %v5218 = vpop.permute.xlu0 %5217
  %5221 = vset.pattern.permute.xlu0 0
  %5222 = vperm.xlu0 %5221, %v4080
  %v5223 = vpop.permute.xlu0 %5222
  %5226 = vset.pattern.permute.xlu0 0
  %5227 = vperm.xlu0 %5226, %v4081
  %v5228 = vpop.permute.xlu0 %5227
  %5231 = vset.pattern.permute.xlu0 0
  %5232 = vperm.xlu0 %5231, %v4082
  %v5233 = vpop.permute.xlu0 %5232
  %5236 = vset.pattern.permute.xlu0 0
  %5237 = vperm.xlu0 %5236, %v4083
  %v5238 = vpop.permute.xlu0 %5237
  %5241 = vset.pattern.permute.xlu0 0
  %5242 = vperm.xlu0 %5241, %v4084
  %v5243 = vpop.permute.xlu0 %5242
  %5246 = vset.pattern.permute.xlu0 0
  %5247 = vperm.xlu0 %5246, %v4085
  %v5248 = vpop.permute.xlu0 %5247
  %5251 = vset.pattern.permute.xlu0 0
  %5252 = vperm.xlu0 %5251, %v4086
  %v5253 = vpop.permute.xlu0 %5252
  %5256 = vset.pattern.permute.xlu0 0
  %5257 = vperm.xlu0 %5256, %v4087
  %v5258 = vpop.permute.xlu0 %5257
  %5261 = vset.pattern.permute.xlu0 0
  %5262 = vperm.xlu0 %5261, %v4088
  %v5263 = vpop.permute.xlu0 %5262
  %5266 = vset.pattern.permute.xlu0 0
  %5267 = vperm.xlu0 %5266, %v4089
  %v5268 = vpop.permute.xlu0 %5267
  %5271 = vset.pattern.permute.xlu0 0
  %5272 = vperm.xlu0 %5271, %v4090
  %v5273 = vpop.permute.xlu0 %5272
  %5276 = vset.pattern.permute.xlu0 0
  %5277 = vperm.xlu0 %5276, %v4091
  %v5278 = vpop.permute.xlu0 %5277
  %5281 = vset.pattern.permute.xlu0 0
  %5282 = vperm.xlu0 %5281, %v4092
  %v5283 = vpop.permute.xlu0 %5282
  %5286 = vset.pattern.permute.xlu0 0
  %5287 = vperm.xlu0 %5286, %v4093
  %v5288 = vpop.permute.xlu0 %5287
  %5291 = vset.pattern.permute.xlu0 0
  %5292 = vperm.xlu0 %5291, %v4094
  %v5293 = vpop.permute.xlu0 %5292
  %5296 = vset.pattern.permute.xlu0 0
  %5297 = vperm.xlu0 %5296, %v4095
  %v5298 = vpop.permute.xlu0 %5297
  %5301 = vset.pattern.permute.xlu0 0
  %5302 = vperm.xlu0 %5301, %v4096
  %v5303 = vpop.permute.xlu0 %5302
  %5306 = vset.pattern.permute.xlu0 0
  %5307 = vperm.xlu0 %5306, %v4097
  %v5308 = vpop.permute.xlu0 %5307
  %5311 = vset.pattern.permute.xlu0 0
  %5312 = vperm.xlu0 %5311, %v4098
  %v5313 = vpop.permute.xlu0 %5312
  %5316 = vset.pattern.permute.xlu0 0
  %5317 = vperm.xlu0 %5316, %v4099
  %v5318 = vpop.permute.xlu0 %5317
  %5321 = vset.pattern.permute.xlu0 0
  %5322 = vperm.xlu0 %5321, %v4100
  %v5323 = vpop.permute.xlu0 %5322
  %5326 = vset.pattern.permute.xlu0 0
  %5327 = vperm.xlu0 %5326, %v4101
  %v5328 = vpop.permute.xlu0 %5327
  %5331 = vset.pattern.permute.xlu0 0
  %5332 = vperm.xlu0 %5331, %v4102
  %v5333 = vpop.permute.xlu0 %5332
  %5336 = vset.pattern.permute.xlu0 0
  %5337 = vperm.xlu0 %5336, %v4103
  %v5338 = vpop.permute.xlu0 %5337
  %5341 = vset.pattern.permute.xlu0 0
  %5342 = vperm.xlu0 %5341, %v4104
  %v5343 = vpop.permute.xlu0 %5342
  %5346 = vset.pattern.permute.xlu0 0
  %5347 = vperm.xlu0 %5346, %v4105
  %v5348 = vpop.permute.xlu0 %5347
  %5351 = vset.pattern.permute.xlu0 0
  %5352 = vperm.xlu0 %5351, %v4106
  %v5353 = vpop.permute.xlu0 %5352
  %5356 = vset.pattern.permute.xlu0 0
  %5357 = vperm.xlu0 %5356, %v4107
  %v5358 = vpop.permute.xlu0 %5357
  %5361 = vset.pattern.permute.xlu0 0
  %5362 = vperm.xlu0 %5361, %v4108
  %v5363 = vpop.permute.xlu0 %5362
  %5366 = vset.pattern.permute.xlu0 0
  %5367 = vperm.xlu0 %5366, %v4109
  %v5368 = vpop.permute.xlu0 %5367
  %5371 = vset.pattern.permute.xlu0 0
  %5372 = vperm.xlu0 %5371, %v4110
  %v5373 = vpop.permute.xlu0 %5372
  %5376 = vset.pattern.permute.xlu0 0
  %5377 = vperm.xlu0 %5376, %v4111
  %v5378 = vpop.permute.xlu0 %5377
  %5381 = vset.pattern.permute.xlu0 0
  %5382 = vperm.xlu0 %5381, %v4112
  %v5383 = vpop.permute.xlu0 %5382
  %5386 = vset.pattern.permute.xlu0 0
  %5387 = vperm.xlu0 %5386, %v4113
  %v5388 = vpop.permute.xlu0 %5387
  %5391 = vset.pattern.permute.xlu0 0
  %5392 = vperm.xlu0 %5391, %v4114
  %v5393 = vpop.permute.xlu0 %5392
  %5396 = vset.pattern.permute.xlu0 0
  %5397 = vperm.xlu0 %5396, %v4115
  %v5398 = vpop.permute.xlu0 %5397
  %5401 = vset.pattern.permute.xlu0 0
  %5402 = vperm.xlu0 %5401, %v4116
  %v5403 = vpop.permute.xlu0 %5402
  %5406 = vset.pattern.permute.xlu0 0
  %5407 = vperm.xlu0 %5406, %v4117
  %v5408 = vpop.permute.xlu0 %5407
  %5411 = vset.pattern.permute.xlu0 0
  %5412 = vperm.xlu0 %5411, %v4118
  %v5413 = vpop.permute.xlu0 %5412
  %5416 = vset.pattern.permute.xlu0 0
  %5417 = vperm.xlu0 %5416, %v4119
  %v5418 = vpop.permute.xlu0 %5417
  %5421 = vset.pattern.permute.xlu0 0
  %5422 = vperm.xlu0 %5421, %v4120
  %v5423 = vpop.permute.xlu0 %5422
  %5426 = vset.pattern.permute.xlu0 0
  %5427 = vperm.xlu0 %5426, %v4121
  %v5428 = vpop.permute.xlu0 %5427
  %5431 = vset.pattern.permute.xlu0 0
  %5432 = vperm.xlu0 %5431, %v4122
  %v5433 = vpop.permute.xlu0 %5432
  %5436 = vset.pattern.permute.xlu0 0
  %5437 = vperm.xlu0 %5436, %v4123
  %v5438 = vpop.permute.xlu0 %5437
  %5441 = vset.pattern.permute.xlu0 0
  %5442 = vperm.xlu0 %5441, %v4124
  %v5443 = vpop.permute.xlu0 %5442
  %5446 = vset.pattern.permute.xlu0 0
  %5447 = vperm.xlu0 %5446, %v4125
  %v5448 = vpop.permute.xlu0 %5447
  %5451 = vset.pattern.permute.xlu0 0
  %5452 = vperm.xlu0 %5451, %v4126
  %v5453 = vpop.permute.xlu0 %5452
  %5456 = vset.pattern.permute.xlu0 0
  %5457 = vperm.xlu0 %5456, %v4127
  %v5458 = vpop.permute.xlu0 %5457
  %5461 = vset.pattern.permute.xlu0 0
  %5462 = vperm.xlu0 %5461, %v4128
  %v5463 = vpop.permute.xlu0 %5462
  %5466 = vset.pattern.permute.xlu0 0
  %5467 = vperm.xlu0 %5466, %v4129
  %v5468 = vpop.permute.xlu0 %5467
  %5471 = vset.pattern.permute.xlu0 0
  %5472 = vperm.xlu0 %5471, %v4130
  %v5473 = vpop.permute.xlu0 %5472
  %5476 = vset.pattern.permute.xlu0 0
  %5477 = vperm.xlu0 %5476, %v4131
  %v5478 = vpop.permute.xlu0 %5477
  %5481 = vset.pattern.permute.xlu0 0
  %5482 = vperm.xlu0 %5481, %v4132
  %v5483 = vpop.permute.xlu0 %5482
  %5486 = vset.pattern.permute.xlu0 0
  %5487 = vperm.xlu0 %5486, %v4133
  %v5488 = vpop.permute.xlu0 %5487
  %5491 = vset.pattern.permute.xlu0 0
  %5492 = vperm.xlu0 %5491, %v4134
  %v5493 = vpop.permute.xlu0 %5492
  %5496 = vset.pattern.permute.xlu0 0
  %5497 = vperm.xlu0 %5496, %v4135
  %v5498 = vpop.permute.xlu0 %5497
  %5501 = vset.pattern.permute.xlu0 0
  %5502 = vperm.xlu0 %5501, %v4136
  %v5503 = vpop.permute.xlu0 %5502
  %5506 = vset.pattern.permute.xlu0 0
  %5507 = vperm.xlu0 %5506, %v4137
  %v5508 = vpop.permute.xlu0 %5507
  %5511 = vset.pattern.permute.xlu0 0
  %5512 = vperm.xlu0 %5511, %v4138
  %v5513 = vpop.permute.xlu0 %5512
  %5516 = vset.pattern.permute.xlu0 0
  %5517 = vperm.xlu0 %5516, %v4139
  %v5518 = vpop.permute.xlu0 %5517
  %5521 = vset.pattern.permute.xlu0 0
  %5522 = vperm.xlu0 %5521, %v4140
  %v5523 = vpop.permute.xlu0 %5522
  %5526 = vset.pattern.permute.xlu0 0
  %5527 = vperm.xlu0 %5526, %v4141
  %v5528 = vpop.permute.xlu0 %5527
  %5531 = vset.pattern.permute.xlu0 0
  %5532 = vperm.xlu0 %5531, %v4142
  %v5533 = vpop.permute.xlu0 %5532
  %5536 = vset.pattern.permute.xlu0 0
  %5537 = vperm.xlu0 %5536, %v4143
  %v5538 = vpop.permute.xlu0 %5537
  %5541 = vset.pattern.permute.xlu0 0
  %5542 = vperm.xlu0 %5541, %v4144
  %v5543 = vpop.permute.xlu0 %5542
  %5546 = vset.pattern.permute.xlu0 0
  %5547 = vperm.xlu0 %5546, %v4145
  %v5548 = vpop.permute.xlu0 %5547
  %5551 = vset.pattern.permute.xlu0 0
  %5552 = vperm.xlu0 %5551, %v4146
  %v5553 = vpop.permute.xlu0 %5552
  %5556 = vset.pattern.permute.xlu0 0
  %5557 = vperm.xlu0 %5556, %v4147
  %v5558 = vpop.permute.xlu0 %5557
  %5561 = vset.pattern.permute.xlu0 0
  %5562 = vperm.xlu0 %5561, %v4148
  %v5563 = vpop.permute.xlu0 %5562
  %5566 = vset.pattern.permute.xlu0 0
  %5567 = vperm.xlu0 %5566, %v4149
  %v5568 = vpop.permute.xlu0 %5567
  %5571 = vset.pattern.permute.xlu0 0
  %5572 = vperm.xlu0 %5571, %v4150
  %v5573 = vpop.permute.xlu0 %5572
  %5576 = vset.pattern.permute.xlu0 0
  %5577 = vperm.xlu0 %5576, %v4151
  %v5578 = vpop.permute.xlu0 %5577
  %5581 = vset.pattern.permute.xlu0 0
  %5582 = vperm.xlu0 %5581, %v4152
  %v5583 = vpop.permute.xlu0 %5582
  %5586 = vset.pattern.permute.xlu0 0
  %5587 = vperm.xlu0 %5586, %v4153
  %v5588 = vpop.permute.xlu0 %5587
  %5591 = vset.pattern.permute.xlu0 0
  %5592 = vperm.xlu0 %5591, %v4154
  %v5593 = vpop.permute.xlu0 %5592
  %5596 = vset.pattern.permute.xlu0 0
  %5597 = vperm.xlu0 %5596, %v4155
  %v5598 = vpop.permute.xlu0 %5597
  %5601 = vset.pattern.permute.xlu0 0
  %5602 = vperm.xlu0 %5601, %v4156
  %v5603 = vpop.permute.xlu0 %5602
  %5606 = vset.pattern.permute.xlu0 0
  %5607 = vperm.xlu0 %5606, %v4157
  %v5608 = vpop.permute.xlu0 %5607
  %5611 = vset.pattern.permute.xlu0 0
  %5612 = vperm.xlu0 %5611, %v4158
  %v5613 = vpop.permute.xlu0 %5612
  %5616 = vset.pattern.permute.xlu0 0
  %5617 = vperm.xlu0 %5616, %v4159
  %v5618 = vpop.permute.xlu0 %5617
  %5621 = vset.pattern.permute.xlu0 0
  %5622 = vperm.xlu0 %5621, %v4160
  %v5623 = vpop.permute.xlu0 %5622
  %5626 = vset.pattern.permute.xlu0 0
  %5627 = vperm.xlu0 %5626, %v4161
  %v5628 = vpop.permute.xlu0 %5627
  %5631 = vset.pattern.permute.xlu0 0
  %5632 = vperm.xlu0 %5631, %v4162
  %v5633 = vpop.permute.xlu0 %5632
  %5636 = vset.pattern.permute.xlu0 0
  %5637 = vperm.xlu0 %5636, %v4163
  %v5638 = vpop.permute.xlu0 %5637
  %5641 = vset.pattern.permute.xlu0 0
  %5642 = vperm.xlu0 %5641, %v4164
  %v5643 = vpop.permute.xlu0 %5642
  %5646 = vset.pattern.permute.xlu0 0
  %5647 = vperm.xlu0 %5646, %v4165
  %v5648 = vpop.permute.xlu0 %5647
  %5651 = vset.pattern.permute.xlu0 0
  %5652 = vperm.xlu0 %5651, %v4166
  %v5653 = vpop.permute.xlu0 %5652
  %5656 = vset.pattern.permute.xlu0 0
  %5657 = vperm.xlu0 %5656, %v4167
  %v5658 = vpop.permute.xlu0 %5657
  %5661 = vset.pattern.permute.xlu0 0
  %5662 = vperm.xlu0 %5661, %v4168
  %v5663 = vpop.permute.xlu0 %5662
  %5666 = vset.pattern.permute.xlu0 0
  %5667 = vperm.xlu0 %5666, %v4169
  %v5668 = vpop.permute.xlu0 %5667
  %5671 = vset.pattern.permute.xlu0 0
  %5672 = vperm.xlu0 %5671, %v4170
  %v5673 = vpop.permute.xlu0 %5672
  %5676 = vset.pattern.permute.xlu0 0
  %5677 = vperm.xlu0 %5676, %v4171
  %v5678 = vpop.permute.xlu0 %5677
  %5681 = vset.pattern.permute.xlu0 0
  %5682 = vperm.xlu0 %5681, %v4172
  %v5683 = vpop.permute.xlu0 %5682
  %5686 = vset.pattern.permute.xlu0 0
  %5687 = vperm.xlu0 %5686, %v4173
  %v5688 = vpop.permute.xlu0 %5687
  %5691 = vset.pattern.permute.xlu0 0
  %5692 = vperm.xlu0 %5691, %v4174
  %v5693 = vpop.permute.xlu0 %5692
  %5696 = vset.pattern.permute.xlu0 0
  %5697 = vperm.xlu0 %5696, %v4175
  %v5698 = vpop.permute.xlu0 %5697
  %5701 = vset.pattern.permute.xlu0 0
  %5702 = vperm.xlu0 %5701, %v4176
  %v5703 = vpop.permute.xlu0 %5702
  %5706 = vset.pattern.permute.xlu0 0
  %5707 = vperm.xlu0 %5706, %v4177
  %v5708 = vpop.permute.xlu0 %5707
  %5711 = vset.pattern.permute.xlu0 0
  %5712 = vperm.xlu0 %5711, %v4178
  %v5713 = vpop.permute.xlu0 %5712
  %5716 = vset.pattern.permute.xlu0 0
  %5717 = vperm.xlu0 %5716, %v4179
  %v5718 = vpop.permute.xlu0 %5717
  %5721 = vset.pattern.permute.xlu0 0
  %5722 = vperm.xlu0 %5721, %v4180
  %v5723 = vpop.permute.xlu0 %5722
  %5726 = vset.pattern.permute.xlu0 0
  %5727 = vperm.xlu0 %5726, %v4181
  %v5728 = vpop.permute.xlu0 %5727
  %5731 = vset.pattern.permute.xlu0 0
  %5732 = vperm.xlu0 %5731, %v4182
  %v5733 = vpop.permute.xlu0 %5732
  %5736 = vset.pattern.permute.xlu0 0
  %5737 = vperm.xlu0 %5736, %v4183
  %v5738 = vpop.permute.xlu0 %5737
  %5741 = vset.pattern.permute.xlu0 0
  %5742 = vperm.xlu0 %5741, %v4184
  %v5743 = vpop.permute.xlu0 %5742
  %5746 = vset.pattern.permute.xlu0 0
  %5747 = vperm.xlu0 %5746, %v4185
  %v5748 = vpop.permute.xlu0 %5747
  %5751 = vset.pattern.permute.xlu0 0
  %5752 = vperm.xlu0 %5751, %v4186
  %v5753 = vpop.permute.xlu0 %5752
  %5756 = vset.pattern.permute.xlu0 0
  %5757 = vperm.xlu0 %5756, %v4187
  %v5758 = vpop.permute.xlu0 %5757
  %5761 = vset.pattern.permute.xlu0 0
  %5762 = vperm.xlu0 %5761, %v4188
  %v5763 = vpop.permute.xlu0 %5762
  %5766 = vset.pattern.permute.xlu0 0
  %5767 = vperm.xlu0 %5766, %v4189
  %v5768 = vpop.permute.xlu0 %5767
  %5771 = vset.pattern.permute.xlu0 0
  %5772 = vperm.xlu0 %5771, %v4190
  %v5773 = vpop.permute.xlu0 %5772
  %v5775 = vadd.f32 %v4911, %v5058
  %v5776 = vadd.f32 %v4912, %v5063
  %v5777 = vadd.f32 %v4913, %v5068
  %v5778 = vadd.f32 %v4914, %v5073
  %v5779 = vadd.f32 %v4915, %v5078
  %v5780 = vadd.f32 %v4916, %v5083
  %v5781 = vadd.f32 %v4917, %v5088
  %v5782 = vadd.f32 %v4918, %v5093
  %v5783 = vadd.f32 %v4919, %v5098
  %v5784 = vadd.f32 %v4920, %v5103
  %v5785 = vadd.f32 %v4921, %v5108
  %v5786 = vadd.f32 %v4922, %v5113
  %v5787 = vadd.f32 %v4923, %v5118
  %v5788 = vadd.f32 %v4924, %v5123
  %v5789 = vadd.f32 %v4925, %v5128
  %v5790 = vadd.f32 %v4926, %v5133
  %v5791 = vadd.f32 %v4927, %v5138
  %v5792 = vadd.f32 %v4928, %v5143
  %v5793 = vadd.f32 %v4929, %v5148
  %v5794 = vadd.f32 %v4930, %v5153
  %v5795 = vadd.f32 %v4931, %v5158
  %v5796 = vadd.f32 %v4932, %v5163
  %v5797 = vadd.f32 %v4933, %v5168
  %v5798 = vadd.f32 %v4934, %v5173
  %v5799 = vadd.f32 %v4935, %v5178
  %v5800 = vadd.f32 %v4936, %v5183
  %v5801 = vadd.f32 %v4937, %v5188
  %v5802 = vadd.f32 %v4938, %v5193
  %v5803 = vadd.f32 %v4939, %v5198
  %v5804 = vadd.f32 %v4940, %v5203
  %v5805 = vadd.f32 %v4941, %v5208
  %v5806 = vadd.f32 %v4942, %v5213
  %v5807 = vadd.f32 %v4943, %v5218
  %v5808 = vadd.f32 %v4944, %v5223
  %v5809 = vadd.f32 %v4945, %v5228
  %v5810 = vadd.f32 %v4946, %v5233
  %v5811 = vadd.f32 %v4947, %v5238
  %v5812 = vadd.f32 %v4948, %v5243
  %v5813 = vadd.f32 %v4949, %v5248
  %v5814 = vadd.f32 %v4950, %v5253
  %v5815 = vadd.f32 %v4951, %v5258
  %v5816 = vadd.f32 %v4952, %v5263
  %v5817 = vadd.f32 %v4953, %v5268
  %v5818 = vadd.f32 %v4954, %v5273
  %v5819 = vadd.f32 %v4955, %v5278
  %v5820 = vadd.f32 %v4956, %v5283
  %v5821 = vadd.f32 %v4957, %v5288
  %v5822 = vadd.f32 %v4958, %v5293
  %v5823 = vadd.f32 %v4959, %v5298
  %v5824 = vadd.f32 %v4960, %v5303
  %v5825 = vadd.f32 %v4961, %v5308
  %v5826 = vadd.f32 %v4962, %v5313
  %v5827 = vadd.f32 %v4963, %v5318
  %v5828 = vadd.f32 %v4964, %v5323
  %v5829 = vadd.f32 %v4965, %v5328
  %v5830 = vadd.f32 %v4966, %v5333
  %v5831 = vadd.f32 %v4967, %v5338
  %v5832 = vadd.f32 %v4968, %v5343
  %v5833 = vadd.f32 %v4969, %v5348
  %v5834 = vadd.f32 %v4970, %v5353
  %v5835 = vadd.f32 %v4971, %v5358
  %v5836 = vadd.f32 %v4972, %v5363
  %v5837 = vadd.f32 %v4973, %v5368
  %v5838 = vadd.f32 %v4974, %v5373
  %v5839 = vadd.f32 %v4975, %v5378
  %v5840 = vadd.f32 %v4976, %v5383
  %v5841 = vadd.f32 %v4977, %v5388
  %v5842 = vadd.f32 %v4978, %v5393
  %v5843 = vadd.f32 %v4979, %v5398
  %v5844 = vadd.f32 %v4980, %v5403
  %v5845 = vadd.f32 %v4981, %v5408
  %v5846 = vadd.f32 %v4982, %v5413
  %v5847 = vadd.f32 %v4983, %v5418
  %v5848 = vadd.f32 %v4984, %v5423
  %v5849 = vadd.f32 %v4985, %v5428
  %v5850 = vadd.f32 %v4986, %v5433
  %v5851 = vadd.f32 %v4987, %v5438
  %v5852 = vadd.f32 %v4988, %v5443
  %v5853 = vadd.f32 %v4989, %v5448
  %v5854 = vadd.f32 %v4990, %v5453
  %v5855 = vadd.f32 %v4991, %v5458
  %v5856 = vadd.f32 %v4992, %v5463
  %v5857 = vadd.f32 %v4993, %v5468
  %v5858 = vadd.f32 %v4994, %v5473
  %v5859 = vadd.f32 %v4995, %v5478
  %v5860 = vadd.f32 %v4996, %v5483
  %v5861 = vadd.f32 %v4997, %v5488
  %v5862 = vadd.f32 %v4998, %v5493
  %v5863 = vadd.f32 %v4999, %v5498
  %v5864 = vadd.f32 %v5000, %v5503
  %v5865 = vadd.f32 %v5001, %v5508
  %v5866 = vadd.f32 %v5002, %v5513
  %v5867 = vadd.f32 %v5003, %v5518
  %v5868 = vadd.f32 %v5004, %v5523
  %v5869 = vadd.f32 %v5005, %v5528
  %v5870 = vadd.f32 %v5006, %v5533
  %v5871 = vadd.f32 %v5007, %v5538
  %v5872 = vadd.f32 %v5008, %v5543
  %v5873 = vadd.f32 %v5009, %v5548
  %v5874 = vadd.f32 %v5010, %v5553
  %v5875 = vadd.f32 %v5011, %v5558
  %v5876 = vadd.f32 %v5012, %v5563
  %v5877 = vadd.f32 %v5013, %v5568
  %v5878 = vadd.f32 %v5014, %v5573
  %v5879 = vadd.f32 %v5015, %v5578
  %v5880 = vadd.f32 %v5016, %v5583
  %v5881 = vadd.f32 %v5017, %v5588
  %v5882 = vadd.f32 %v5018, %v5593
  %v5883 = vadd.f32 %v5019, %v5598
  %v5884 = vadd.f32 %v5020, %v5603
  %v5885 = vadd.f32 %v5021, %v5608
  %v5886 = vadd.f32 %v5022, %v5613
  %v5887 = vadd.f32 %v5023, %v5618
  %v5888 = vadd.f32 %v5024, %v5623
  %v5889 = vadd.f32 %v5025, %v5628
  %v5890 = vadd.f32 %v5026, %v5633
  %v5891 = vadd.f32 %v5027, %v5638
  %v5892 = vadd.f32 %v5028, %v5643
  %v5893 = vadd.f32 %v5029, %v5648
  %v5894 = vadd.f32 %v5030, %v5653
  %v5895 = vadd.f32 %v5031, %v5658
  %v5896 = vadd.f32 %v5032, %v5663
  %v5897 = vadd.f32 %v5033, %v5668
  %v5898 = vadd.f32 %v5034, %v5673
  %v5899 = vadd.f32 %v5035, %v5678
  %v5900 = vadd.f32 %v5036, %v5683
  %v5901 = vadd.f32 %v5037, %v5688
  %v5902 = vadd.f32 %v5038, %v5693
  %v5903 = vadd.f32 %v5039, %v5698
  %v5904 = vadd.f32 %v5040, %v5703
  %v5905 = vadd.f32 %v5041, %v5708
  %v5906 = vadd.f32 %v5042, %v5713
  %v5907 = vadd.f32 %v5043, %v5718
  %v5908 = vadd.f32 %v5044, %v5723
  %v5909 = vadd.f32 %v5045, %v5728
  %v5910 = vadd.f32 %v5046, %v5733
  %v5911 = vadd.f32 %v5047, %v5738
  %v5912 = vadd.f32 %v5048, %v5743
  %v5913 = vadd.f32 %v5049, %v5748
  %v5914 = vadd.f32 %v5050, %v5753
  %v5915 = vadd.f32 %v5051, %v5758
  %v5916 = vadd.f32 %v5052, %v5763
  %v5917 = vadd.f32 %v5053, %v5768
  %v5918 = vadd.f32 %v5054, %v5773
  %v5919 = vmax.f32 %v5775, 0.0
  %v5920 = vmax.f32 %v5776, 0.0
  %v5921 = vmax.f32 %v5777, 0.0
  %v5922 = vmax.f32 %v5778, 0.0
  %v5923 = vmax.f32 %v5779, 0.0
  %v5924 = vmax.f32 %v5780, 0.0
  %v5925 = vmax.f32 %v5781, 0.0
  %v5926 = vmax.f32 %v5782, 0.0
  %v5927 = vmax.f32 %v5783, 0.0
  %v5928 = vmax.f32 %v5784, 0.0
  %v5929 = vmax.f32 %v5785, 0.0
  %v5930 = vmax.f32 %v5786, 0.0
  %v5931 = vmax.f32 %v5787, 0.0
  %v5932 = vmax.f32 %v5788, 0.0
  %v5933 = vmax.f32 %v5789, 0.0
  %v5934 = vmax.f32 %v5790, 0.0
  %v5935 = vmax.f32 %v5791, 0.0
  %v5936 = vmax.f32 %v5792, 0.0
  %v5937 = vmax.f32 %v5793, 0.0
  %v5938 = vmax.f32 %v5794, 0.0
  %v5939 = vmax.f32 %v5795, 0.0
  %v5940 = vmax.f32 %v5796, 0.0
  %v5941 = vmax.f32 %v5797, 0.0
  %v5942 = vmax.f32 %v5798, 0.0
  %v5943 = vmax.f32 %v5799, 0.0
  %v5944 = vmax.f32 %v5800, 0.0
  %v5945 = vmax.f32 %v5801, 0.0
  %v5946 = vmax.f32 %v5802, 0.0
  %v5947 = vmax.f32 %v5803, 0.0
  %v5948 = vmax.f32 %v5804, 0.0
  %v5949 = vmax.f32 %v5805, 0.0
  %v5950 = vmax.f32 %v5806, 0.0
  %v5951 = vmax.f32 %v5807, 0.0
  %v5952 = vmax.f32 %v5808, 0.0
  %v5953 = vmax.f32 %v5809, 0.0
  %v5954 = vmax.f32 %v5810, 0.0
  %v5955 = vmax.f32 %v5811, 0.0
  %v5956 = vmax.f32 %v5812, 0.0
  %v5957 = vmax.f32 %v5813, 0.0
  %v5958 = vmax.f32 %v5814, 0.0
  %v5959 = vmax.f32 %v5815, 0.0
  %v5960 = vmax.f32 %v5816, 0.0
  %v5961 = vmax.f32 %v5817, 0.0
  %v5962 = vmax.f32 %v5818, 0.0
  %v5963 = vmax.f32 %v5819, 0.0
  %v5964 = vmax.f32 %v5820, 0.0
  %v5965 = vmax.f32 %v5821, 0.0
  %v5966 = vmax.f32 %v5822, 0.0
  %v5967 = vmax.f32 %v5823, 0.0
  %v5968 = vmax.f32 %v5824, 0.0
  %v5969 = vmax.f32 %v5825, 0.0
  %v5970 = vmax.f32 %v5826, 0.0
  %v5971 = vmax.f32 %v5827, 0.0
  %v5972 = vmax.f32 %v5828, 0.0
  %v5973 = vmax.f32 %v5829, 0.0
  %v5974 = vmax.f32 %v5830, 0.0
  %v5975 = vmax.f32 %v5831, 0.0
  %v5976 = vmax.f32 %v5832, 0.0
  %v5977 = vmax.f32 %v5833, 0.0
  %v5978 = vmax.f32 %v5834, 0.0
  %v5979 = vmax.f32 %v5835, 0.0
  %v5980 = vmax.f32 %v5836, 0.0
  %v5981 = vmax.f32 %v5837, 0.0
  %v5982 = vmax.f32 %v5838, 0.0
  %v5983 = vmax.f32 %v5839, 0.0
  %v5984 = vmax.f32 %v5840, 0.0
  %v5985 = vmax.f32 %v5841, 0.0
  %v5986 = vmax.f32 %v5842, 0.0
  %v5987 = vmax.f32 %v5843, 0.0
  %v5988 = vmax.f32 %v5844, 0.0
  %v5989 = vmax.f32 %v5845, 0.0
  %v5990 = vmax.f32 %v5846, 0.0
  %v5991 = vmax.f32 %v5847, 0.0
  %v5992 = vmax.f32 %v5848, 0.0
  %v5993 = vmax.f32 %v5849, 0.0
  %v5994 = vmax.f32 %v5850, 0.0
  %v5995 = vmax.f32 %v5851, 0.0
  %v5996 = vmax.f32 %v5852, 0.0
  %v5997 = vmax.f32 %v5853, 0.0
  %v5998 = vmax.f32 %v5854, 0.0
  %v5999 = vmax.f32 %v5855, 0.0
  %v6000 = vmax.f32 %v5856, 0.0
  %v6001 = vmax.f32 %v5857, 0.0
  %v6002 = vmax.f32 %v5858, 0.0
  %v6003 = vmax.f32 %v5859, 0.0
  %v6004 = vmax.f32 %v5860, 0.0
  %v6005 = vmax.f32 %v5861, 0.0
  %v6006 = vmax.f32 %v5862, 0.0
  %v6007 = vmax.f32 %v5863, 0.0
  %v6008 = vmax.f32 %v5864, 0.0
  %v6009 = vmax.f32 %v5865, 0.0
  %v6010 = vmax.f32 %v5866, 0.0
  %v6011 = vmax.f32 %v5867, 0.0
  %v6012 = vmax.f32 %v5868, 0.0
  %v6013 = vmax.f32 %v5869, 0.0
  %v6014 = vmax.f32 %v5870, 0.0
  %v6015 = vmax.f32 %v5871, 0.0
  %v6016 = vmax.f32 %v5872, 0.0
  %v6017 = vmax.f32 %v5873, 0.0
  %v6018 = vmax.f32 %v5874, 0.0
  %v6019 = vmax.f32 %v5875, 0.0
  %v6020 = vmax.f32 %v5876, 0.0
  %v6021 = vmax.f32 %v5877, 0.0
  %v6022 = vmax.f32 %v5878, 0.0
  %v6023 = vmax.f32 %v5879, 0.0
  %v6024 = vmax.f32 %v5880, 0.0
  %v6025 = vmax.f32 %v5881, 0.0
  %v6026 = vmax.f32 %v5882, 0.0
  %v6027 = vmax.f32 %v5883, 0.0
  %v6028 = vmax.f32 %v5884, 0.0
  %v6029 = vmax.f32 %v5885, 0.0
  %v6030 = vmax.f32 %v5886, 0.0
  %v6031 = vmax.f32 %v5887, 0.0
  %v6032 = vmax.f32 %v5888, 0.0
  %v6033 = vmax.f32 %v5889, 0.0
  %v6034 = vmax.f32 %v5890, 0.0
  %v6035 = vmax.f32 %v5891, 0.0
  %v6036 = vmax.f32 %v5892, 0.0
  %v6037 = vmax.f32 %v5893, 0.0
  %v6038 = vmax.f32 %v5894, 0.0
  %v6039 = vmax.f32 %v5895, 0.0
  %v6040 = vmax.f32 %v5896, 0.0
  %v6041 = vmax.f32 %v5897, 0.0
  %v6042 = vmax.f32 %v5898, 0.0
  %v6043 = vmax.f32 %v5899, 0.0
  %v6044 = vmax.f32 %v5900, 0.0
  %v6045 = vmax.f32 %v5901, 0.0
  %v6046 = vmax.f32 %v5902, 0.0
  %v6047 = vmax.f32 %v5903, 0.0
  %v6048 = vmax.f32 %v5904, 0.0
  %v6049 = vmax.f32 %v5905, 0.0
  %v6050 = vmax.f32 %v5906, 0.0
  %v6051 = vmax.f32 %v5907, 0.0
  %v6052 = vmax.f32 %v5908, 0.0
  %v6053 = vmax.f32 %v5909, 0.0
  %v6054 = vmax.f32 %v5910, 0.0
  %v6055 = vmax.f32 %v5911, 0.0
  %v6056 = vmax.f32 %v5912, 0.0
  %v6057 = vmax.f32 %v5913, 0.0
  %v6058 = vmax.f32 %v5914, 0.0
  %v6059 = vmax.f32 %v5915, 0.0
  %v6060 = vmax.f32 %v5916, 0.0
  %v6061 = vmax.f32 %v5917, 0.0
  %v6062 = vmax.f32 %v5918, 0.0
  %6063 = vst.msk [vmem:[%s3] sm:$0xff] %vm158, %v5919
  %6064 = vst.msk [vmem:[%s3 + $0x8] sm:$0xff] %vm158, %v5920
  %6065 = vst.msk [vmem:[%s3 + $0x10] sm:$0xff] %vm158, %v5921
  %6066 = vst.msk [vmem:[%s3 + $0x18] sm:$0xff] %vm158, %v5922
  %6067 = vst.msk [vmem:[%s3 + $0x20] sm:$0xff] %vm158, %v5923
  %6068 = vst.msk [vmem:[%s3 + $0x28] sm:$0xff] %vm158, %v5924
  %6069 = vst.msk [vmem:[%s3 + $0x30] sm:$0xff] %vm158, %v5925
  %6070 = vst.msk [vmem:[%s3 + $0x38] sm:$0xff] %vm158, %v5926
  %6071 = vst.msk [vmem:[%s3 + $0x40] sm:$0xff] %vm158, %v5927
  %6072 = vst.msk [vmem:[%s3 + $0x48] sm:$0xff] %vm158, %v5928
  %6073 = vst.msk [vmem:[%s3 + $0x50] sm:$0xff] %vm158, %v5929
  %6074 = vst.msk [vmem:[%s3 + $0x58] sm:$0xff] %vm158, %v5930
  %6075 = vst.msk [vmem:[%s3 + $0x60] sm:$0xff] %vm158, %v5931
  %6076 = vst.msk [vmem:[%s3 + $0x68] sm:$0xff] %vm158, %v5932
  %6077 = vst.msk [vmem:[%s3 + $0x70] sm:$0xff] %vm158, %v5933
  %6078 = vst.msk [vmem:[%s3 + $0x78] sm:$0xff] %vm158, %v5934
  %6079 = vst.msk [vmem:[%s3 + $0x80] sm:$0xff] %vm158, %v5935
  %6080 = vst.msk [vmem:[%s3 + $0x88] sm:$0xff] %vm158, %v5936
  %6081 = vst.msk [vmem:[%s3 + $0x90] sm:$0xff] %vm158, %v5937
  %6082 = vst.msk [vmem:[%s3 + $0x98] sm:$0xff] %vm158, %v5938
  %6083 = vst.msk [vmem:[%s3 + $0xa0] sm:$0xff] %vm158, %v5939
  %6084 = vst.msk [vmem:[%s3 + $0xa8] sm:$0xff] %vm158, %v5940
  %6085 = vst.msk [vmem:[%s3 + $0xb0] sm:$0xff] %vm158, %v5941
  %6086 = vst.msk [vmem:[%s3 + $0xb8] sm:$0xff] %vm158, %v5942
  %6087 = vst.msk [vmem:[%s3 + $0xc0] sm:$0xff] %vm158, %v5943
  %6088 = vst.msk [vmem:[%s3 + $0xc8] sm:$0xff] %vm158, %v5944
  %6089 = vst.msk [vmem:[%s3 + $0xd0] sm:$0xff] %vm158, %v5945
  %6090 = vst.msk [vmem:[%s3 + $0xd8] sm:$0xff] %vm158, %v5946
  %6091 = vst.msk [vmem:[%s3 + $0xe0] sm:$0xff] %vm158, %v5947
  %6092 = vst.msk [vmem:[%s3 + $0xe8] sm:$0xff] %vm158, %v5948
  %6093 = vst.msk [vmem:[%s3 + $0xf0] sm:$0xff] %vm158, %v5949
  %6094 = vst.msk [vmem:[%s3 + $0xf8] sm:$0xff] %vm158, %v5950
  %6095 = vst.msk [vmem:[%s3 + $0x100] sm:$0xff] %vm158, %v5951
  %6096 = vst.msk [vmem:[%s3 + $0x108] sm:$0xff] %vm158, %v5952
  %6097 = vst.msk [vmem:[%s3 + $0x110] sm:$0xff] %vm158, %v5953
  %6098 = vst.msk [vmem:[%s3 + $0x118] sm:$0xff] %vm158, %v5954
  %6099 = vst.msk [vmem:[%s3 + $0x120] sm:$0xff] %vm158, %v5955
  %6100 = vst.msk [vmem:[%s3 + $0x128] sm:$0xff] %vm158, %v5956
  %6101 = vst.msk [vmem:[%s3 + $0x130] sm:$0xff] %vm158, %v5957
  %6102 = vst.msk [vmem:[%s3 + $0x138] sm:$0xff] %vm158, %v5958
  %6103 = vst.msk [vmem:[%s3 + $0x140] sm:$0xff] %vm158, %v5959
  %6104 = vst.msk [vmem:[%s3 + $0x148] sm:$0xff] %vm158, %v5960
  %6105 = vst.msk [vmem:[%s3 + $0x150] sm:$0xff] %vm158, %v5961
  %6106 = vst.msk [vmem:[%s3 + $0x158] sm:$0xff] %vm158, %v5962
  %6107 = vst.msk [vmem:[%s3 + $0x160] sm:$0xff] %vm158, %v5963
  %6108 = vst.msk [vmem:[%s3 + $0x168] sm:$0xff] %vm158, %v5964
  %6109 = vst.msk [vmem:[%s3 + $0x170] sm:$0xff] %vm158, %v5965
  %6110 = vst.msk [vmem:[%s3 + $0x178] sm:$0xff] %vm158, %v5966
  %6111 = vst.msk [vmem:[%s3 + $0x180] sm:$0xff] %vm158, %v5967
  %6112 = vst.msk [vmem:[%s3 + $0x188] sm:$0xff] %vm158, %v5968
  %6113 = vst.msk [vmem:[%s3 + $0x190] sm:$0xff] %vm158, %v5969
  %6114 = vst.msk [vmem:[%s3 + $0x198] sm:$0xff] %vm158, %v5970
  %6115 = vst.msk [vmem:[%s3 + $0x1a0] sm:$0xff] %vm158, %v5971
  %6116 = vst.msk [vmem:[%s3 + $0x1a8] sm:$0xff] %vm158, %v5972
  %6117 = vst.msk [vmem:[%s3 + $0x1b0] sm:$0xff] %vm158, %v5973
  %6118 = vst.msk [vmem:[%s3 + $0x1b8] sm:$0xff] %vm158, %v5974
  %6119 = vst.msk [vmem:[%s3 + $0x1c0] sm:$0xff] %vm158, %v5975
  %6120 = vst.msk [vmem:[%s3 + $0x1c8] sm:$0xff] %vm158, %v5976
  %6121 = vst.msk [vmem:[%s3 + $0x1d0] sm:$0xff] %vm158, %v5977
  %6122 = vst.msk [vmem:[%s3 + $0x1d8] sm:$0xff] %vm158, %v5978
  %6123 = vst.msk [vmem:[%s3 + $0x1e0] sm:$0xff] %vm158, %v5979
  %6124 = vst.msk [vmem:[%s3 + $0x1e8] sm:$0xff] %vm158, %v5980
  %6125 = vst.msk [vmem:[%s3 + $0x1f0] sm:$0xff] %vm158, %v5981
  %6126 = vst.msk [vmem:[%s3 + $0x1f8] sm:$0xff] %vm158, %v5982
  %6127 = vst.msk [vmem:[%s3 + $0x200] sm:$0xff] %vm158, %v5983
  %6128 = vst.msk [vmem:[%s3 + $0x208] sm:$0xff] %vm158, %v5984
  %6129 = vst.msk [vmem:[%s3 + $0x210] sm:$0xff] %vm158, %v5985
  %6130 = vst.msk [vmem:[%s3 + $0x218] sm:$0xff] %vm158, %v5986
  %6131 = vst.msk [vmem:[%s3 + $0x220] sm:$0xff] %vm158, %v5987
  %6132 = vst.msk [vmem:[%s3 + $0x228] sm:$0xff] %vm158, %v5988
  %6133 = vst.msk [vmem:[%s3 + $0x230] sm:$0xff] %vm158, %v5989
  %6134 = vst.msk [vmem:[%s3 + $0x238] sm:$0xff] %vm158, %v5990
  %6135 = vst.msk [vmem:[%s3 + $0x240] sm:$0xff] %vm158, %v5991
  %6136 = vst.msk [vmem:[%s3 + $0x248] sm:$0xff] %vm158, %v5992
  %6137 = vst.msk [vmem:[%s3 + $0x250] sm:$0xff] %vm158, %v5993
  %6138 = vst.msk [vmem:[%s3 + $0x258] sm:$0xff] %vm158, %v5994
  %6139 = vst.msk [vmem:[%s3 + $0x260] sm:$0xff] %vm158, %v5995
  %6140 = vst.msk [vmem:[%s3 + $0x268] sm:$0xff] %vm158, %v5996
  %6141 = vst.msk [vmem:[%s3 + $0x270] sm:$0xff] %vm158, %v5997
  %6142 = vst.msk [vmem:[%s3 + $0x278] sm:$0xff] %vm158, %v5998
  %6143 = vst.msk [vmem:[%s3 + $0x280] sm:$0xff] %vm158, %v5999
  %6144 = vst.msk [vmem:[%s3 + $0x288] sm:$0xff] %vm158, %v6000
  %6145 = vst.msk [vmem:[%s3 + $0x290] sm:$0xff] %vm158, %v6001
  %6146 = vst.msk [vmem:[%s3 + $0x298] sm:$0xff] %vm158, %v6002
  %6147 = vst.msk [vmem:[%s3 + $0x2a0] sm:$0xff] %vm158, %v6003
  %6148 = vst.msk [vmem:[%s3 + $0x2a8] sm:$0xff] %vm158, %v6004
  %6149 = vst.msk [vmem:[%s3 + $0x2b0] sm:$0xff] %vm158, %v6005
  %6150 = vst.msk [vmem:[%s3 + $0x2b8] sm:$0xff] %vm158, %v6006
  %6151 = vst.msk [vmem:[%s3 + $0x2c0] sm:$0xff] %vm158, %v6007
  %6152 = vst.msk [vmem:[%s3 + $0x2c8] sm:$0xff] %vm158, %v6008
  %6153 = vst.msk [vmem:[%s3 + $0x2d0] sm:$0xff] %vm158, %v6009
  %6154 = vst.msk [vmem:[%s3 + $0x2d8] sm:$0xff] %vm158, %v6010
  %6155 = vst.msk [vmem:[%s3 + $0x2e0] sm:$0xff] %vm158, %v6011
  %6156 = vst.msk [vmem:[%s3 + $0x2e8] sm:$0xff] %vm158, %v6012
  %6157 = vst.msk [vmem:[%s3 + $0x2f0] sm:$0xff] %vm158, %v6013
  %6158 = vst.msk [vmem:[%s3 + $0x2f8] sm:$0xff] %vm158, %v6014
  %6159 = vst.msk [vmem:[%s3 + $0x300] sm:$0xff] %vm158, %v6015
  %6160 = vst.msk [vmem:[%s3 + $0x308] sm:$0xff] %vm158, %v6016
  %6161 = vst.msk [vmem:[%s3 + $0x310] sm:$0xff] %vm158, %v6017
  %6162 = vst.msk [vmem:[%s3 + $0x318] sm:$0xff] %vm158, %v6018
  %6163 = vst.msk [vmem:[%s3 + $0x320] sm:$0xff] %vm158, %v6019
  %6164 = vst.msk [vmem:[%s3 + $0x328] sm:$0xff] %vm158, %v6020
  %6165 = vst.msk [vmem:[%s3 + $0x330] sm:$0xff] %vm158, %v6021
  %6166 = vst.msk [vmem:[%s3 + $0x338] sm:$0xff] %vm158, %v6022
  %6167 = vst.msk [vmem:[%s3 + $0x340] sm:$0xff] %vm158, %v6023
  %6168 = vst.msk [vmem:[%s3 + $0x348] sm:$0xff] %vm158, %v6024
  %6169 = vst.msk [vmem:[%s3 + $0x350] sm:$0xff] %vm158, %v6025
  %6170 = vst.msk [vmem:[%s3 + $0x358] sm:$0xff] %vm158, %v6026
  %6171 = vst.msk [vmem:[%s3 + $0x360] sm:$0xff] %vm158, %v6027
  %6172 = vst.msk [vmem:[%s3 + $0x368] sm:$0xff] %vm158, %v6028
  %6173 = vst.msk [vmem:[%s3 + $0x370] sm:$0xff] %vm158, %v6029
  %6174 = vst.msk [vmem:[%s3 + $0x378] sm:$0xff] %vm158, %v6030
  %6175 = vst.msk [vmem:[%s3 + $0x380] sm:$0xff] %vm158, %v6031
  %6176 = vst.msk [vmem:[%s3 + $0x388] sm:$0xff] %vm158, %v6032
  %6177 = vst.msk [vmem:[%s3 + $0x390] sm:$0xff] %vm158, %v6033
  %6178 = vst.msk [vmem:[%s3 + $0x398] sm:$0xff] %vm158, %v6034
  %6179 = vst.msk [vmem:[%s3 + $0x3a0] sm:$0xff] %vm158, %v6035
  %6180 = vst.msk [vmem:[%s3 + $0x3a8] sm:$0xff] %vm158, %v6036
  %6181 = vst.msk [vmem:[%s3 + $0x3b0] sm:$0xff] %vm158, %v6037
  %6182 = vst.msk [vmem:[%s3 + $0x3b8] sm:$0xff] %vm158, %v6038
  %6183 = vst.msk [vmem:[%s3 + $0x3c0] sm:$0xff] %vm158, %v6039
  %6184 = vst.msk [vmem:[%s3 + $0x3c8] sm:$0xff] %vm158, %v6040
  %6185 = vst.msk [vmem:[%s3 + $0x3d0] sm:$0xff] %vm158, %v6041
  %6186 = vst.msk [vmem:[%s3 + $0x3d8] sm:$0xff] %vm158, %v6042
  %6187 = vst.msk [vmem:[%s3 + $0x3e0] sm:$0xff] %vm158, %v6043
  %6188 = vst.msk [vmem:[%s3 + $0x3e8] sm:$0xff] %vm158, %v6044
  %6189 = vst.msk [vmem:[%s3 + $0x3f0] sm:$0xff] %vm158, %v6045
  %6190 = vst.msk [vmem:[%s3 + $0x3f8] sm:$0xff] %vm158, %v6046
  %6191 = vst.msk [vmem:[%s3 + $0x400] sm:$0xff] %vm158, %v6047
  %6192 = vst.msk [vmem:[%s3 + $0x408] sm:$0xff] %vm158, %v6048
  %6193 = vst.msk [vmem:[%s3 + $0x410] sm:$0xff] %vm158, %v6049
  %6194 = vst.msk [vmem:[%s3 + $0x418] sm:$0xff] %vm158, %v6050
  %6195 = vst.msk [vmem:[%s3 + $0x420] sm:$0xff] %vm158, %v6051
  %6196 = vst.msk [vmem:[%s3 + $0x428] sm:$0xff] %vm158, %v6052
  %6197 = vst.msk [vmem:[%s3 + $0x430] sm:$0xff] %vm158, %v6053
  %6198 = vst.msk [vmem:[%s3 + $0x438] sm:$0xff] %vm158, %v6054
  %6199 = vst.msk [vmem:[%s3 + $0x440] sm:$0xff] %vm158, %v6055
  %6200 = vst.msk [vmem:[%s3 + $0x448] sm:$0xff] %vm158, %v6056
  %6201 = vst.msk [vmem:[%s3 + $0x450] sm:$0xff] %vm158, %v6057
  %6202 = vst.msk [vmem:[%s3 + $0x458] sm:$0xff] %vm158, %v6058
  %6203 = vst.msk [vmem:[%s3 + $0x460] sm:$0xff] %vm158, %v6059
  %6204 = vst.msk [vmem:[%s3 + $0x468] sm:$0xff] %vm158, %v6060
  %6205 = vst.msk [vmem:[%s3 + $0x470] sm:$0xff] %vm158, %v6061
  %6206 = vst.msk [vmem:[%s3 + $0x478] sm:$0xff] %vm158, %v6062
  // Predicated region
  $region14: #{batchnorm_relu.1} parent=0 // pred_check
    _
  $region15: #{batchnorm_relu.1} parent=0 // pred_check_branch
    %6208 = sbr.rel (0) target = $region17
  $region16: #{batchnorm_relu.1} parent=0 // pred_region
    _
  $region17: #{batchnorm_relu.1} parent=0 // pred_fallthru
    _
  // Predicated region
  $region18: #{batchnorm_relu.1} parent=0 // pred_check
    _
  $region19: #{batchnorm_relu.1} parent=0 // pred_check_branch
    %6210 = sbr.rel (0) target = $region21
  $region20: #{batchnorm_relu.1} parent=0 // pred_region
    _
  $region21: #{batchnorm_relu.1} parent=0 // pred_fallthru
    _

</llo_original>
